<compile_context>
chip_gen: v6e
topology: v6e:2x2x1
jax: 0.10.0
libtpu: 0.0.40
codegen_flags: <defaults>
</compile_context>

<pallas_src>
import numpy as np
import jax
import jax.numpy as jnp
from jax import lax
from jax.experimental import pallas as pl
from jax.experimental.pallas import tpu as pltpu


# ----------------------------- Pallas kernel ------------------------------

def _make_kernel(layer_dims, c4, c2):
    """Builds the fused per-sample kernel (closed over static layer shapes)."""
    n_layers = len(layer_dims)

    def kernel(x_ref, *refs):
        o_ref = refs[-1]
        prefs = refs[:-1]
        per_layer = [prefs[5 * l: 5 * l + 5] for l in range(n_layers)]
        hw1_ref, hp1_ref, hw2_ref, hp2_ref = prefs[5 * n_layers: 5 * n_layers + 4]

        # Activation flows through the whole network as a value (VMEM resident).
        x = x_ref[...]                                       # (Hin0, Win0*Cin0) bf16
        y = None
        for l, d in enumerate(layer_dims):
            wb_ref, rb_ref, np_ref, sm_ref, smt_ref = per_layer[l]
            ho, wo, cout = d["Ho"], d["Wo"], d["Cout"]
            inv_n_sp = 1.0 / float(ho * wo)

            # ---- Conv2d(4x4, stride 2, pad 1, no bias) as 4x (select @ banded-W)
            acc = None
            for kh in range(4):
                rows = jnp.dot(rb_ref[kh], x,                 # exact 0/1 row select
                               preferred_element_type=jnp.float32)
                rows = rows.astype(jnp.bfloat16)              # (Ho, Win*Cin)
                term = jnp.dot(rows, wb_ref[kh],              # (Ho, Wo*Cout) f32
                               preferred_element_type=jnp.float32)
                acc = term if acc is None else acc + term

            # ---- InstanceNorm2d(affine, eps=1e-5, biased var) + PReLU(per-ch)
            # Per-channel sums gathered with ONE tiny matmul (rows stacked).
            ssum = jnp.sum(acc, axis=0, keepdims=True)         # (1, Wo*Cout)
            ssum2 = jnp.sum(acc * acc, axis=0, keepdims=True)  # (1, Wo*Cout)
            stats = jnp.dot(jnp.concatenate([ssum, ssum2], axis=0), sm_ref[...],
                            preferred_element_type=jnp.float32)      # (2, Cout)
            mean = stats[0:1, :] * inv_n_sp
            var = stats[1:2, :] * inv_n_sp - mean * mean        # one-pass variance
            gamma = np_ref[0:1, :]
            beta = np_ref[1:2, :]
            alpha = np_ref[2:3, :]
            scale = gamma * lax.rsqrt(var + 1e-5)               # (1, Cout)
            shift = beta - mean * scale
            # Broadcast scale/shift/alpha back to (.., Wo*Cout) with ONE matmul.
            sb = jnp.dot(jnp.concatenate([scale, shift, alpha], axis=0),
                         smt_ref[...],
                         preferred_element_type=jnp.float32)    # (3, Wo*Cout)
            y = acc * sb[0:1, :] + sb[1:2, :]
            y = jnp.where(y >= 0.0, y, sb[2:3, :] * y)          # PReLU, f32
            x = y.astype(jnp.bfloat16)                          # next layer's input

        # ---- AdaptiveMaxPool2d(1) + Flatten -------------------------------
        wo_last = layer_dims[-1]["Wo"]
        ymax = jnp.max(y, axis=0, keepdims=True)                # (1, Wo*C4)
        pooled_full = ymax
        for w_i in range(1, wo_last):                           # fold wo groups (XLU)
            pooled_full = jnp.maximum(
                pooled_full, pltpu.roll(ymax, shift=w_i * c4, axis=1))
        pooled = pooled_full[:, 0:c4]                           # (1, C4)

        # ---- Linear + Dropout(eval) + PReLU + Linear + LearnableSigmoid ----
        z = jnp.dot(pooled, hw1_ref[...],
                    preferred_element_type=jnp.float32) + hp1_ref[0:1, :]
        # TODO(synk): nn.Dropout(0.3) treated as eval-mode identity (no RNG mask).
        z = jnp.where(z >= 0.0, z, hp1_ref[1:2, :] * z)         # PReLU
        z = jnp.dot(z, hw2_ref[...],
                    preferred_element_type=jnp.float32) + hp2_ref[0:1, :]
        # LearnableSigmoid: beta * sigmoid(slope * x), beta = 1.2
        o_ref[...] = 1.2 * jax.nn.sigmoid(hp2_ref[1:2, :] * z)

    return kernel


# ------------------------------ JAX glue ----------------------------------

def spectral_normalize(w2d):
    # nn.utils.spectral_norm divides the weight by its largest singular value.
    # TODO(synk): PyTorch uses one power-iteration estimate per forward; we apply
    # the exact sigma once at init (outside the kernel).
    return w2d / jnp.linalg.norm(w2d, ord=2)


def _full_spec(a):
    nd = a.ndim
    return pl.BlockSpec(a.shape, lambda b, _nd=nd: (0,) * _nd)


def init_params(key, ndf, in_channel=2, H=32, W=32):
    chans = [in_channel, ndf, 2 * ndf, 4 * ndf, 8 * ndf]
    hs, ws = [H], [W]
    for _ in range(4):
        hs.append(hs[-1] // 2)
        ws.append(ws[-1] // 2)

    layer_dims = []
    conv_arrays = []
    ref_layers = []
    for l in range(4):
        key, k1, k2, k3 = jax.random.split(key, 4)
        cin, cout = chans[l], chans[l + 1]
        hin, win, ho, wo = hs[l], ws[l], hs[l + 1], ws[l + 1]

        # Conv weight, layout (kh, kw, cin, cout); spectral-norm on its 2D view.
        w = jax.random.normal(k1, (4, 4, cin, cout), jnp.float32) * 0.1
        w = spectral_normalize(w.reshape(16 * cin, cout)).reshape(4, 4, cin, cout)
        w_np = np.asarray(w)

        # Constant matrices that lower the stride-2 conv to plain matmuls.
        WB = np.zeros((4, win * cin, wo * cout), np.float32)   # banded weights
        RB = np.zeros((4, ho, hin), np.float32)                # 0/1 row selectors
        for kh in range(4):
            for oh in range(ho):
                h_in = 2 * oh + kh - 1                         # pad=1, stride=2
                if 0 <= h_in < hin:
                    RB[kh, oh, h_in] = 1.0
            for ow in range(wo):
                for kw in range(4):
                    w_in = 2 * ow + kw - 1
                    if 0 <= w_in < win:
                        WB[kh, w_in * cin:(w_in + 1) * cin,
                           ow * cout:(ow + 1) * cout] = w_np[kh, kw]
        SM = np.zeros((wo * cout, cout), np.float32)           # (wo,co)->co gather
        for ow in range(wo):
            SM[ow * cout:(ow + 1) * cout, :] = np.eye(cout, dtype=np.float32)

        gamma = 1.0 + 0.1 * jax.random.normal(k2, (cout,), jnp.float32)
        beta = 0.1 * jax.random.normal(k3, (cout,), jnp.float32)
        alpha = jnp.full((cout,), 0.25, jnp.float32)           # PReLU default init
        NP = jnp.stack([gamma, beta, alpha], axis=0)           # (3, Cout)

        conv_arrays.append((
            jnp.asarray(WB, jnp.bfloat16),                     # MXU operands in bf16
            jnp.asarray(RB, jnp.bfloat16),
            NP,
            jnp.asarray(SM, jnp.float32),
            jnp.asarray(SM.T.copy(), jnp.float32),
        ))
        ref_layers.append((w, gamma, beta, alpha))
        layer_dims.append(dict(Hin=hin, Win=win, Cin=cin, Cout=cout, Ho=ho, Wo=wo))

    c4, c2 = 8 * ndf, 4 * ndf
    key, k1, k2, k3, k4 = jax.random.split(key, 5)
    w1 = spectral_normalize(jax.random.normal(k1, (c4, c2), jnp.float32) * 0.1)
    b1 = 0.1 * jax.random.normal(k2, (c2,), jnp.float32)
    a1 = jnp.full((c2,), 0.25, jnp.float32)                    # PReLU default init
    w2 = spectral_normalize(jax.random.normal(k3, (c2, 1), jnp.float32) * 0.1)
    b2 = 0.1 * jax.random.normal(k4, (1,), jnp.float32)
    slope = jnp.ones((1,), jnp.float32)                        # LearnableSigmoid slope
    head_arrays = (
        w1,                                                    # (C4, C2)
        jnp.stack([b1, a1], axis=0),                           # (2, C2)  [bias; prelu]
        w2,                                                    # (C2, 1)
        jnp.stack([b2, slope], axis=0),                        # (2, 1)   [bias; slope]
    )
    ref_head = (w1, b1, a1, w2, b2, slope)
    return dict(conv=conv_arrays, head=head_arrays, layer_dims=layer_dims,
                c4=c4, c2=c2, ref_layers=ref_layers, ref_head=ref_head)


def discriminator_forward(params, x, y):
    """x, y: NCHW (B, 1, H, W) exactly as in the PyTorch module."""
    ld = params["layer_dims"]
    hin0, win0, cin0 = ld[0]["Hin"], ld[0]["Win"], ld[0]["Cin"]
    B = x.shape[0]

    xy = jnp.concatenate([x, y], axis=1)                       # (B, 2, H, W)
    xh = jnp.transpose(xy, (0, 2, 3, 1))                       # NCHW -> NHWC
    x2d = xh.reshape(B, hin0, win0 * cin0).astype(jnp.bfloat16)  # lane-dense (H, W*C)

    kernel = _make_kernel(ld, params["c4"], params["c2"])

    flat_inputs = [x2d]
    in_specs = [pl.BlockSpec((None, hin0, win0 * cin0), lambda b: (b, 0, 0))]
    for arrs in params["conv"]:
        for a in arrs:
            flat_inputs.append(a)
            in_specs.append(_full_spec(a))
    for a in params["head"]:
        flat_inputs.append(a)
        in_specs.append(_full_spec(a))

    out = pl.pallas_call(
        kernel,
        out_shape=jax.ShapeDtypeStruct((B, 1, 1), jnp.float32),
        grid=(B,),
        in_specs=in_specs,
        out_specs=pl.BlockSpec((None, 1, 1), lambda b: (b, 0, 0)),
        compiler_params=pltpu.CompilerParams(
            dimension_semantics=("parallel",)),
    )(*flat_inputs)
    return out.reshape(B, 1)


# -------------------------- pure-JAX reference ------------------------------

def reference_forward(params, x, y):
    xy = jnp.concatenate([x, y], axis=1)                       # (B, 2, H, W)
    h = jnp.transpose(xy, (0, 2, 3, 1))                        # NHWC
    for (w, gamma, beta, alpha) in params["ref_layers"]:
        h = lax.conv_general_dilated(
            h, w, window_strides=(2, 2), padding=((1, 1), (1, 1)),
            dimension_numbers=("NHWC", "HWIO", "NHWC"))
        mean = jnp.mean(h, axis=(1, 2), keepdims=True)
        var = jnp.mean((h - mean) ** 2, axis=(1, 2), keepdims=True)
        h = (h - mean) * lax.rsqrt(var + 1e-5) * gamma + beta
        h = jnp.where(h >= 0.0, h, alpha * h)
    pooled = jnp.max(h, axis=(1, 2))                           # (B, C4)
    w1, b1, a1, w2, b2, slope = params["ref_head"]
    z = pooled @ w1 + b1
    z = jnp.where(z >= 0.0, z, a1 * z)                         # PReLU (Dropout=eval id)
    z = z @ w2 + b2
    return 1.2 * jax.nn.sigmoid(slope * z)                     # (B, 1)


# --------------------------------- main ------------------------------------

if __name__ == "__main__":
    ndf = 8
    B, H, W = 2, 32, 32                                        # 32 -> 16 -> 8 -> 4 -> 2

    key = jax.random.PRNGKey(0)
    kp, kx, ky = jax.random.split(key, 3)
    params = init_params(kp, ndf, in_channel=2, H=H, W=W)

    x = jax.random.normal(kx, (B, 1, H, W), jnp.float32)
    y = jax.random.normal(ky, (B, 1, H, W), jnp.float32)

    fwd = jax.jit(lambda xx, yy: discriminator_forward(params, xx, yy))
    out = jax.block_until_ready(fwd(x, y))

    ref = jax.block_until_ready(reference_forward(params, x, y))

    assert out.shape == (B, 1), out.shape
    assert bool(jnp.all(jnp.isfinite(out)))
    assert bool(jnp.all((out >= 0.0) & (out <= 1.2)))          # 1.2 * sigmoid range
    max_err = float(jnp.max(jnp.abs(out - ref)))
    assert max_err < 5e-2, max_err                             # bf16-MXU tolerance
    print("KERNEL_OK")
</pallas_src>

<mosaic_0001>
module attributes {stable_mosaic.version = 11 : i64} {
  func.func @kernel(%arg0: i32, %arg1: memref<1x32x64xbf16, #tpu.memory_space<vmem>>, %arg2: memref<4x64x128xbf16, #tpu.memory_space<vmem>>, %arg3: memref<4x16x32xbf16, #tpu.memory_space<vmem>>, %arg4: memref<3x8xf32, #tpu.memory_space<vmem>>, %arg5: memref<128x8xf32, #tpu.memory_space<vmem>>, %arg6: memref<8x128xf32, #tpu.memory_space<vmem>>, %arg7: memref<4x128x128xbf16, #tpu.memory_space<vmem>>, %arg8: memref<4x8x16xbf16, #tpu.memory_space<vmem>>, %arg9: memref<3x16xf32, #tpu.memory_space<vmem>>, %arg10: memref<128x16xf32, #tpu.memory_space<vmem>>, %arg11: memref<16x128xf32, #tpu.memory_space<vmem>>, %arg12: memref<4x128x128xbf16, #tpu.memory_space<vmem>>, %arg13: memref<4x4x8xbf16, #tpu.memory_space<vmem>>, %arg14: memref<3x32xf32, #tpu.memory_space<vmem>>, %arg15: memref<128x32xf32, #tpu.memory_space<vmem>>, %arg16: memref<32x128xf32, #tpu.memory_space<vmem>>, %arg17: memref<4x128x128xbf16, #tpu.memory_space<vmem>>, %arg18: memref<4x2x4xbf16, #tpu.memory_space<vmem>>, %arg19: memref<3x64xf32, #tpu.memory_space<vmem>>, %arg20: memref<128x64xf32, #tpu.memory_space<vmem>>, %arg21: memref<64x128xf32, #tpu.memory_space<vmem>>, %arg22: memref<64x32xf32, #tpu.memory_space<vmem>>, %arg23: memref<2x32xf32, #tpu.memory_space<vmem>>, %arg24: memref<32x1xf32, #tpu.memory_space<vmem>>, %arg25: memref<2x1xf32, #tpu.memory_space<vmem>>, %arg26: memref<1x1x1xf32, #tpu.memory_space<vmem>>) attributes {dimension_semantics = [#tpu.dimension_semantics<parallel>], iteration_bounds = array<i64: 2>, scalar_prefetch = 0 : i64, scratch_operands = 0 : i64, tpu.core_type = #tpu.core_type<tc>, window_params = [{transform_indices = @transform_0, window_bounds = array<i64: 1, 32, 64>}, {pipeline_mode = #tpu.pipeline_mode<synchronous>, transform_indices = @transform_1, window_bounds = array<i64: 4, 64, 128>}, {pipeline_mode = #tpu.pipeline_mode<synchronous>, transform_indices = @transform_2, window_bounds = array<i64: 4, 16, 32>}, {pipeline_mode = #tpu.pipeline_mode<synchronous>, transform_indices = @transform_3, window_bounds = array<i64: 3, 8>}, {pipeline_mode = #tpu.pipeline_mode<synchronous>, transform_indices = @transform_4, window_bounds = array<i64: 128, 8>}, {pipeline_mode = #tpu.pipeline_mode<synchronous>, transform_indices = @transform_5, window_bounds = array<i64: 8, 128>}, {pipeline_mode = #tpu.pipeline_mode<synchronous>, transform_indices = @transform_6, window_bounds = array<i64: 4, 128, 128>}, {pipeline_mode = #tpu.pipeline_mode<synchronous>, transform_indices = @transform_7, window_bounds = array<i64: 4, 8, 16>}, {pipeline_mode = #tpu.pipeline_mode<synchronous>, transform_indices = @transform_8, window_bounds = array<i64: 3, 16>}, {pipeline_mode = #tpu.pipeline_mode<synchronous>, transform_indices = @transform_9, window_bounds = array<i64: 128, 16>}, {pipeline_mode = #tpu.pipeline_mode<synchronous>, transform_indices = @transform_10, window_bounds = array<i64: 16, 128>}, {pipeline_mode = #tpu.pipeline_mode<synchronous>, transform_indices = @transform_11, window_bounds = array<i64: 4, 128, 128>}, {pipeline_mode = #tpu.pipeline_mode<synchronous>, transform_indices = @transform_12, window_bounds = array<i64: 4, 4, 8>}, {pipeline_mode = #tpu.pipeline_mode<synchronous>, transform_indices = @transform_13, window_bounds = array<i64: 3, 32>}, {pipeline_mode = #tpu.pipeline_mode<synchronous>, transform_indices = @transform_14, window_bounds = array<i64: 128, 32>}, {pipeline_mode = #tpu.pipeline_mode<synchronous>, transform_indices = @transform_15, window_bounds = array<i64: 32, 128>}, {pipeline_mode = #tpu.pipeline_mode<synchronous>, transform_indices = @transform_16, window_bounds = array<i64: 4, 128, 128>}, {pipeline_mode = #tpu.pipeline_mode<synchronous>, transform_indices = @transform_17, window_bounds = array<i64: 4, 2, 4>}, {pipeline_mode = #tpu.pipeline_mode<synchronous>, transform_indices = @transform_18, window_bounds = array<i64: 3, 64>}, {pipeline_mode = #tpu.pipeline_mode<synchronous>, transform_indices = @transform_19, window_bounds = array<i64: 128, 64>}, {pipeline_mode = #tpu.pipeline_mode<synchronous>, transform_indices = @transform_20, window_bounds = array<i64: 64, 128>}, {pipeline_mode = #tpu.pipeline_mode<synchronous>, transform_indices = @transform_21, window_bounds = array<i64: 64, 32>}, {pipeline_mode = #tpu.pipeline_mode<synchronous>, transform_indices = @transform_22, window_bounds = array<i64: 2, 32>}, {pipeline_mode = #tpu.pipeline_mode<synchronous>, transform_indices = @transform_23, window_bounds = array<i64: 32, 1>}, {pipeline_mode = #tpu.pipeline_mode<synchronous>, transform_indices = @transform_24, window_bounds = array<i64: 2, 1>}, {transform_indices = @transform_25, window_bounds = array<i64: 1, 1, 1>}]} {
    %c0 = arith.constant 0 : index
    %c0_0 = arith.constant 0 : index
    %c0_1 = arith.constant 0 : index
    %0 = vector.load %arg1[%c0, %c0_0, %c0_1] : memref<1x32x64xbf16, #tpu.memory_space<vmem>>, vector<1x32x64xbf16>
    %1 = vector.shape_cast %0 : vector<1x32x64xbf16> to vector<32x64xbf16>
    %c0_2 = arith.constant 0 : index
    %c0_3 = arith.constant 0 : index
    %c0_4 = arith.constant 0 : index
    %2 = vector.load %arg3[%c0_2, %c0_3, %c0_4] : memref<4x16x32xbf16, #tpu.memory_space<vmem>>, vector<1x16x32xbf16>
    %3 = vector.shape_cast %2 : vector<1x16x32xbf16> to vector<16x32xbf16>
    %cst = arith.constant dense<0.000000e+00> : vector<16x64xf32>
    %4 = tpu.matmul %3, %1, %cst {dimension_numbers = #tpu.dot_dimension_numbers<[1], [0], [0], [1], [0, 0, 1, 1], [], []>} : vector<16x32xbf16>, vector<32x64xbf16>, vector<16x64xf32> -> vector<16x64xf32>
    %5 = arith.truncf %4 : vector<16x64xf32> to vector<16x64xbf16>
    %c0_5 = arith.constant 0 : index
    %c0_6 = arith.constant 0 : index
    %c0_7 = arith.constant 0 : index
    %6 = vector.load %arg2[%c0_5, %c0_6, %c0_7] : memref<4x64x128xbf16, #tpu.memory_space<vmem>>, vector<1x64x128xbf16>
    %7 = vector.shape_cast %6 : vector<1x64x128xbf16> to vector<64x128xbf16>
    %cst_8 = arith.constant dense<0.000000e+00> : vector<16x128xf32>
    %8 = tpu.matmul %5, %7, %cst_8 {dimension_numbers = #tpu.dot_dimension_numbers<[1], [0], [0], [1], [0, 0, 1, 1], [], []>} : vector<16x64xbf16>, vector<64x128xbf16>, vector<16x128xf32> -> vector<16x128xf32>
    %c1 = arith.constant 1 : index
    %c0_9 = arith.constant 0 : index
    %c0_10 = arith.constant 0 : index
    %9 = vector.load %arg3[%c1, %c0_9, %c0_10] : memref<4x16x32xbf16, #tpu.memory_space<vmem>>, vector<1x16x32xbf16>
    %10 = vector.shape_cast %9 : vector<1x16x32xbf16> to vector<16x32xbf16>
    %cst_11 = arith.constant dense<0.000000e+00> : vector<16x64xf32>
    %11 = tpu.matmul %10, %1, %cst_11 {dimension_numbers = #tpu.dot_dimension_numbers<[1], [0], [0], [1], [0, 0, 1, 1], [], []>} : vector<16x32xbf16>, vector<32x64xbf16>, vector<16x64xf32> -> vector<16x64xf32>
    %12 = arith.truncf %11 : vector<16x64xf32> to vector<16x64xbf16>
    %c1_12 = arith.constant 1 : index
    %c0_13 = arith.constant 0 : index
    %c0_14 = arith.constant 0 : index
    %13 = vector.load %arg2[%c1_12, %c0_13, %c0_14] : memref<4x64x128xbf16, #tpu.memory_space<vmem>>, vector<1x64x128xbf16>
    %14 = vector.shape_cast %13 : vector<1x64x128xbf16> to vector<64x128xbf16>
    %cst_15 = arith.constant dense<0.000000e+00> : vector<16x128xf32>
    %15 = tpu.matmul %12, %14, %cst_15 {dimension_numbers = #tpu.dot_dimension_numbers<[1], [0], [0], [1], [0, 0, 1, 1], [], []>} : vector<16x64xbf16>, vector<64x128xbf16>, vector<16x128xf32> -> vector<16x128xf32>
    %16 = arith.addf %8, %15 : vector<16x128xf32>
    %c2 = arith.constant 2 : index
    %c0_16 = arith.constant 0 : index
    %c0_17 = arith.constant 0 : index
    %17 = vector.load %arg3[%c2, %c0_16, %c0_17] : memref<4x16x32xbf16, #tpu.memory_space<vmem>>, vector<1x16x32xbf16>
    %18 = vector.shape_cast %17 : vector<1x16x32xbf16> to vector<16x32xbf16>
    %cst_18 = arith.constant dense<0.000000e+00> : vector<16x64xf32>
    %19 = tpu.matmul %18, %1, %cst_18 {dimension_numbers = #tpu.dot_dimension_numbers<[1], [0], [0], [1], [0, 0, 1, 1], [], []>} : vector<16x32xbf16>, vector<32x64xbf16>, vector<16x64xf32> -> vector<16x64xf32>
    %20 = arith.truncf %19 : vector<16x64xf32> to vector<16x64xbf16>
    %c2_19 = arith.constant 2 : index
    %c0_20 = arith.constant 0 : index
    %c0_21 = arith.constant 0 : index
    %21 = vector.load %arg2[%c2_19, %c0_20, %c0_21] : memref<4x64x128xbf16, #tpu.memory_space<vmem>>, vector<1x64x128xbf16>
    %22 = vector.shape_cast %21 : vector<1x64x128xbf16> to vector<64x128xbf16>
    %cst_22 = arith.constant dense<0.000000e+00> : vector<16x128xf32>
    %23 = tpu.matmul %20, %22, %cst_22 {dimension_numbers = #tpu.dot_dimension_numbers<[1], [0], [0], [1], [0, 0, 1, 1], [], []>} : vector<16x64xbf16>, vector<64x128xbf16>, vector<16x128xf32> -> vector<16x128xf32>
    %24 = arith.addf %16, %23 : vector<16x128xf32>
    %c3 = arith.constant 3 : index
    %c0_23 = arith.constant 0 : index
    %c0_24 = arith.constant 0 : index
    %25 = vector.load %arg3[%c3, %c0_23, %c0_24] : memref<4x16x32xbf16, #tpu.memory_space<vmem>>, vector<1x16x32xbf16>
    %26 = vector.shape_cast %25 : vector<1x16x32xbf16> to vector<16x32xbf16>
    %cst_25 = arith.constant dense<0.000000e+00> : vector<16x64xf32>
    %27 = tpu.matmul %26, %1, %cst_25 {dimension_numbers = #tpu.dot_dimension_numbers<[1], [0], [0], [1], [0, 0, 1, 1], [], []>} : vector<16x32xbf16>, vector<32x64xbf16>, vector<16x64xf32> -> vector<16x64xf32>
    %28 = arith.truncf %27 : vector<16x64xf32> to vector<16x64xbf16>
    %c3_26 = arith.constant 3 : index
    %c0_27 = arith.constant 0 : index
    %c0_28 = arith.constant 0 : index
    %29 = vector.load %arg2[%c3_26, %c0_27, %c0_28] : memref<4x64x128xbf16, #tpu.memory_space<vmem>>, vector<1x64x128xbf16>
    %30 = vector.shape_cast %29 : vector<1x64x128xbf16> to vector<64x128xbf16>
    %cst_29 = arith.constant dense<0.000000e+00> : vector<16x128xf32>
    %31 = tpu.matmul %28, %30, %cst_29 {dimension_numbers = #tpu.dot_dimension_numbers<[1], [0], [0], [1], [0, 0, 1, 1], [], []>} : vector<16x64xbf16>, vector<64x128xbf16>, vector<16x128xf32> -> vector<16x128xf32>
    %32 = arith.addf %24, %31 : vector<16x128xf32>
    %cst_30 = arith.constant dense<0.000000e+00> : vector<128xf32>
    %33 = vector.multi_reduction <add>, %32, %cst_30 [0] : vector<16x128xf32> to vector<128xf32>
    %34 = vector.shape_cast %33 : vector<128xf32> to vector<1x128xf32>
    %35 = arith.mulf %32, %32 : vector<16x128xf32>
    %cst_31 = arith.constant dense<0.000000e+00> : vector<128xf32>
    %36 = vector.multi_reduction <add>, %35, %cst_31 [0] : vector<16x128xf32> to vector<128xf32>
    %37 = vector.shape_cast %36 : vector<128xf32> to vector<1x128xf32>
    %38 = tpu.concatenate %34, %37 in 0 : vector<1x128xf32>, vector<1x128xf32> -> vector<2x128xf32>
    %c0_32 = arith.constant 0 : index
    %c0_33 = arith.constant 0 : index
    %39 = vector.load %arg5[%c0_32, %c0_33] : memref<128x8xf32, #tpu.memory_space<vmem>>, vector<128x8xf32>
    %cst_34 = arith.constant dense<0.000000e+00> : vector<2x8xf32>
    %40 = tpu.matmul %38, %39, %cst_34 {dimension_numbers = #tpu.dot_dimension_numbers<[1], [0], [0], [1], [0, 0, 1, 1], [], []>} : vector<2x128xf32>, vector<128x8xf32>, vector<2x8xf32> -> vector<2x8xf32>
    %41 = vector.extract_strided_slice %40 {offsets = [0, 0], sizes = [1, 8], strides = [1, 1]} : vector<2x8xf32> to vector<1x8xf32>
    %cst_35 = arith.constant 3.906250e-03 : f32
    %42 = vector.broadcast %cst_35 : f32 to vector<1x8xf32>
    %43 = arith.mulf %41, %42 : vector<1x8xf32>
    %44 = vector.extract_strided_slice %40 {offsets = [1, 0], sizes = [1, 8], strides = [1, 1]} : vector<2x8xf32> to vector<1x8xf32>
    %cst_36 = arith.constant 3.906250e-03 : f32
    %45 = vector.broadcast %cst_36 : f32 to vector<1x8xf32>
    %46 = arith.mulf %44, %45 : vector<1x8xf32>
    %47 = arith.mulf %43, %43 : vector<1x8xf32>
    %48 = arith.subf %46, %47 : vector<1x8xf32>
    %c0_37 = arith.constant 0 : index
    %c0_38 = arith.constant 0 : index
    %49 = vector.load %arg4[%c0_37, %c0_38] : memref<3x8xf32, #tpu.memory_space<vmem>>, vector<1x8xf32>
    %c1_39 = arith.constant 1 : index
    %c0_40 = arith.constant 0 : index
    %50 = vector.load %arg4[%c1_39, %c0_40] : memref<3x8xf32, #tpu.memory_space<vmem>>, vector<1x8xf32>
    %c2_41 = arith.constant 2 : index
    %c0_42 = arith.constant 0 : index
    %51 = vector.load %arg4[%c2_41, %c0_42] : memref<3x8xf32, #tpu.memory_space<vmem>>, vector<1x8xf32>
    %cst_43 = arith.constant 9.99999974E-6 : f32
    %52 = vector.broadcast %cst_43 : f32 to vector<1x8xf32>
    %53 = arith.addf %48, %52 : vector<1x8xf32>
    %54 = math.rsqrt %53 : vector<1x8xf32>
    %55 = arith.mulf %49, %54 : vector<1x8xf32>
    %56 = arith.mulf %43, %55 : vector<1x8xf32>
    %57 = arith.subf %50, %56 : vector<1x8xf32>
    %58 = tpu.concatenate %55, %57, %51 in 0 : vector<1x8xf32>, vector<1x8xf32>, vector<1x8xf32> -> vector<3x8xf32>
    %c0_44 = arith.constant 0 : index
    %c0_45 = arith.constant 0 : index
    %59 = vector.load %arg6[%c0_44, %c0_45] : memref<8x128xf32, #tpu.memory_space<vmem>>, vector<8x128xf32>
    %cst_46 = arith.constant dense<0.000000e+00> : vector<3x128xf32>
    %60 = tpu.matmul %58, %59, %cst_46 {dimension_numbers = #tpu.dot_dimension_numbers<[1], [0], [0], [1], [0, 0, 1, 1], [], []>} : vector<3x8xf32>, vector<8x128xf32>, vector<3x128xf32> -> vector<3x128xf32>
    %61 = vector.extract_strided_slice %60 {offsets = [0, 0], sizes = [1, 128], strides = [1, 1]} : vector<3x128xf32> to vector<1x128xf32>
    %62 = vector.broadcast %61 : vector<1x128xf32> to vector<16x128xf32>
    %63 = arith.mulf %32, %62 : vector<16x128xf32>
    %64 = vector.extract_strided_slice %60 {offsets = [1, 0], sizes = [1, 128], strides = [1, 1]} : vector<3x128xf32> to vector<1x128xf32>
    %65 = vector.broadcast %64 : vector<1x128xf32> to vector<16x128xf32>
    %66 = arith.addf %63, %65 : vector<16x128xf32>
    %cst_47 = arith.constant 0.000000e+00 : f32
    %67 = vector.broadcast %cst_47 : f32 to vector<16x128xf32>
    %68 = arith.cmpf oge, %66, %67 : vector<16x128xf32>
    %69 = vector.extract_strided_slice %60 {offsets = [2, 0], sizes = [1, 128], strides = [1, 1]} : vector<3x128xf32> to vector<1x128xf32>
    %70 = vector.broadcast %69 : vector<1x128xf32> to vector<16x128xf32>
    %71 = arith.mulf %70, %66 : vector<16x128xf32>
    %72 = arith.select %68, %66, %71 : vector<16x128xi1>, vector<16x128xf32>
    %73 = arith.truncf %72 : vector<16x128xf32> to vector<16x128xbf16>
    %c0_48 = arith.constant 0 : index
    %c0_49 = arith.constant 0 : index
    %c0_50 = arith.constant 0 : index
    %74 = vector.load %arg8[%c0_48, %c0_49, %c0_50] : memref<4x8x16xbf16, #tpu.memory_space<vmem>>, vector<1x8x16xbf16>
    %75 = vector.shape_cast %74 : vector<1x8x16xbf16> to vector<8x16xbf16>
    %cst_51 = arith.constant dense<0.000000e+00> : vector<8x128xf32>
    %76 = tpu.matmul %75, %73, %cst_51 {dimension_numbers = #tpu.dot_dimension_numbers<[1], [0], [0], [1], [0, 0, 1, 1], [], []>} : vector<8x16xbf16>, vector<16x128xbf16>, vector<8x128xf32> -> vector<8x128xf32>
    %77 = arith.truncf %76 : vector<8x128xf32> to vector<8x128xbf16>
    %c0_52 = arith.constant 0 : index
    %c0_53 = arith.constant 0 : index
    %c0_54 = arith.constant 0 : index
    %78 = vector.load %arg7[%c0_52, %c0_53, %c0_54] : memref<4x128x128xbf16, #tpu.memory_space<vmem>>, vector<1x128x128xbf16>
    %79 = vector.shape_cast %78 : vector<1x128x128xbf16> to vector<128x128xbf16>
    %cst_55 = arith.constant dense<0.000000e+00> : vector<8x128xf32>
    %80 = tpu.matmul %77, %79, %cst_55 {dimension_numbers = #tpu.dot_dimension_numbers<[1], [0], [0], [1], [0, 0, 1, 1], [], []>} : vector<8x128xbf16>, vector<128x128xbf16>, vector<8x128xf32> -> vector<8x128xf32>
    %c1_56 = arith.constant 1 : index
    %c0_57 = arith.constant 0 : index
    %c0_58 = arith.constant 0 : index
    %81 = vector.load %arg8[%c1_56, %c0_57, %c0_58] : memref<4x8x16xbf16, #tpu.memory_space<vmem>>, vector<1x8x16xbf16>
    %82 = vector.shape_cast %81 : vector<1x8x16xbf16> to vector<8x16xbf16>
    %cst_59 = arith.constant dense<0.000000e+00> : vector<8x128xf32>
    %83 = tpu.matmul %82, %73, %cst_59 {dimension_numbers = #tpu.dot_dimension_numbers<[1], [0], [0], [1], [0, 0, 1, 1], [], []>} : vector<8x16xbf16>, vector<16x128xbf16>, vector<8x128xf32> -> vector<8x128xf32>
    %84 = arith.truncf %83 : vector<8x128xf32> to vector<8x128xbf16>
    %c1_60 = arith.constant 1 : index
    %c0_61 = arith.constant 0 : index
    %c0_62 = arith.constant 0 : index
    %85 = vector.load %arg7[%c1_60, %c0_61, %c0_62] : memref<4x128x128xbf16, #tpu.memory_space<vmem>>, vector<1x128x128xbf16>
    %86 = vector.shape_cast %85 : vector<1x128x128xbf16> to vector<128x128xbf16>
    %cst_63 = arith.constant dense<0.000000e+00> : vector<8x128xf32>
    %87 = tpu.matmul %84, %86, %cst_63 {dimension_numbers = #tpu.dot_dimension_numbers<[1], [0], [0], [1], [0, 0, 1, 1], [], []>} : vector<8x128xbf16>, vector<128x128xbf16>, vector<8x128xf32> -> vector<8x128xf32>
    %88 = arith.addf %80, %87 : vector<8x128xf32>
    %c2_64 = arith.constant 2 : index
    %c0_65 = arith.constant 0 : index
    %c0_66 = arith.constant 0 : index
    %89 = vector.load %arg8[%c2_64, %c0_65, %c0_66] : memref<4x8x16xbf16, #tpu.memory_space<vmem>>, vector<1x8x16xbf16>
    %90 = vector.shape_cast %89 : vector<1x8x16xbf16> to vector<8x16xbf16>
    %cst_67 = arith.constant dense<0.000000e+00> : vector<8x128xf32>
    %91 = tpu.matmul %90, %73, %cst_67 {dimension_numbers = #tpu.dot_dimension_numbers<[1], [0], [0], [1], [0, 0, 1, 1], [], []>} : vector<8x16xbf16>, vector<16x128xbf16>, vector<8x128xf32> -> vector<8x128xf32>
    %92 = arith.truncf %91 : vector<8x128xf32> to vector<8x128xbf16>
    %c2_68 = arith.constant 2 : index
    %c0_69 = arith.constant 0 : index
    %c0_70 = arith.constant 0 : index
    %93 = vector.load %arg7[%c2_68, %c0_69, %c0_70] : memref<4x128x128xbf16, #tpu.memory_space<vmem>>, vector<1x128x128xbf16>
    %94 = vector.shape_cast %93 : vector<1x128x128xbf16> to vector<128x128xbf16>
    %cst_71 = arith.constant dense<0.000000e+00> : vector<8x128xf32>
    %95 = tpu.matmul %92, %94, %cst_71 {dimension_numbers = #tpu.dot_dimension_numbers<[1], [0], [0], [1], [0, 0, 1, 1], [], []>} : vector<8x128xbf16>, vector<128x128xbf16>, vector<8x128xf32> -> vector<8x128xf32>
    %96 = arith.addf %88, %95 : vector<8x128xf32>
    %c3_72 = arith.constant 3 : index
    %c0_73 = arith.constant 0 : index
    %c0_74 = arith.constant 0 : index
    %97 = vector.load %arg8[%c3_72, %c0_73, %c0_74] : memref<4x8x16xbf16, #tpu.memory_space<vmem>>, vector<1x8x16xbf16>
    %98 = vector.shape_cast %97 : vector<1x8x16xbf16> to vector<8x16xbf16>
    %cst_75 = arith.constant dense<0.000000e+00> : vector<8x128xf32>
    %99 = tpu.matmul %98, %73, %cst_75 {dimension_numbers = #tpu.dot_dimension_numbers<[1], [0], [0], [1], [0, 0, 1, 1], [], []>} : vector<8x16xbf16>, vector<16x128xbf16>, vector<8x128xf32> -> vector<8x128xf32>
    %100 = arith.truncf %99 : vector<8x128xf32> to vector<8x128xbf16>
    %c3_76 = arith.constant 3 : index
    %c0_77 = arith.constant 0 : index
    %c0_78 = arith.constant 0 : index
    %101 = vector.load %arg7[%c3_76, %c0_77, %c0_78] : memref<4x128x128xbf16, #tpu.memory_space<vmem>>, vector<1x128x128xbf16>
    %102 = vector.shape_cast %101 : vector<1x128x128xbf16> to vector<128x128xbf16>
    %cst_79 = arith.constant dense<0.000000e+00> : vector<8x128xf32>
    %103 = tpu.matmul %100, %102, %cst_79 {dimension_numbers = #tpu.dot_dimension_numbers<[1], [0], [0], [1], [0, 0, 1, 1], [], []>} : vector<8x128xbf16>, vector<128x128xbf16>, vector<8x128xf32> -> vector<8x128xf32>
    %104 = arith.addf %96, %103 : vector<8x128xf32>
    %cst_80 = arith.constant dense<0.000000e+00> : vector<128xf32>
    %105 = vector.multi_reduction <add>, %104, %cst_80 [0] : vector<8x128xf32> to vector<128xf32>
    %106 = vector.shape_cast %105 : vector<128xf32> to vector<1x128xf32>
    %107 = arith.mulf %104, %104 : vector<8x128xf32>
    %cst_81 = arith.constant dense<0.000000e+00> : vector<128xf32>
    %108 = vector.multi_reduction <add>, %107, %cst_81 [0] : vector<8x128xf32> to vector<128xf32>
    %109 = vector.shape_cast %108 : vector<128xf32> to vector<1x128xf32>
    %110 = tpu.concatenate %106, %109 in 0 : vector<1x128xf32>, vector<1x128xf32> -> vector<2x128xf32>
    %c0_82 = arith.constant 0 : index
    %c0_83 = arith.constant 0 : index
    %111 = vector.load %arg10[%c0_82, %c0_83] : memref<128x16xf32, #tpu.memory_space<vmem>>, vector<128x16xf32>
    %cst_84 = arith.constant dense<0.000000e+00> : vector<2x16xf32>
    %112 = tpu.matmul %110, %111, %cst_84 {dimension_numbers = #tpu.dot_dimension_numbers<[1], [0], [0], [1], [0, 0, 1, 1], [], []>} : vector<2x128xf32>, vector<128x16xf32>, vector<2x16xf32> -> vector<2x16xf32>
    %113 = vector.extract_strided_slice %112 {offsets = [0, 0], sizes = [1, 16], strides = [1, 1]} : vector<2x16xf32> to vector<1x16xf32>
    %cst_85 = arith.constant 1.562500e-02 : f32
    %114 = vector.broadcast %cst_85 : f32 to vector<1x16xf32>
    %115 = arith.mulf %113, %114 : vector<1x16xf32>
    %116 = vector.extract_strided_slice %112 {offsets = [1, 0], sizes = [1, 16], strides = [1, 1]} : vector<2x16xf32> to vector<1x16xf32>
    %cst_86 = arith.constant 1.562500e-02 : f32
    %117 = vector.broadcast %cst_86 : f32 to vector<1x16xf32>
    %118 = arith.mulf %116, %117 : vector<1x16xf32>
    %119 = arith.mulf %115, %115 : vector<1x16xf32>
    %120 = arith.subf %118, %119 : vector<1x16xf32>
    %c0_87 = arith.constant 0 : index
    %c0_88 = arith.constant 0 : index
    %121 = vector.load %arg9[%c0_87, %c0_88] : memref<3x16xf32, #tpu.memory_space<vmem>>, vector<1x16xf32>
    %c1_89 = arith.constant 1 : index
    %c0_90 = arith.constant 0 : index
    %122 = vector.load %arg9[%c1_89, %c0_90] : memref<3x16xf32, #tpu.memory_space<vmem>>, vector<1x16xf32>
    %c2_91 = arith.constant 2 : index
    %c0_92 = arith.constant 0 : index
    %123 = vector.load %arg9[%c2_91, %c0_92] : memref<3x16xf32, #tpu.memory_space<vmem>>, vector<1x16xf32>
    %cst_93 = arith.constant 9.99999974E-6 : f32
    %124 = vector.broadcast %cst_93 : f32 to vector<1x16xf32>
    %125 = arith.addf %120, %124 : vector<1x16xf32>
    %126 = math.rsqrt %125 : vector<1x16xf32>
    %127 = arith.mulf %121, %126 : vector<1x16xf32>
    %128 = arith.mulf %115, %127 : vector<1x16xf32>
    %129 = arith.subf %122, %128 : vector<1x16xf32>
    %130 = tpu.concatenate %127, %129, %123 in 0 : vector<1x16xf32>, vector<1x16xf32>, vector<1x16xf32> -> vector<3x16xf32>
    %c0_94 = arith.constant 0 : index
    %c0_95 = arith.constant 0 : index
    %131 = vector.load %arg11[%c0_94, %c0_95] : memref<16x128xf32, #tpu.memory_space<vmem>>, vector<16x128xf32>
    %cst_96 = arith.constant dense<0.000000e+00> : vector<3x128xf32>
    %132 = tpu.matmul %130, %131, %cst_96 {dimension_numbers = #tpu.dot_dimension_numbers<[1], [0], [0], [1], [0, 0, 1, 1], [], []>} : vector<3x16xf32>, vector<16x128xf32>, vector<3x128xf32> -> vector<3x128xf32>
    %133 = vector.extract_strided_slice %132 {offsets = [0, 0], sizes = [1, 128], strides = [1, 1]} : vector<3x128xf32> to vector<1x128xf32>
    %134 = vector.broadcast %133 : vector<1x128xf32> to vector<8x128xf32>
    %135 = arith.mulf %104, %134 : vector<8x128xf32>
    %136 = vector.extract_strided_slice %132 {offsets = [1, 0], sizes = [1, 128], strides = [1, 1]} : vector<3x128xf32> to vector<1x128xf32>
    %137 = vector.broadcast %136 : vector<1x128xf32> to vector<8x128xf32>
    %138 = arith.addf %135, %137 : vector<8x128xf32>
    %cst_97 = arith.constant 0.000000e+00 : f32
    %139 = vector.broadcast %cst_97 : f32 to vector<8x128xf32>
    %140 = arith.cmpf oge, %138, %139 : vector<8x128xf32>
    %141 = vector.extract_strided_slice %132 {offsets = [2, 0], sizes = [1, 128], strides = [1, 1]} : vector<3x128xf32> to vector<1x128xf32>
    %142 = vector.broadcast %141 : vector<1x128xf32> to vector<8x128xf32>
    %143 = arith.mulf %142, %138 : vector<8x128xf32>
    %144 = arith.select %140, %138, %143 : vector<8x128xi1>, vector<8x128xf32>
    %145 = arith.truncf %144 : vector<8x128xf32> to vector<8x128xbf16>
    %c0_98 = arith.constant 0 : index
    %c0_99 = arith.constant 0 : index
    %c0_100 = arith.constant 0 : index
    %146 = vector.load %arg13[%c0_98, %c0_99, %c0_100] : memref<4x4x8xbf16, #tpu.memory_space<vmem>>, vector<1x4x8xbf16>
    %147 = vector.shape_cast %146 : vector<1x4x8xbf16> to vector<4x8xbf16>
    %cst_101 = arith.constant dense<0.000000e+00> : vector<4x128xf32>
    %148 = tpu.matmul %147, %145, %cst_101 {dimension_numbers = #tpu.dot_dimension_numbers<[1], [0], [0], [1], [0, 0, 1, 1], [], []>} : vector<4x8xbf16>, vector<8x128xbf16>, vector<4x128xf32> -> vector<4x128xf32>
    %149 = arith.truncf %148 : vector<4x128xf32> to vector<4x128xbf16>
    %c0_102 = arith.constant 0 : index
    %c0_103 = arith.constant 0 : index
    %c0_104 = arith.constant 0 : index
    %150 = vector.load %arg12[%c0_102, %c0_103, %c0_104] : memref<4x128x128xbf16, #tpu.memory_space<vmem>>, vector<1x128x128xbf16>
    %151 = vector.shape_cast %150 : vector<1x128x128xbf16> to vector<128x128xbf16>
    %cst_105 = arith.constant dense<0.000000e+00> : vector<4x128xf32>
    %152 = tpu.matmul %149, %151, %cst_105 {dimension_numbers = #tpu.dot_dimension_numbers<[1], [0], [0], [1], [0, 0, 1, 1], [], []>} : vector<4x128xbf16>, vector<128x128xbf16>, vector<4x128xf32> -> vector<4x128xf32>
    %c1_106 = arith.constant 1 : index
    %c0_107 = arith.constant 0 : index
    %c0_108 = arith.constant 0 : index
    %153 = vector.load %arg13[%c1_106, %c0_107, %c0_108] : memref<4x4x8xbf16, #tpu.memory_space<vmem>>, vector<1x4x8xbf16>
    %154 = vector.shape_cast %153 : vector<1x4x8xbf16> to vector<4x8xbf16>
    %cst_109 = arith.constant dense<0.000000e+00> : vector<4x128xf32>
    %155 = tpu.matmul %154, %145, %cst_109 {dimension_numbers = #tpu.dot_dimension_numbers<[1], [0], [0], [1], [0, 0, 1, 1], [], []>} : vector<4x8xbf16>, vector<8x128xbf16>, vector<4x128xf32> -> vector<4x128xf32>
    %156 = arith.truncf %155 : vector<4x128xf32> to vector<4x128xbf16>
    %c1_110 = arith.constant 1 : index
    %c0_111 = arith.constant 0 : index
    %c0_112 = arith.constant 0 : index
    %157 = vector.load %arg12[%c1_110, %c0_111, %c0_112] : memref<4x128x128xbf16, #tpu.memory_space<vmem>>, vector<1x128x128xbf16>
    %158 = vector.shape_cast %157 : vector<1x128x128xbf16> to vector<128x128xbf16>
    %cst_113 = arith.constant dense<0.000000e+00> : vector<4x128xf32>
    %159 = tpu.matmul %156, %158, %cst_113 {dimension_numbers = #tpu.dot_dimension_numbers<[1], [0], [0], [1], [0, 0, 1, 1], [], []>} : vector<4x128xbf16>, vector<128x128xbf16>, vector<4x128xf32> -> vector<4x128xf32>
    %160 = arith.addf %152, %159 : vector<4x128xf32>
    %c2_114 = arith.constant 2 : index
    %c0_115 = arith.constant 0 : index
    %c0_116 = arith.constant 0 : index
    %161 = vector.load %arg13[%c2_114, %c0_115, %c0_116] : memref<4x4x8xbf16, #tpu.memory_space<vmem>>, vector<1x4x8xbf16>
    %162 = vector.shape_cast %161 : vector<1x4x8xbf16> to vector<4x8xbf16>
    %cst_117 = arith.constant dense<0.000000e+00> : vector<4x128xf32>
    %163 = tpu.matmul %162, %145, %cst_117 {dimension_numbers = #tpu.dot_dimension_numbers<[1], [0], [0], [1], [0, 0, 1, 1], [], []>} : vector<4x8xbf16>, vector<8x128xbf16>, vector<4x128xf32> -> vector<4x128xf32>
    %164 = arith.truncf %163 : vector<4x128xf32> to vector<4x128xbf16>
    %c2_118 = arith.constant 2 : index
    %c0_119 = arith.constant 0 : index
    %c0_120 = arith.constant 0 : index
    %165 = vector.load %arg12[%c2_118, %c0_119, %c0_120] : memref<4x128x128xbf16, #tpu.memory_space<vmem>>, vector<1x128x128xbf16>
    %166 = vector.shape_cast %165 : vector<1x128x128xbf16> to vector<128x128xbf16>
    %cst_121 = arith.constant dense<0.000000e+00> : vector<4x128xf32>
    %167 = tpu.matmul %164, %166, %cst_121 {dimension_numbers = #tpu.dot_dimension_numbers<[1], [0], [0], [1], [0, 0, 1, 1], [], []>} : vector<4x128xbf16>, vector<128x128xbf16>, vector<4x128xf32> -> vector<4x128xf32>
    %168 = arith.addf %160, %167 : vector<4x128xf32>
    %c3_122 = arith.constant 3 : index
    %c0_123 = arith.constant 0 : index
    %c0_124 = arith.constant 0 : index
    %169 = vector.load %arg13[%c3_122, %c0_123, %c0_124] : memref<4x4x8xbf16, #tpu.memory_space<vmem>>, vector<1x4x8xbf16>
    %170 = vector.shape_cast %169 : vector<1x4x8xbf16> to vector<4x8xbf16>
    %cst_125 = arith.constant dense<0.000000e+00> : vector<4x128xf32>
    %171 = tpu.matmul %170, %145, %cst_125 {dimension_numbers = #tpu.dot_dimension_numbers<[1], [0], [0], [1], [0, 0, 1, 1], [], []>} : vector<4x8xbf16>, vector<8x128xbf16>, vector<4x128xf32> -> vector<4x128xf32>
    %172 = arith.truncf %171 : vector<4x128xf32> to vector<4x128xbf16>
    %c3_126 = arith.constant 3 : index
    %c0_127 = arith.constant 0 : index
    %c0_128 = arith.constant 0 : index
    %173 = vector.load %arg12[%c3_126, %c0_127, %c0_128] : memref<4x128x128xbf16, #tpu.memory_space<vmem>>, vector<1x128x128xbf16>
    %174 = vector.shape_cast %173 : vector<1x128x128xbf16> to vector<128x128xbf16>
    %cst_129 = arith.constant dense<0.000000e+00> : vector<4x128xf32>
    %175 = tpu.matmul %172, %174, %cst_129 {dimension_numbers = #tpu.dot_dimension_numbers<[1], [0], [0], [1], [0, 0, 1, 1], [], []>} : vector<4x128xbf16>, vector<128x128xbf16>, vector<4x128xf32> -> vector<4x128xf32>
    %176 = arith.addf %168, %175 : vector<4x128xf32>
    %cst_130 = arith.constant dense<0.000000e+00> : vector<128xf32>
    %177 = vector.multi_reduction <add>, %176, %cst_130 [0] : vector<4x128xf32> to vector<128xf32>
    %178 = vector.shape_cast %177 : vector<128xf32> to vector<1x128xf32>
    %179 = arith.mulf %176, %176 : vector<4x128xf32>
    %cst_131 = arith.constant dense<0.000000e+00> : vector<128xf32>
    %180 = vector.multi_reduction <add>, %179, %cst_131 [0] : vector<4x128xf32> to vector<128xf32>
    %181 = vector.shape_cast %180 : vector<128xf32> to vector<1x128xf32>
    %182 = tpu.concatenate %178, %181 in 0 : vector<1x128xf32>, vector<1x128xf32> -> vector<2x128xf32>
    %c0_132 = arith.constant 0 : index
    %c0_133 = arith.constant 0 : index
    %183 = vector.load %arg15[%c0_132, %c0_133] : memref<128x32xf32, #tpu.memory_space<vmem>>, vector<128x32xf32>
    %cst_134 = arith.constant dense<0.000000e+00> : vector<2x32xf32>
    %184 = tpu.matmul %182, %183, %cst_134 {dimension_numbers = #tpu.dot_dimension_numbers<[1], [0], [0], [1], [0, 0, 1, 1], [], []>} : vector<2x128xf32>, vector<128x32xf32>, vector<2x32xf32> -> vector<2x32xf32>
    %185 = vector.extract_strided_slice %184 {offsets = [0, 0], sizes = [1, 32], strides = [1, 1]} : vector<2x32xf32> to vector<1x32xf32>
    %cst_135 = arith.constant 6.250000e-02 : f32
    %186 = vector.broadcast %cst_135 : f32 to vector<1x32xf32>
    %187 = arith.mulf %185, %186 : vector<1x32xf32>
    %188 = vector.extract_strided_slice %184 {offsets = [1, 0], sizes = [1, 32], strides = [1, 1]} : vector<2x32xf32> to vector<1x32xf32>
    %cst_136 = arith.constant 6.250000e-02 : f32
    %189 = vector.broadcast %cst_136 : f32 to vector<1x32xf32>
    %190 = arith.mulf %188, %189 : vector<1x32xf32>
    %191 = arith.mulf %187, %187 : vector<1x32xf32>
    %192 = arith.subf %190, %191 : vector<1x32xf32>
    %c0_137 = arith.constant 0 : index
    %c0_138 = arith.constant 0 : index
    %193 = vector.load %arg14[%c0_137, %c0_138] : memref<3x32xf32, #tpu.memory_space<vmem>>, vector<1x32xf32>
    %c1_139 = arith.constant 1 : index
    %c0_140 = arith.constant 0 : index
    %194 = vector.load %arg14[%c1_139, %c0_140] : memref<3x32xf32, #tpu.memory_space<vmem>>, vector<1x32xf32>
    %c2_141 = arith.constant 2 : index
    %c0_142 = arith.constant 0 : index
    %195 = vector.load %arg14[%c2_141, %c0_142] : memref<3x32xf32, #tpu.memory_space<vmem>>, vector<1x32xf32>
    %cst_143 = arith.constant 9.99999974E-6 : f32
    %196 = vector.broadcast %cst_143 : f32 to vector<1x32xf32>
    %197 = arith.addf %192, %196 : vector<1x32xf32>
    %198 = math.rsqrt %197 : vector<1x32xf32>
    %199 = arith.mulf %193, %198 : vector<1x32xf32>
    %200 = arith.mulf %187, %199 : vector<1x32xf32>
    %201 = arith.subf %194, %200 : vector<1x32xf32>
    %202 = tpu.concatenate %199, %201, %195 in 0 : vector<1x32xf32>, vector<1x32xf32>, vector<1x32xf32> -> vector<3x32xf32>
    %c0_144 = arith.constant 0 : index
    %c0_145 = arith.constant 0 : index
    %203 = vector.load %arg16[%c0_144, %c0_145] : memref<32x128xf32, #tpu.memory_space<vmem>>, vector<32x128xf32>
    %cst_146 = arith.constant dense<0.000000e+00> : vector<3x128xf32>
    %204 = tpu.matmul %202, %203, %cst_146 {dimension_numbers = #tpu.dot_dimension_numbers<[1], [0], [0], [1], [0, 0, 1, 1], [], []>} : vector<3x32xf32>, vector<32x128xf32>, vector<3x128xf32> -> vector<3x128xf32>
    %205 = vector.extract_strided_slice %204 {offsets = [0, 0], sizes = [1, 128], strides = [1, 1]} : vector<3x128xf32> to vector<1x128xf32>
    %206 = vector.broadcast %205 : vector<1x128xf32> to vector<4x128xf32>
    %207 = arith.mulf %176, %206 : vector<4x128xf32>
    %208 = vector.extract_strided_slice %204 {offsets = [1, 0], sizes = [1, 128], strides = [1, 1]} : vector<3x128xf32> to vector<1x128xf32>
    %209 = vector.broadcast %208 : vector<1x128xf32> to vector<4x128xf32>
    %210 = arith.addf %207, %209 : vector<4x128xf32>
    %cst_147 = arith.constant 0.000000e+00 : f32
    %211 = vector.broadcast %cst_147 : f32 to vector<4x128xf32>
    %212 = arith.cmpf oge, %210, %211 : vector<4x128xf32>
    %213 = vector.extract_strided_slice %204 {offsets = [2, 0], sizes = [1, 128], strides = [1, 1]} : vector<3x128xf32> to vector<1x128xf32>
    %214 = vector.broadcast %213 : vector<1x128xf32> to vector<4x128xf32>
    %215 = arith.mulf %214, %210 : vector<4x128xf32>
    %216 = arith.select %212, %210, %215 : vector<4x128xi1>, vector<4x128xf32>
    %217 = arith.truncf %216 : vector<4x128xf32> to vector<4x128xbf16>
    %c0_148 = arith.constant 0 : index
    %c0_149 = arith.constant 0 : index
    %c0_150 = arith.constant 0 : index
    %218 = vector.load %arg18[%c0_148, %c0_149, %c0_150] : memref<4x2x4xbf16, #tpu.memory_space<vmem>>, vector<1x2x4xbf16>
    %219 = vector.shape_cast %218 : vector<1x2x4xbf16> to vector<2x4xbf16>
    %cst_151 = arith.constant dense<0.000000e+00> : vector<2x128xf32>
    %220 = tpu.matmul %219, %217, %cst_151 {dimension_numbers = #tpu.dot_dimension_numbers<[1], [0], [0], [1], [0, 0, 1, 1], [], []>} : vector<2x4xbf16>, vector<4x128xbf16>, vector<2x128xf32> -> vector<2x128xf32>
    %221 = arith.truncf %220 : vector<2x128xf32> to vector<2x128xbf16>
    %c0_152 = arith.constant 0 : index
    %c0_153 = arith.constant 0 : index
    %c0_154 = arith.constant 0 : index
    %222 = vector.load %arg17[%c0_152, %c0_153, %c0_154] : memref<4x128x128xbf16, #tpu.memory_space<vmem>>, vector<1x128x128xbf16>
    %223 = vector.shape_cast %222 : vector<1x128x128xbf16> to vector<128x128xbf16>
    %cst_155 = arith.constant dense<0.000000e+00> : vector<2x128xf32>
    %224 = tpu.matmul %221, %223, %cst_155 {dimension_numbers = #tpu.dot_dimension_numbers<[1], [0], [0], [1], [0, 0, 1, 1], [], []>} : vector<2x128xbf16>, vector<128x128xbf16>, vector<2x128xf32> -> vector<2x128xf32>
    %c1_156 = arith.constant 1 : index
    %c0_157 = arith.constant 0 : index
    %c0_158 = arith.constant 0 : index
    %225 = vector.load %arg18[%c1_156, %c0_157, %c0_158] : memref<4x2x4xbf16, #tpu.memory_space<vmem>>, vector<1x2x4xbf16>
    %226 = vector.shape_cast %225 : vector<1x2x4xbf16> to vector<2x4xbf16>
    %cst_159 = arith.constant dense<0.000000e+00> : vector<2x128xf32>
    %227 = tpu.matmul %226, %217, %cst_159 {dimension_numbers = #tpu.dot_dimension_numbers<[1], [0], [0], [1], [0, 0, 1, 1], [], []>} : vector<2x4xbf16>, vector<4x128xbf16>, vector<2x128xf32> -> vector<2x128xf32>
    %228 = arith.truncf %227 : vector<2x128xf32> to vector<2x128xbf16>
    %c1_160 = arith.constant 1 : index
    %c0_161 = arith.constant 0 : index
    %c0_162 = arith.constant 0 : index
    %229 = vector.load %arg17[%c1_160, %c0_161, %c0_162] : memref<4x128x128xbf16, #tpu.memory_space<vmem>>, vector<1x128x128xbf16>
    %230 = vector.shape_cast %229 : vector<1x128x128xbf16> to vector<128x128xbf16>
    %cst_163 = arith.constant dense<0.000000e+00> : vector<2x128xf32>
    %231 = tpu.matmul %228, %230, %cst_163 {dimension_numbers = #tpu.dot_dimension_numbers<[1], [0], [0], [1], [0, 0, 1, 1], [], []>} : vector<2x128xbf16>, vector<128x128xbf16>, vector<2x128xf32> -> vector<2x128xf32>
    %232 = arith.addf %224, %231 : vector<2x128xf32>
    %c2_164 = arith.constant 2 : index
    %c0_165 = arith.constant 0 : index
    %c0_166 = arith.constant 0 : index
    %233 = vector.load %arg18[%c2_164, %c0_165, %c0_166] : memref<4x2x4xbf16, #tpu.memory_space<vmem>>, vector<1x2x4xbf16>
    %234 = vector.shape_cast %233 : vector<1x2x4xbf16> to vector<2x4xbf16>
    %cst_167 = arith.constant dense<0.000000e+00> : vector<2x128xf32>
    %235 = tpu.matmul %234, %217, %cst_167 {dimension_numbers = #tpu.dot_dimension_numbers<[1], [0], [0], [1], [0, 0, 1, 1], [], []>} : vector<2x4xbf16>, vector<4x128xbf16>, vector<2x128xf32> -> vector<2x128xf32>
    %236 = arith.truncf %235 : vector<2x128xf32> to vector<2x128xbf16>
    %c2_168 = arith.constant 2 : index
    %c0_169 = arith.constant 0 : index
    %c0_170 = arith.constant 0 : index
    %237 = vector.load %arg17[%c2_168, %c0_169, %c0_170] : memref<4x128x128xbf16, #tpu.memory_space<vmem>>, vector<1x128x128xbf16>
    %238 = vector.shape_cast %237 : vector<1x128x128xbf16> to vector<128x128xbf16>
    %cst_171 = arith.constant dense<0.000000e+00> : vector<2x128xf32>
    %239 = tpu.matmul %236, %238, %cst_171 {dimension_numbers = #tpu.dot_dimension_numbers<[1], [0], [0], [1], [0, 0, 1, 1], [], []>} : vector<2x128xbf16>, vector<128x128xbf16>, vector<2x128xf32> -> vector<2x128xf32>
    %240 = arith.addf %232, %239 : vector<2x128xf32>
    %c3_172 = arith.constant 3 : index
    %c0_173 = arith.constant 0 : index
    %c0_174 = arith.constant 0 : index
    %241 = vector.load %arg18[%c3_172, %c0_173, %c0_174] : memref<4x2x4xbf16, #tpu.memory_space<vmem>>, vector<1x2x4xbf16>
    %242 = vector.shape_cast %241 : vector<1x2x4xbf16> to vector<2x4xbf16>
    %cst_175 = arith.constant dense<0.000000e+00> : vector<2x128xf32>
    %243 = tpu.matmul %242, %217, %cst_175 {dimension_numbers = #tpu.dot_dimension_numbers<[1], [0], [0], [1], [0, 0, 1, 1], [], []>} : vector<2x4xbf16>, vector<4x128xbf16>, vector<2x128xf32> -> vector<2x128xf32>
    %244 = arith.truncf %243 : vector<2x128xf32> to vector<2x128xbf16>
    %c3_176 = arith.constant 3 : index
    %c0_177 = arith.constant 0 : index
    %c0_178 = arith.constant 0 : index
    %245 = vector.load %arg17[%c3_176, %c0_177, %c0_178] : memref<4x128x128xbf16, #tpu.memory_space<vmem>>, vector<1x128x128xbf16>
    %246 = vector.shape_cast %245 : vector<1x128x128xbf16> to vector<128x128xbf16>
    %cst_179 = arith.constant dense<0.000000e+00> : vector<2x128xf32>
    %247 = tpu.matmul %244, %246, %cst_179 {dimension_numbers = #tpu.dot_dimension_numbers<[1], [0], [0], [1], [0, 0, 1, 1], [], []>} : vector<2x128xbf16>, vector<128x128xbf16>, vector<2x128xf32> -> vector<2x128xf32>
    %248 = arith.addf %240, %247 : vector<2x128xf32>
    %cst_180 = arith.constant dense<0.000000e+00> : vector<128xf32>
    %249 = vector.multi_reduction <add>, %248, %cst_180 [0] : vector<2x128xf32> to vector<128xf32>
    %250 = vector.shape_cast %249 : vector<128xf32> to vector<1x128xf32>
    %251 = arith.mulf %248, %248 : vector<2x128xf32>
    %cst_181 = arith.constant dense<0.000000e+00> : vector<128xf32>
    %252 = vector.multi_reduction <add>, %251, %cst_181 [0] : vector<2x128xf32> to vector<128xf32>
    %253 = vector.shape_cast %252 : vector<128xf32> to vector<1x128xf32>
    %254 = tpu.concatenate %250, %253 in 0 : vector<1x128xf32>, vector<1x128xf32> -> vector<2x128xf32>
    %c0_182 = arith.constant 0 : index
    %c0_183 = arith.constant 0 : index
    %255 = vector.load %arg20[%c0_182, %c0_183] : memref<128x64xf32, #tpu.memory_space<vmem>>, vector<128x64xf32>
    %cst_184 = arith.constant dense<0.000000e+00> : vector<2x64xf32>
    %256 = tpu.matmul %254, %255, %cst_184 {dimension_numbers = #tpu.dot_dimension_numbers<[1], [0], [0], [1], [0, 0, 1, 1], [], []>} : vector<2x128xf32>, vector<128x64xf32>, vector<2x64xf32> -> vector<2x64xf32>
    %257 = vector.extract_strided_slice %256 {offsets = [0, 0], sizes = [1, 64], strides = [1, 1]} : vector<2x64xf32> to vector<1x64xf32>
    %cst_185 = arith.constant 2.500000e-01 : f32
    %258 = vector.broadcast %cst_185 : f32 to vector<1x64xf32>
    %259 = arith.mulf %257, %258 : vector<1x64xf32>
    %260 = vector.extract_strided_slice %256 {offsets = [1, 0], sizes = [1, 64], strides = [1, 1]} : vector<2x64xf32> to vector<1x64xf32>
    %cst_186 = arith.constant 2.500000e-01 : f32
    %261 = vector.broadcast %cst_186 : f32 to vector<1x64xf32>
    %262 = arith.mulf %260, %261 : vector<1x64xf32>
    %263 = arith.mulf %259, %259 : vector<1x64xf32>
    %264 = arith.subf %262, %263 : vector<1x64xf32>
    %c0_187 = arith.constant 0 : index
    %c0_188 = arith.constant 0 : index
    %265 = vector.load %arg19[%c0_187, %c0_188] : memref<3x64xf32, #tpu.memory_space<vmem>>, vector<1x64xf32>
    %c1_189 = arith.constant 1 : index
    %c0_190 = arith.constant 0 : index
    %266 = vector.load %arg19[%c1_189, %c0_190] : memref<3x64xf32, #tpu.memory_space<vmem>>, vector<1x64xf32>
    %c2_191 = arith.constant 2 : index
    %c0_192 = arith.constant 0 : index
    %267 = vector.load %arg19[%c2_191, %c0_192] : memref<3x64xf32, #tpu.memory_space<vmem>>, vector<1x64xf32>
    %cst_193 = arith.constant 9.99999974E-6 : f32
    %268 = vector.broadcast %cst_193 : f32 to vector<1x64xf32>
    %269 = arith.addf %264, %268 : vector<1x64xf32>
    %270 = math.rsqrt %269 : vector<1x64xf32>
    %271 = arith.mulf %265, %270 : vector<1x64xf32>
    %272 = arith.mulf %259, %271 : vector<1x64xf32>
    %273 = arith.subf %266, %272 : vector<1x64xf32>
    %274 = tpu.concatenate %271, %273, %267 in 0 : vector<1x64xf32>, vector<1x64xf32>, vector<1x64xf32> -> vector<3x64xf32>
    %c0_194 = arith.constant 0 : index
    %c0_195 = arith.constant 0 : index
    %275 = vector.load %arg21[%c0_194, %c0_195] : memref<64x128xf32, #tpu.memory_space<vmem>>, vector<64x128xf32>
    %cst_196 = arith.constant dense<0.000000e+00> : vector<3x128xf32>
    %276 = tpu.matmul %274, %275, %cst_196 {dimension_numbers = #tpu.dot_dimension_numbers<[1], [0], [0], [1], [0, 0, 1, 1], [], []>} : vector<3x64xf32>, vector<64x128xf32>, vector<3x128xf32> -> vector<3x128xf32>
    %277 = vector.extract_strided_slice %276 {offsets = [0, 0], sizes = [1, 128], strides = [1, 1]} : vector<3x128xf32> to vector<1x128xf32>
    %278 = vector.broadcast %277 : vector<1x128xf32> to vector<2x128xf32>
    %279 = arith.mulf %248, %278 : vector<2x128xf32>
    %280 = vector.extract_strided_slice %276 {offsets = [1, 0], sizes = [1, 128], strides = [1, 1]} : vector<3x128xf32> to vector<1x128xf32>
    %281 = vector.broadcast %280 : vector<1x128xf32> to vector<2x128xf32>
    %282 = arith.addf %279, %281 : vector<2x128xf32>
    %cst_197 = arith.constant 0.000000e+00 : f32
    %283 = vector.broadcast %cst_197 : f32 to vector<2x128xf32>
    %284 = arith.cmpf oge, %282, %283 : vector<2x128xf32>
    %285 = vector.extract_strided_slice %276 {offsets = [2, 0], sizes = [1, 128], strides = [1, 1]} : vector<3x128xf32> to vector<1x128xf32>
    %286 = vector.broadcast %285 : vector<1x128xf32> to vector<2x128xf32>
    %287 = arith.mulf %286, %282 : vector<2x128xf32>
    %288 = arith.select %284, %282, %287 : vector<2x128xi1>, vector<2x128xf32>
    %cst_198 = arith.constant dense<0xFF800000> : vector<128xf32>
    %289 = vector.multi_reduction <maximumf>, %288, %cst_198 [0] : vector<2x128xf32> to vector<128xf32>
    %290 = vector.shape_cast %289 : vector<128xf32> to vector<1x128xf32>
    %c64_i32 = arith.constant 64 : i32
    %291 = tpu.dynamic_rotate %290 by %c64_i32 dim 1 : vector<1x128xf32>, i32 -> vector<1x128xf32>
    %292 = arith.maximumf %290, %291 : vector<1x128xf32>
    %293 = vector.extract_strided_slice %292 {offsets = [0, 0], sizes = [1, 64], strides = [1, 1]} : vector<1x128xf32> to vector<1x64xf32>
    %c0_199 = arith.constant 0 : index
    %c0_200 = arith.constant 0 : index
    %294 = vector.load %arg22[%c0_199, %c0_200] : memref<64x32xf32, #tpu.memory_space<vmem>>, vector<64x32xf32>
    %cst_201 = arith.constant dense<0.000000e+00> : vector<1x32xf32>
    %295 = tpu.matmul %293, %294, %cst_201 {dimension_numbers = #tpu.dot_dimension_numbers<[1], [0], [0], [1], [0, 0, 1, 1], [], []>} : vector<1x64xf32>, vector<64x32xf32>, vector<1x32xf32> -> vector<1x32xf32>
    %c0_202 = arith.constant 0 : index
    %c0_203 = arith.constant 0 : index
    %296 = vector.load %arg23[%c0_202, %c0_203] : memref<2x32xf32, #tpu.memory_space<vmem>>, vector<1x32xf32>
    %297 = arith.addf %295, %296 : vector<1x32xf32>
    %cst_204 = arith.constant 0.000000e+00 : f32
    %298 = vector.broadcast %cst_204 : f32 to vector<1x32xf32>
    %299 = arith.cmpf oge, %297, %298 : vector<1x32xf32>
    %c1_205 = arith.constant 1 : index
    %c0_206 = arith.constant 0 : index
    %300 = vector.load %arg23[%c1_205, %c0_206] : memref<2x32xf32, #tpu.memory_space<vmem>>, vector<1x32xf32>
    %301 = arith.mulf %300, %297 : vector<1x32xf32>
    %302 = arith.select %299, %297, %301 : vector<1x32xi1>, vector<1x32xf32>
    %c0_207 = arith.constant 0 : index
    %c0_208 = arith.constant 0 : index
    %303 = vector.load %arg24[%c0_207, %c0_208] : memref<32x1xf32, #tpu.memory_space<vmem>>, vector<32x1xf32>
    %cst_209 = arith.constant dense<0.000000e+00> : vector<1x1xf32>
    %304 = tpu.matmul %302, %303, %cst_209 {dimension_numbers = #tpu.dot_dimension_numbers<[1], [0], [0], [1], [0, 0, 1, 1], [], []>} : vector<1x32xf32>, vector<32x1xf32>, vector<1x1xf32> -> vector<1x1xf32>
    %c0_210 = arith.constant 0 : index
    %c0_211 = arith.constant 0 : index
    %305 = vector.load %arg25[%c0_210, %c0_211] : memref<2x1xf32, #tpu.memory_space<vmem>>, vector<1x1xf32>
    %306 = arith.addf %304, %305 : vector<1x1xf32>
    %c1_212 = arith.constant 1 : index
    %c0_213 = arith.constant 0 : index
    %307 = vector.load %arg25[%c1_212, %c0_213] : memref<2x1xf32, #tpu.memory_space<vmem>>, vector<1x1xf32>
    %308 = arith.mulf %307, %306 : vector<1x1xf32>
    %309 = arith.negf %308 : vector<1x1xf32>
    %310 = math.exp %309 : vector<1x1xf32>
    %cst_214 = arith.constant 1.000000e+00 : f32
    %311 = vector.broadcast %cst_214 : f32 to vector<1x1xf32>
    %312 = arith.addf %311, %310 : vector<1x1xf32>
    %313 = arith.divf %311, %312 : vector<1x1xf32>
    %cst_215 = arith.constant 1.200000e+00 : f32
    %314 = vector.broadcast %cst_215 : f32 to vector<1x1xf32>
    %315 = arith.mulf %314, %313 : vector<1x1xf32>
    %c0_216 = arith.constant 0 : index
    %c0_217 = arith.constant 0 : index
    %c0_218 = arith.constant 0 : index
    %316 = vector.load %arg26[%c0_216, %c0_217, %c0_218] : memref<1x1x1xf32, #tpu.memory_space<vmem>>, vector<1x1x1xf32>
    %317 = vector.shape_cast %316 : vector<1x1x1xf32> to vector<1x1xf32>
    %318 = vector.shape_cast %315 : vector<1x1xf32> to vector<1x1x1xf32>
    tpu.vector_store %arg26[%c0_216, %c0_217, %c0_218], %318 {strides = array<i32>} : memref<1x1x1xf32, #tpu.memory_space<vmem>>, vector<1x1x1xf32>,
    return
  }
  func.func @transform_0(%arg0: i32) -> (i32, i32, i32) {
    %c0_i32 = arith.constant 0 : i32
    %c0_i32_0 = arith.constant 0 : i32
    %c0_i32_1 = arith.constant 0 : i32
    return %arg0, %c0_i32, %c0_i32_0 : i32, i32, i32
  }
  func.func @transform_1(%arg0: i32) -> (i32, i32, i32) {
    %c0_i32 = arith.constant 0 : i32
    %c0_i32_0 = arith.constant 0 : i32
    %c0_i32_1 = arith.constant 0 : i32
    %c0_i32_2 = arith.constant 0 : i32
    return %c0_i32, %c0_i32_0, %c0_i32_1 : i32, i32, i32
  }
  func.func @transform_2(%arg0: i32) -> (i32, i32, i32) {
    %c0_i32 = arith.constant 0 : i32
    %c0_i32_0 = arith.constant 0 : i32
    %c0_i32_1 = arith.constant 0 : i32
    %c0_i32_2 = arith.constant 0 : i32
    return %c0_i32, %c0_i32_0, %c0_i32_1 : i32, i32, i32
  }
  func.func @transform_3(%arg0: i32) -> (i32, i32) {
    %c0_i32 = arith.constant 0 : i32
    %c0_i32_0 = arith.constant 0 : i32
    %c0_i32_1 = arith.constant 0 : i32
    return %c0_i32, %c0_i32_0 : i32, i32
  }
  func.func @transform_4(%arg0: i32) -> (i32, i32) {
    %c0_i32 = arith.constant 0 : i32
    %c0_i32_0 = arith.constant 0 : i32
    %c0_i32_1 = arith.constant 0 : i32
    return %c0_i32, %c0_i32_0 : i32, i32
  }
  func.func @transform_5(%arg0: i32) -> (i32, i32) {
    %c0_i32 = arith.constant 0 : i32
    %c0_i32_0 = arith.constant 0 : i32
    %c0_i32_1 = arith.constant 0 : i32
    return %c0_i32, %c0_i32_0 : i32, i32
  }
  func.func @transform_6(%arg0: i32) -> (i32, i32, i32) {
    %c0_i32 = arith.constant 0 : i32
    %c0_i32_0 = arith.constant 0 : i32
    %c0_i32_1 = arith.constant 0 : i32
    %c0_i32_2 = arith.constant 0 : i32
    return %c0_i32, %c0_i32_0, %c0_i32_1 : i32, i32, i32
  }
  func.func @transform_7(%arg0: i32) -> (i32, i32, i32) {
    %c0_i32 = arith.constant 0 : i32
    %c0_i32_0 = arith.constant 0 : i32
    %c0_i32_1 = arith.constant 0 : i32
    %c0_i32_2 = arith.constant 0 : i32
    return %c0_i32, %c0_i32_0, %c0_i32_1 : i32, i32, i32
  }
  func.func @transform_8(%arg0: i32) -> (i32, i32) {
    %c0_i32 = arith.constant 0 : i32
    %c0_i32_0 = arith.constant 0 : i32
    %c0_i32_1 = arith.constant 0 : i32
    return %c0_i32, %c0_i32_0 : i32, i32
  }
  func.func @transform_9(%arg0: i32) -> (i32, i32) {
    %c0_i32 = arith.constant 0 : i32
    %c0_i32_0 = arith.constant 0 : i32
    %c0_i32_1 = arith.constant 0 : i32
    return %c0_i32, %c0_i32_0 : i32, i32
  }
  func.func @transform_10(%arg0: i32) -> (i32, i32) {
    %c0_i32 = arith.constant 0 : i32
    %c0_i32_0 = arith.constant 0 : i32
    %c0_i32_1 = arith.constant 0 : i32
    return %c0_i32, %c0_i32_0 : i32, i32
  }
  func.func @transform_11(%arg0: i32) -> (i32, i32, i32) {
    %c0_i32 = arith.constant 0 : i32
    %c0_i32_0 = arith.constant 0 : i32
    %c0_i32_1 = arith.constant 0 : i32
    %c0_i32_2 = arith.constant 0 : i32
    return %c0_i32, %c0_i32_0, %c0_i32_1 : i32, i32, i32
  }
  func.func @transform_12(%arg0: i32) -> (i32, i32, i32) {
    %c0_i32 = arith.constant 0 : i32
    %c0_i32_0 = arith.constant 0 : i32
    %c0_i32_1 = arith.constant 0 : i32
    %c0_i32_2 = arith.constant 0 : i32
    return %c0_i32, %c0_i32_0, %c0_i32_1 : i32, i32, i32
  }
  func.func @transform_13(%arg0: i32) -> (i32, i32) {
    %c0_i32 = arith.constant 0 : i32
    %c0_i32_0 = arith.constant 0 : i32
    %c0_i32_1 = arith.constant 0 : i32
    return %c0_i32, %c0_i32_0 : i32, i32
  }
  func.func @transform_14(%arg0: i32) -> (i32, i32) {
    %c0_i32 = arith.constant 0 : i32
    %c0_i32_0 = arith.constant 0 : i32
    %c0_i32_1 = arith.constant 0 : i32
    return %c0_i32, %c0_i32_0 : i32, i32
  }
  func.func @transform_15(%arg0: i32) -> (i32, i32) {
    %c0_i32 = arith.constant 0 : i32
    %c0_i32_0 = arith.constant 0 : i32
    %c0_i32_1 = arith.constant 0 : i32
    return %c0_i32, %c0_i32_0 : i32, i32
  }
  func.func @transform_16(%arg0: i32) -> (i32, i32, i32) {
    %c0_i32 = arith.constant 0 : i32
    %c0_i32_0 = arith.constant 0 : i32
    %c0_i32_1 = arith.constant 0 : i32
    %c0_i32_2 = arith.constant 0 : i32
    return %c0_i32, %c0_i32_0, %c0_i32_1 : i32, i32, i32
  }
  func.func @transform_17(%arg0: i32) -> (i32, i32, i32) {
    %c0_i32 = arith.constant 0 : i32
    %c0_i32_0 = arith.constant 0 : i32
    %c0_i32_1 = arith.constant 0 : i32
    %c0_i32_2 = arith.constant 0 : i32
    return %c0_i32, %c0_i32_0, %c0_i32_1 : i32, i32, i32
  }
  func.func @transform_18(%arg0: i32) -> (i32, i32) {
    %c0_i32 = arith.constant 0 : i32
    %c0_i32_0 = arith.constant 0 : i32
    %c0_i32_1 = arith.constant 0 : i32
    return %c0_i32, %c0_i32_0 : i32, i32
  }
  func.func @transform_19(%arg0: i32) -> (i32, i32) {
    %c0_i32 = arith.constant 0 : i32
    %c0_i32_0 = arith.constant 0 : i32
    %c0_i32_1 = arith.constant 0 : i32
    return %c0_i32, %c0_i32_0 : i32, i32
  }
  func.func @transform_20(%arg0: i32) -> (i32, i32) {
    %c0_i32 = arith.constant 0 : i32
    %c0_i32_0 = arith.constant 0 : i32
    %c0_i32_1 = arith.constant 0 : i32
    return %c0_i32, %c0_i32_0 : i32, i32
  }
  func.func @transform_21(%arg0: i32) -> (i32, i32) {
    %c0_i32 = arith.constant 0 : i32
    %c0_i32_0 = arith.constant 0 : i32
    %c0_i32_1 = arith.constant 0 : i32
    return %c0_i32, %c0_i32_0 : i32, i32
  }
  func.func @transform_22(%arg0: i32) -> (i32, i32) {
    %c0_i32 = arith.constant 0 : i32
    %c0_i32_0 = arith.constant 0 : i32
    %c0_i32_1 = arith.constant 0 : i32
    return %c0_i32, %c0_i32_0 : i32, i32
  }
  func.func @transform_23(%arg0: i32) -> (i32, i32) {
    %c0_i32 = arith.constant 0 : i32
    %c0_i32_0 = arith.constant 0 : i32
    %c0_i32_1 = arith.constant 0 : i32
    return %c0_i32, %c0_i32_0 : i32, i32
  }
  func.func @transform_24(%arg0: i32) -> (i32, i32) {
    %c0_i32 = arith.constant 0 : i32
    %c0_i32_0 = arith.constant 0 : i32
    %c0_i32_1 = arith.constant 0 : i32
    return %c0_i32, %c0_i32_0 : i32, i32
  }
  func.func @transform_25(%arg0: i32) -> (i32, i32, i32) {
    %c0_i32 = arith.constant 0 : i32
    %c0_i32_0 = arith.constant 0 : i32
    %c0_i32_1 = arith.constant 0 : i32
    return %arg0, %c0_i32, %c0_i32_0 : i32, i32, i32
  }
}

</mosaic_0001>

<llo_original>
// kernel: _lambda_.1
$region0: #{_lambda_.1}
  #allocation0 [shape = 'u32[]', space=smem, size = 0x4, offset = 0x4, fixed_abs, tag = 'smem constant byte address 0x4 - core index']
  #allocation1 [shape = 'u32[144,128]{1,0:T(1,128)}', space=vmem, size = 0x12000, scoped, tag = 'internal scratch']
  %s0 = inlined_call_operand.vmem [shape: bf16[2,32,64], index: 0, kind: input, shape index: {}]
  %s1 = inlined_call_operand.hbm [shape: bf16[4,64,128], index: 1, kind: input, shape index: {}]
  %s2 = inlined_call_operand.hbm [shape: bf16[4,16,32], index: 2, kind: input, shape index: {}]
  %s3 = inlined_call_operand.hbm [shape: f32[3,8], index: 3, kind: input, shape index: {}]
  %s4 = inlined_call_operand.hbm [shape: f32[128,8], index: 4, kind: input, shape index: {}]
  %s5 = inlined_call_operand.hbm [shape: f32[8,128], index: 5, kind: input, shape index: {}]
  %s6 = inlined_call_operand.hbm [shape: bf16[4,128,128], index: 6, kind: input, shape index: {}]
  %s7 = inlined_call_operand.hbm [shape: bf16[4,8,16], index: 7, kind: input, shape index: {}]
  %s8 = inlined_call_operand.hbm [shape: f32[3,16], index: 8, kind: input, shape index: {}]
  %s9 = inlined_call_operand.hbm [shape: f32[128,16], index: 9, kind: input, shape index: {}]
  %s10 = inlined_call_operand.hbm [shape: f32[16,128], index: 10, kind: input, shape index: {}]
  %s11 = inlined_call_operand.vmem [shape: bf16[4,128,128], index: 11, kind: input, shape index: {}]
  %s12 = inlined_call_operand.hbm [shape: bf16[4,4,8], index: 12, kind: input, shape index: {}]
  %s13 = inlined_call_operand.hbm [shape: f32[3,32], index: 13, kind: input, shape index: {}]
  %s14 = inlined_call_operand.hbm [shape: f32[128,32], index: 14, kind: input, shape index: {}]
  %s15 = inlined_call_operand.hbm [shape: f32[32,128], index: 15, kind: input, shape index: {}]
  %s16 = inlined_call_operand.vmem [shape: bf16[4,128,128], index: 16, kind: input, shape index: {}]
  %s17 = inlined_call_operand.hbm [shape: bf16[4,2,4], index: 17, kind: input, shape index: {}]
  %s18 = inlined_call_operand.vmem [shape: f32[3,64], index: 18, kind: input, shape index: {}]
  %s19 = inlined_call_operand.hbm [shape: f32[128,64], index: 19, kind: input, shape index: {}]
  %s20 = inlined_call_operand.hbm [shape: f32[64,128], index: 20, kind: input, shape index: {}]
  %s21 = inlined_call_operand.vmem [shape: f32[64,32], index: 21, kind: input, shape index: {}]
  %s22 = inlined_call_operand.vmem [shape: f32[2,32], index: 22, kind: input, shape index: {}]
  %s23 = inlined_call_operand.hbm [shape: f32[32,1], index: 23, kind: input, shape index: {}]
  %s24 = inlined_call_operand.vmem [shape: f32[2,1], index: 24, kind: input, shape index: {}]
  %s25 = inlined_call_operand.vmem [shape: f32[2,1,1], index: 25, kind: output, shape index: {}]
  %s26 = sld [smem:[#allocation0]]
  $region205: #{_lambda_.1} parent=0
    _
  %s28 = ssub.s32 1, %s26
  %s29 = scalar_select 0, %s28, %s26
  $region1: #{_lambda_.1} parent=0
    #allocation2 [shape = 'u8[65536]{0}', space=vmem, size = 0x10000, scoped, tag = 'input window, operand 1, single buffered']
    #allocation3 [shape = 's32[2]{0}', space=sflag, size = 0x8, scoped, tag = 'scoped memory for _lambda_.1']
    #allocation4 [shape = 'u8[16384]{0}', space=vmem, size = 0x4000, scoped, tag = 'input window, operand 2, single buffered']
    #allocation5 [shape = 's32[1]{0}', space=sflag, size = 0x4, scoped, tag = 'scoped memory for _lambda_.1']
    #allocation6 [shape = 'u8[2048]{0}', space=vmem, size = 0x800, scoped, tag = 'input window, operand 3, single buffered']
    #allocation7 [shape = 'u8[65536]{0}', space=vmem, size = 0x10000, scoped, tag = 'input window, operand 4, single buffered']
    #allocation8 [shape = 's32[1]{0}', space=sflag, size = 0x4, scoped, tag = 'scoped memory for _lambda_.1']
    #allocation9 [shape = 'u8[4096]{0}', space=vmem, size = 0x1000, scoped, tag = 'input window, operand 5, single buffered']
    #allocation10 [shape = 'u8[131072]{0}', space=vmem, size = 0x20000, scoped, tag = 'input window, operand 6, single buffered']
    #allocation11 [shape = 's32[1]{0}', space=sflag, size = 0x4, scoped, tag = 'scoped memory for _lambda_.1']
    #allocation12 [shape = 'u8[8192]{0}', space=vmem, size = 0x2000, scoped, tag = 'input window, operand 7, single buffered']
    #allocation13 [shape = 'u8[2048]{0}', space=vmem, size = 0x800, scoped, tag = 'input window, operand 8, single buffered']
    #allocation14 [shape = 's32[1]{0}', space=sflag, size = 0x4, scoped, tag = 'scoped memory for _lambda_.1']
    #allocation15 [shape = 'u8[65536]{0}', space=vmem, size = 0x10000, scoped, tag = 'input window, operand 9, single buffered']
    #allocation16 [shape = 'u8[8192]{0}', space=vmem, size = 0x2000, scoped, tag = 'input window, operand 10, single buffered']
    #allocation17 [shape = 's32[1]{0}', space=sflag, size = 0x4, scoped, tag = 'scoped memory for _lambda_.1']
    #allocation18 [shape = 'u8[4096]{0}', space=vmem, size = 0x1000, scoped, tag = 'input window, operand 12, single buffered']
    #allocation19 [shape = 'u8[2048]{0}', space=vmem, size = 0x800, scoped, tag = 'input window, operand 13, single buffered']
    #allocation20 [shape = 's32[1]{0}', space=sflag, size = 0x4, scoped, tag = 'scoped memory for _lambda_.1']
    #allocation21 [shape = 'u8[65536]{0}', space=vmem, size = 0x10000, scoped, tag = 'input window, operand 14, single buffered']
    #allocation22 [shape = 'u8[16384]{0}', space=vmem, size = 0x4000, scoped, tag = 'input window, operand 15, single buffered']
    #allocation23 [shape = 's32[1]{0}', space=sflag, size = 0x4, scoped, tag = 'scoped memory for _lambda_.1']
    #allocation24 [shape = 'u8[2048]{0}', space=vmem, size = 0x800, scoped, tag = 'input window, operand 17, single buffered']
    #allocation25 [shape = 'u8[65536]{0}', space=vmem, size = 0x10000, scoped, tag = 'input window, operand 19, single buffered']
    #allocation26 [shape = 's32[1]{0}', space=sflag, size = 0x4, scoped, tag = 'scoped memory for _lambda_.1']
    #allocation27 [shape = 'u8[32768]{0}', space=vmem, size = 0x8000, scoped, tag = 'input window, operand 20, single buffered']
    #allocation28 [shape = 'u8[16384]{0}', space=vmem, size = 0x4000, scoped, tag = 'input window, operand 23, single buffered']
    #allocation29 [shape = 's32[1]{0}', space=sflag, size = 0x4, scoped, tag = 'scoped memory for _lambda_.1']
    %30 = vsyncpa [#allocation3], 0
    %31 = vsyncpa [#allocation5], 0
    %32 = vsyncpa [#allocation8], 0
    %33 = vsyncpa [#allocation11], 0
    %34 = vsyncpa [#allocation14], 0
    %35 = vsyncpa [#allocation17], 0
    %36 = vsyncpa [#allocation20], 0
    %37 = vsyncpa [#allocation23], 0
    %38 = vsyncpa [#allocation26], 0
    %39 = vsyncpa [#allocation29], 0
    loop: start=0, step=1, limit=4
    $region2: #{_lambda_.1} parent=1 // loop_pre_header
      _
    $region3: #{_lambda_.1} parent=1 // loop_header
      %s41 = sphi 0, %s45
      %p42 = scmp.ge.s32.totalorder %s41, 4
      %s51 = sphi 0, %s53
      %s54 = sphi 0, %s51
      %s55 = sphi 0, %s54
      %s71 = sphi 0, %s55
      %s75 = sphi 0, %s75
      %s77 = sphi 0, %s75
      %s78 = sphi 0, %s77
      %s92 = sphi 0, %s78
      %s96 = sphi 0, %s96
      %s98 = sphi 0, %s96
      %s99 = sphi 0, %s98
      %s113 = sphi 0, %s99
      %s117 = sphi 0, %s117
      %s119 = sphi 0, %s117
      %s120 = sphi 0, %s119
      %s134 = sphi 0, %s120
      %s138 = sphi 0, %s138
      %s140 = sphi 0, %s138
      %s141 = sphi 0, %s140
      %s155 = sphi 0, %s141
      %s159 = sphi 0, %s159
      %s161 = sphi 0, %s159
      %s162 = sphi 0, %s161
      %s176 = sphi 0, %s162
      %s180 = sphi 0, %s180
      %s182 = sphi 0, %s180
      %s183 = sphi 0, %s182
      %s197 = sphi 0, %s183
      %s201 = sphi 0, %s201
      %s203 = sphi 0, %s201
      %s204 = sphi 0, %s203
      %s218 = sphi 0, %s204
      %s222 = sphi 0, %s222
      %s224 = sphi 0, %s222
      %s225 = sphi 0, %s224
      %s239 = sphi 0, %s225
      %s243 = sphi 0, %s243
      %s245 = sphi 0, %s243
      %s246 = sphi 0, %s245
      %s260 = sphi 0, %s246
      %s264 = sphi 0, %s264
      %s266 = sphi 0, %s264
      %s267 = sphi 0, %s266
      %s281 = sphi 0, %s267
      %s285 = sphi 0, %s285
      %s287 = sphi 0, %s285
      %s288 = sphi 0, %s287
      %s302 = sphi 0, %s288
      %s306 = sphi 0, %s306
      %s308 = sphi 0, %s306
      %s309 = sphi 0, %s308
      %s323 = sphi 0, %s309
      %s327 = sphi 0, %s327
      %s329 = sphi 0, %s327
      %s330 = sphi 0, %s329
      %s344 = sphi 0, %s330
      %s348 = sphi 0, %s348
      %s350 = sphi 0, %s348
      %s351 = sphi 0, %s350
      %s365 = sphi 0, %s351
      %s369 = sphi 0, %s369
      %s371 = sphi 0, %s369
      %s372 = sphi 0, %s371
      %s386 = sphi 0, %s372
      %s390 = sphi 0, %s390
      %s392 = sphi 0, %s390
      %s393 = sphi 0, %s392
      %s407 = sphi 0, %s393
      %s411 = sphi 0, %s411
      %s413 = sphi 0, %s411
      %s414 = sphi 0, %s413
      %s428 = sphi 0, %s414
      %s432 = sphi 0, %s432
      %s434 = sphi 0, %s432
      %s435 = sphi 0, %s434
      %s449 = sphi 0, %s435
      %s453 = sphi 0, %s453
      %s455 = sphi 0, %s453
      %s456 = sphi 0, %s455
      %s470 = sphi 0, %s456
      %s474 = sphi 0, %s474
      %s476 = sphi 0, %s474
      %s477 = sphi 0, %s476
      %s491 = sphi 0, %s477
      %s495 = sphi 0, %s495
      %s497 = sphi 0, %s495
      %s498 = sphi 0, %s497
      %s512 = sphi 0, %s498
      %s516 = sphi 0, %s516
      %s518 = sphi 0, %s516
      %s519 = sphi 0, %s518
      %s533 = sphi 0, %s519
      %s537 = sphi 0, %s537
      %s539 = sphi 0, %s537
      %s540 = sphi 0, %s539
      %s554 = sphi 0, %s540
      %s558 = sphi 0, %s558
      %s560 = sphi 0, %s558
      %s561 = sphi 0, %s560
      %s575 = sphi 0, %s561
      %s581 = sphi 0, %s583
      %s584 = sphi 0, %s581
      %s585 = sphi 0, %s584
      %s601 = sphi 0, %s585
    $region4: #{_lambda_.1} parent=1 // loop_header_branch
      %44 = sbr.rel (%p42) target = $region8
    $region5: #{_lambda_.1} parent=1 // loop_body
      %s46 = ssub.s32 %s41, 1
      %s47 = ssub.s32 %s41, 2
      %s48 = sadd.s32 %s41, 1
      %s49 = ssub.s32 %s41, %s48
      %p50 = scmp.eq.s32.totalorder %s49, 0
      %s52 = sadd.s32 %s51, 1
      %s53 = scalar_select %p50, %s51, %s52
      %p56 = pneg %p50
      %p57 = scmp.eq.s32.totalorder %s41, 1
      %p58 = por %p56, %p57
      %p59 = scmp.ne.s32.totalorder %s51, %s54
      %p60 = scmp.eq.s32.totalorder %s41, 0
      %p61 = por %p59, %p60
      %p62 = scmp.ne.s32.totalorder %s51, %s54
      %p63 = scmp.eq.s32.totalorder %s46, 1
      %p64 = por %p62, %p63
      %p65 = scmp.ne.s32.totalorder %s54, %s55
      %p66 = scmp.eq.s32.totalorder %s46, 0
      %p67 = por %p65, %p66
      %p68 = scmp.ne.s32.totalorder %s54, %s55
      %p69 = scmp.eq.s32.totalorder %s47, 1
      %p70 = por %p68, %p69
      %p72 = scmp.ne.s32.totalorder %s55, %s71
      %p73 = scmp.eq.s32.totalorder %s47, 0
      %p74 = por %p72, %p73
      %s76 = sadd.s32 %s75, 1
      %p79 = scmp.eq.s32.totalorder %s41, 1
      %p80 = scmp.ne.s32.totalorder %s75, %s77
      %p81 = scmp.eq.s32.totalorder %s41, 0
      %p82 = por %p80, %p81
      %p83 = scmp.ne.s32.totalorder %s75, %s77
      %p84 = scmp.eq.s32.totalorder %s46, 1
      %p85 = por %p83, %p84
      %p86 = scmp.ne.s32.totalorder %s77, %s78
      %p87 = scmp.eq.s32.totalorder %s46, 0
      %p88 = por %p86, %p87
      %p89 = scmp.ne.s32.totalorder %s77, %s78
      %p90 = scmp.eq.s32.totalorder %s47, 1
      %p91 = por %p89, %p90
      %p93 = scmp.ne.s32.totalorder %s78, %s92
      %p94 = scmp.eq.s32.totalorder %s47, 0
      %p95 = por %p93, %p94
      %s97 = sadd.s32 %s96, 1
      %p100 = scmp.eq.s32.totalorder %s41, 1
      %p101 = scmp.ne.s32.totalorder %s96, %s98
      %p102 = scmp.eq.s32.totalorder %s41, 0
      %p103 = por %p101, %p102
      %p104 = scmp.ne.s32.totalorder %s96, %s98
      %p105 = scmp.eq.s32.totalorder %s46, 1
      %p106 = por %p104, %p105
      %p107 = scmp.ne.s32.totalorder %s98, %s99
      %p108 = scmp.eq.s32.totalorder %s46, 0
      %p109 = por %p107, %p108
      %p110 = scmp.ne.s32.totalorder %s98, %s99
      %p111 = scmp.eq.s32.totalorder %s47, 1
      %p112 = por %p110, %p111
      %p114 = scmp.ne.s32.totalorder %s99, %s113
      %p115 = scmp.eq.s32.totalorder %s47, 0
      %p116 = por %p114, %p115
      %s118 = sadd.s32 %s117, 1
      %p121 = scmp.eq.s32.totalorder %s41, 1
      %p122 = scmp.ne.s32.totalorder %s117, %s119
      %p123 = scmp.eq.s32.totalorder %s41, 0
      %p124 = por %p122, %p123
      %p125 = scmp.ne.s32.totalorder %s117, %s119
      %p126 = scmp.eq.s32.totalorder %s46, 1
      %p127 = por %p125, %p126
      %p128 = scmp.ne.s32.totalorder %s119, %s120
      %p129 = scmp.eq.s32.totalorder %s46, 0
      %p130 = por %p128, %p129
      %p131 = scmp.ne.s32.totalorder %s119, %s120
      %p132 = scmp.eq.s32.totalorder %s47, 1
      %p133 = por %p131, %p132
      %p135 = scmp.ne.s32.totalorder %s120, %s134
      %p136 = scmp.eq.s32.totalorder %s47, 0
      %p137 = por %p135, %p136
      %s139 = sadd.s32 %s138, 1
      %p142 = scmp.eq.s32.totalorder %s41, 1
      %p143 = scmp.ne.s32.totalorder %s138, %s140
      %p144 = scmp.eq.s32.totalorder %s41, 0
      %p145 = por %p143, %p144
      %p146 = scmp.ne.s32.totalorder %s138, %s140
      %p147 = scmp.eq.s32.totalorder %s46, 1
      %p148 = por %p146, %p147
      %p149 = scmp.ne.s32.totalorder %s140, %s141
      %p150 = scmp.eq.s32.totalorder %s46, 0
      %p151 = por %p149, %p150
      %p152 = scmp.ne.s32.totalorder %s140, %s141
      %p153 = scmp.eq.s32.totalorder %s47, 1
      %p154 = por %p152, %p153
      %p156 = scmp.ne.s32.totalorder %s141, %s155
      %p157 = scmp.eq.s32.totalorder %s47, 0
      %p158 = por %p156, %p157
      %s160 = sadd.s32 %s159, 1
      %p163 = scmp.eq.s32.totalorder %s41, 1
      %p164 = scmp.ne.s32.totalorder %s159, %s161
      %p165 = scmp.eq.s32.totalorder %s41, 0
      %p166 = por %p164, %p165
      %p167 = scmp.ne.s32.totalorder %s159, %s161
      %p168 = scmp.eq.s32.totalorder %s46, 1
      %p169 = por %p167, %p168
      %p170 = scmp.ne.s32.totalorder %s161, %s162
      %p171 = scmp.eq.s32.totalorder %s46, 0
      %p172 = por %p170, %p171
      %p173 = scmp.ne.s32.totalorder %s161, %s162
      %p174 = scmp.eq.s32.totalorder %s47, 1
      %p175 = por %p173, %p174
      %p177 = scmp.ne.s32.totalorder %s162, %s176
      %p178 = scmp.eq.s32.totalorder %s47, 0
      %p179 = por %p177, %p178
      %s181 = sadd.s32 %s180, 1
      %p184 = scmp.eq.s32.totalorder %s41, 1
      %p185 = scmp.ne.s32.totalorder %s180, %s182
      %p186 = scmp.eq.s32.totalorder %s41, 0
      %p187 = por %p185, %p186
      %p188 = scmp.ne.s32.totalorder %s180, %s182
      %p189 = scmp.eq.s32.totalorder %s46, 1
      %p190 = por %p188, %p189
      %p191 = scmp.ne.s32.totalorder %s182, %s183
      %p192 = scmp.eq.s32.totalorder %s46, 0
      %p193 = por %p191, %p192
      %p194 = scmp.ne.s32.totalorder %s182, %s183
      %p195 = scmp.eq.s32.totalorder %s47, 1
      %p196 = por %p194, %p195
      %p198 = scmp.ne.s32.totalorder %s183, %s197
      %p199 = scmp.eq.s32.totalorder %s47, 0
      %p200 = por %p198, %p199
      %s202 = sadd.s32 %s201, 1
      %p205 = scmp.eq.s32.totalorder %s41, 1
      %p206 = scmp.ne.s32.totalorder %s201, %s203
      %p207 = scmp.eq.s32.totalorder %s41, 0
      %p208 = por %p206, %p207
      %p209 = scmp.ne.s32.totalorder %s201, %s203
      %p210 = scmp.eq.s32.totalorder %s46, 1
      %p211 = por %p209, %p210
      %p212 = scmp.ne.s32.totalorder %s203, %s204
      %p213 = scmp.eq.s32.totalorder %s46, 0
      %p214 = por %p212, %p213
      %p215 = scmp.ne.s32.totalorder %s203, %s204
      %p216 = scmp.eq.s32.totalorder %s47, 1
      %p217 = por %p215, %p216
      %p219 = scmp.ne.s32.totalorder %s204, %s218
      %p220 = scmp.eq.s32.totalorder %s47, 0
      %p221 = por %p219, %p220
      %s223 = sadd.s32 %s222, 1
      %p226 = scmp.eq.s32.totalorder %s41, 1
      %p227 = scmp.ne.s32.totalorder %s222, %s224
      %p228 = scmp.eq.s32.totalorder %s41, 0
      %p229 = por %p227, %p228
      %p230 = scmp.ne.s32.totalorder %s222, %s224
      %p231 = scmp.eq.s32.totalorder %s46, 1
      %p232 = por %p230, %p231
      %p233 = scmp.ne.s32.totalorder %s224, %s225
      %p234 = scmp.eq.s32.totalorder %s46, 0
      %p235 = por %p233, %p234
      %p236 = scmp.ne.s32.totalorder %s224, %s225
      %p237 = scmp.eq.s32.totalorder %s47, 1
      %p238 = por %p236, %p237
      %p240 = scmp.ne.s32.totalorder %s225, %s239
      %p241 = scmp.eq.s32.totalorder %s47, 0
      %p242 = por %p240, %p241
      %s244 = sadd.s32 %s243, 1
      %p247 = scmp.eq.s32.totalorder %s41, 1
      %p248 = scmp.ne.s32.totalorder %s243, %s245
      %p249 = scmp.eq.s32.totalorder %s41, 0
      %p250 = por %p248, %p249
      %p251 = scmp.ne.s32.totalorder %s243, %s245
      %p252 = scmp.eq.s32.totalorder %s46, 1
      %p253 = por %p251, %p252
      %p254 = scmp.ne.s32.totalorder %s245, %s246
      %p255 = scmp.eq.s32.totalorder %s46, 0
      %p256 = por %p254, %p255
      %p257 = scmp.ne.s32.totalorder %s245, %s246
      %p258 = scmp.eq.s32.totalorder %s47, 1
      %p259 = por %p257, %p258
      %p261 = scmp.ne.s32.totalorder %s246, %s260
      %p262 = scmp.eq.s32.totalorder %s47, 0
      %p263 = por %p261, %p262
      %s265 = sadd.s32 %s264, 1
      %p268 = scmp.eq.s32.totalorder %s41, 1
      %p269 = scmp.ne.s32.totalorder %s264, %s266
      %p270 = scmp.eq.s32.totalorder %s41, 0
      %p271 = por %p269, %p270
      %p272 = scmp.ne.s32.totalorder %s264, %s266
      %p273 = scmp.eq.s32.totalorder %s46, 1
      %p274 = por %p272, %p273
      %p275 = scmp.ne.s32.totalorder %s266, %s267
      %p276 = scmp.eq.s32.totalorder %s46, 0
      %p277 = por %p275, %p276
      %p278 = scmp.ne.s32.totalorder %s266, %s267
      %p279 = scmp.eq.s32.totalorder %s47, 1
      %p280 = por %p278, %p279
      %p282 = scmp.ne.s32.totalorder %s267, %s281
      %p283 = scmp.eq.s32.totalorder %s47, 0
      %p284 = por %p282, %p283
      %s286 = sadd.s32 %s285, 1
      %p289 = scmp.eq.s32.totalorder %s41, 1
      %p290 = scmp.ne.s32.totalorder %s285, %s287
      %p291 = scmp.eq.s32.totalorder %s41, 0
      %p292 = por %p290, %p291
      %p293 = scmp.ne.s32.totalorder %s285, %s287
      %p294 = scmp.eq.s32.totalorder %s46, 1
      %p295 = por %p293, %p294
      %p296 = scmp.ne.s32.totalorder %s287, %s288
      %p297 = scmp.eq.s32.totalorder %s46, 0
      %p298 = por %p296, %p297
      %p299 = scmp.ne.s32.totalorder %s287, %s288
      %p300 = scmp.eq.s32.totalorder %s47, 1
      %p301 = por %p299, %p300
      %p303 = scmp.ne.s32.totalorder %s288, %s302
      %p304 = scmp.eq.s32.totalorder %s47, 0
      %p305 = por %p303, %p304
      %s307 = sadd.s32 %s306, 1
      %p310 = scmp.eq.s32.totalorder %s41, 1
      %p311 = scmp.ne.s32.totalorder %s306, %s308
      %p312 = scmp.eq.s32.totalorder %s41, 0
      %p313 = por %p311, %p312
      %p314 = scmp.ne.s32.totalorder %s306, %s308
      %p315 = scmp.eq.s32.totalorder %s46, 1
      %p316 = por %p314, %p315
      %p317 = scmp.ne.s32.totalorder %s308, %s309
      %p318 = scmp.eq.s32.totalorder %s46, 0
      %p319 = por %p317, %p318
      %p320 = scmp.ne.s32.totalorder %s308, %s309
      %p321 = scmp.eq.s32.totalorder %s47, 1
      %p322 = por %p320, %p321
      %p324 = scmp.ne.s32.totalorder %s309, %s323
      %p325 = scmp.eq.s32.totalorder %s47, 0
      %p326 = por %p324, %p325
      %s328 = sadd.s32 %s327, 1
      %p331 = scmp.eq.s32.totalorder %s41, 1
      %p332 = scmp.ne.s32.totalorder %s327, %s329
      %p333 = scmp.eq.s32.totalorder %s41, 0
      %p334 = por %p332, %p333
      %p335 = scmp.ne.s32.totalorder %s327, %s329
      %p336 = scmp.eq.s32.totalorder %s46, 1
      %p337 = por %p335, %p336
      %p338 = scmp.ne.s32.totalorder %s329, %s330
      %p339 = scmp.eq.s32.totalorder %s46, 0
      %p340 = por %p338, %p339
      %p341 = scmp.ne.s32.totalorder %s329, %s330
      %p342 = scmp.eq.s32.totalorder %s47, 1
      %p343 = por %p341, %p342
      %p345 = scmp.ne.s32.totalorder %s330, %s344
      %p346 = scmp.eq.s32.totalorder %s47, 0
      %p347 = por %p345, %p346
      %s349 = sadd.s32 %s348, 1
      %p352 = scmp.eq.s32.totalorder %s41, 1
      %p353 = scmp.ne.s32.totalorder %s348, %s350
      %p354 = scmp.eq.s32.totalorder %s41, 0
      %p355 = por %p353, %p354
      %p356 = scmp.ne.s32.totalorder %s348, %s350
      %p357 = scmp.eq.s32.totalorder %s46, 1
      %p358 = por %p356, %p357
      %p359 = scmp.ne.s32.totalorder %s350, %s351
      %p360 = scmp.eq.s32.totalorder %s46, 0
      %p361 = por %p359, %p360
      %p362 = scmp.ne.s32.totalorder %s350, %s351
      %p363 = scmp.eq.s32.totalorder %s47, 1
      %p364 = por %p362, %p363
      %p366 = scmp.ne.s32.totalorder %s351, %s365
      %p367 = scmp.eq.s32.totalorder %s47, 0
      %p368 = por %p366, %p367
      %s370 = sadd.s32 %s369, 1
      %p373 = scmp.eq.s32.totalorder %s41, 1
      %p374 = scmp.ne.s32.totalorder %s369, %s371
      %p375 = scmp.eq.s32.totalorder %s41, 0
      %p376 = por %p374, %p375
      %p377 = scmp.ne.s32.totalorder %s369, %s371
      %p378 = scmp.eq.s32.totalorder %s46, 1
      %p379 = por %p377, %p378
      %p380 = scmp.ne.s32.totalorder %s371, %s372
      %p381 = scmp.eq.s32.totalorder %s46, 0
      %p382 = por %p380, %p381
      %p383 = scmp.ne.s32.totalorder %s371, %s372
      %p384 = scmp.eq.s32.totalorder %s47, 1
      %p385 = por %p383, %p384
      %p387 = scmp.ne.s32.totalorder %s372, %s386
      %p388 = scmp.eq.s32.totalorder %s47, 0
      %p389 = por %p387, %p388
      %s391 = sadd.s32 %s390, 1
      %p394 = scmp.eq.s32.totalorder %s41, 1
      %p395 = scmp.ne.s32.totalorder %s390, %s392
      %p396 = scmp.eq.s32.totalorder %s41, 0
      %p397 = por %p395, %p396
      %p398 = scmp.ne.s32.totalorder %s390, %s392
      %p399 = scmp.eq.s32.totalorder %s46, 1
      %p400 = por %p398, %p399
      %p401 = scmp.ne.s32.totalorder %s392, %s393
      %p402 = scmp.eq.s32.totalorder %s46, 0
      %p403 = por %p401, %p402
      %p404 = scmp.ne.s32.totalorder %s392, %s393
      %p405 = scmp.eq.s32.totalorder %s47, 1
      %p406 = por %p404, %p405
      %p408 = scmp.ne.s32.totalorder %s393, %s407
      %p409 = scmp.eq.s32.totalorder %s47, 0
      %p410 = por %p408, %p409
      %s412 = sadd.s32 %s411, 1
      %p415 = scmp.eq.s32.totalorder %s41, 1
      %p416 = scmp.ne.s32.totalorder %s411, %s413
      %p417 = scmp.eq.s32.totalorder %s41, 0
      %p418 = por %p416, %p417
      %p419 = scmp.ne.s32.totalorder %s411, %s413
      %p420 = scmp.eq.s32.totalorder %s46, 1
      %p421 = por %p419, %p420
      %p422 = scmp.ne.s32.totalorder %s413, %s414
      %p423 = scmp.eq.s32.totalorder %s46, 0
      %p424 = por %p422, %p423
      %p425 = scmp.ne.s32.totalorder %s413, %s414
      %p426 = scmp.eq.s32.totalorder %s47, 1
      %p427 = por %p425, %p426
      %p429 = scmp.ne.s32.totalorder %s414, %s428
      %p430 = scmp.eq.s32.totalorder %s47, 0
      %p431 = por %p429, %p430
      %s433 = sadd.s32 %s432, 1
      %p436 = scmp.eq.s32.totalorder %s41, 1
      %p437 = scmp.ne.s32.totalorder %s432, %s434
      %p438 = scmp.eq.s32.totalorder %s41, 0
      %p439 = por %p437, %p438
      %p440 = scmp.ne.s32.totalorder %s432, %s434
      %p441 = scmp.eq.s32.totalorder %s46, 1
      %p442 = por %p440, %p441
      %p443 = scmp.ne.s32.totalorder %s434, %s435
      %p444 = scmp.eq.s32.totalorder %s46, 0
      %p445 = por %p443, %p444
      %p446 = scmp.ne.s32.totalorder %s434, %s435
      %p447 = scmp.eq.s32.totalorder %s47, 1
      %p448 = por %p446, %p447
      %p450 = scmp.ne.s32.totalorder %s435, %s449
      %p451 = scmp.eq.s32.totalorder %s47, 0
      %p452 = por %p450, %p451
      %s454 = sadd.s32 %s453, 1
      %p457 = scmp.eq.s32.totalorder %s41, 1
      %p458 = scmp.ne.s32.totalorder %s453, %s455
      %p459 = scmp.eq.s32.totalorder %s41, 0
      %p460 = por %p458, %p459
      %p461 = scmp.ne.s32.totalorder %s453, %s455
      %p462 = scmp.eq.s32.totalorder %s46, 1
      %p463 = por %p461, %p462
      %p464 = scmp.ne.s32.totalorder %s455, %s456
      %p465 = scmp.eq.s32.totalorder %s46, 0
      %p466 = por %p464, %p465
      %p467 = scmp.ne.s32.totalorder %s455, %s456
      %p468 = scmp.eq.s32.totalorder %s47, 1
      %p469 = por %p467, %p468
      %p471 = scmp.ne.s32.totalorder %s456, %s470
      %p472 = scmp.eq.s32.totalorder %s47, 0
      %p473 = por %p471, %p472
      %s475 = sadd.s32 %s474, 1
      %p478 = scmp.eq.s32.totalorder %s41, 1
      %p479 = scmp.ne.s32.totalorder %s474, %s476
      %p480 = scmp.eq.s32.totalorder %s41, 0
      %p481 = por %p479, %p480
      %p482 = scmp.ne.s32.totalorder %s474, %s476
      %p483 = scmp.eq.s32.totalorder %s46, 1
      %p484 = por %p482, %p483
      %p485 = scmp.ne.s32.totalorder %s476, %s477
      %p486 = scmp.eq.s32.totalorder %s46, 0
      %p487 = por %p485, %p486
      %p488 = scmp.ne.s32.totalorder %s476, %s477
      %p489 = scmp.eq.s32.totalorder %s47, 1
      %p490 = por %p488, %p489
      %p492 = scmp.ne.s32.totalorder %s477, %s491
      %p493 = scmp.eq.s32.totalorder %s47, 0
      %p494 = por %p492, %p493
      %s496 = sadd.s32 %s495, 1
      %p499 = scmp.eq.s32.totalorder %s41, 1
      %p500 = scmp.ne.s32.totalorder %s495, %s497
      %p501 = scmp.eq.s32.totalorder %s41, 0
      %p502 = por %p500, %p501
      %p503 = scmp.ne.s32.totalorder %s495, %s497
      %p504 = scmp.eq.s32.totalorder %s46, 1
      %p505 = por %p503, %p504
      %p506 = scmp.ne.s32.totalorder %s497, %s498
      %p507 = scmp.eq.s32.totalorder %s46, 0
      %p508 = por %p506, %p507
      %p509 = scmp.ne.s32.totalorder %s497, %s498
      %p510 = scmp.eq.s32.totalorder %s47, 1
      %p511 = por %p509, %p510
      %p513 = scmp.ne.s32.totalorder %s498, %s512
      %p514 = scmp.eq.s32.totalorder %s47, 0
      %p515 = por %p513, %p514
      %s517 = sadd.s32 %s516, 1
      %p520 = scmp.eq.s32.totalorder %s41, 1
      %p521 = scmp.ne.s32.totalorder %s516, %s518
      %p522 = scmp.eq.s32.totalorder %s41, 0
      %p523 = por %p521, %p522
      %p524 = scmp.ne.s32.totalorder %s516, %s518
      %p525 = scmp.eq.s32.totalorder %s46, 1
      %p526 = por %p524, %p525
      %p527 = scmp.ne.s32.totalorder %s518, %s519
      %p528 = scmp.eq.s32.totalorder %s46, 0
      %p529 = por %p527, %p528
      %p530 = scmp.ne.s32.totalorder %s518, %s519
      %p531 = scmp.eq.s32.totalorder %s47, 1
      %p532 = por %p530, %p531
      %p534 = scmp.ne.s32.totalorder %s519, %s533
      %p535 = scmp.eq.s32.totalorder %s47, 0
      %p536 = por %p534, %p535
      %s538 = sadd.s32 %s537, 1
      %p541 = scmp.eq.s32.totalorder %s41, 1
      %p542 = scmp.ne.s32.totalorder %s537, %s539
      %p543 = scmp.eq.s32.totalorder %s41, 0
      %p544 = por %p542, %p543
      %p545 = scmp.ne.s32.totalorder %s537, %s539
      %p546 = scmp.eq.s32.totalorder %s46, 1
      %p547 = por %p545, %p546
      %p548 = scmp.ne.s32.totalorder %s539, %s540
      %p549 = scmp.eq.s32.totalorder %s46, 0
      %p550 = por %p548, %p549
      %p551 = scmp.ne.s32.totalorder %s539, %s540
      %p552 = scmp.eq.s32.totalorder %s47, 1
      %p553 = por %p551, %p552
      %p555 = scmp.ne.s32.totalorder %s540, %s554
      %p556 = scmp.eq.s32.totalorder %s47, 0
      %p557 = por %p555, %p556
      %s559 = sadd.s32 %s558, 1
      %p562 = scmp.eq.s32.totalorder %s41, 1
      %p563 = scmp.ne.s32.totalorder %s558, %s560
      %p564 = scmp.eq.s32.totalorder %s41, 0
      %p565 = por %p563, %p564
      %p566 = scmp.ne.s32.totalorder %s558, %s560
      %p567 = scmp.eq.s32.totalorder %s46, 1
      %p568 = por %p566, %p567
      %p569 = scmp.ne.s32.totalorder %s560, %s561
      %p570 = scmp.eq.s32.totalorder %s46, 0
      %p571 = por %p569, %p570
      %p572 = scmp.ne.s32.totalorder %s560, %s561
      %p573 = scmp.eq.s32.totalorder %s47, 1
      %p574 = por %p572, %p573
      %p576 = scmp.ne.s32.totalorder %s561, %s575
      %p577 = scmp.eq.s32.totalorder %s47, 0
      %p578 = por %p576, %p577
      %s579 = ssub.s32 %s41, %s48
      %p580 = scmp.eq.s32.totalorder %s579, 0
      %s582 = sadd.s32 %s581, 1
      %s583 = scalar_select %p580, %s581, %s582
      %p586 = pneg %p580
      %p587 = scmp.eq.s32.totalorder %s41, 1
      %p588 = por %p586, %p587
      %p589 = scmp.ne.s32.totalorder %s581, %s584
      %p590 = scmp.eq.s32.totalorder %s41, 0
      %p591 = por %p589, %p590
      %p592 = scmp.ne.s32.totalorder %s581, %s584
      %p593 = scmp.eq.s32.totalorder %s46, 1
      %p594 = por %p592, %p593
      %p595 = scmp.ne.s32.totalorder %s584, %s585
      %p596 = scmp.eq.s32.totalorder %s46, 0
      %p597 = por %p595, %p596
      %p598 = scmp.ne.s32.totalorder %s584, %s585
      %p599 = scmp.eq.s32.totalorder %s47, 1
      %p600 = por %p598, %p599
      %p602 = scmp.ne.s32.totalorder %s585, %s601
      %p603 = scmp.eq.s32.totalorder %s47, 0
      %p604 = por %p602, %p603
      %p605 = scmp.le.s32.totalorder 1, %s41
      %p606 = scmp.lt.s32.totalorder %s41, 3
      %p607 = pnand %p605, %p606
      %p608 = pneg %p607
      // Predicated region
      $region9: #{_lambda_.1} parent=5 // pred_check
        _
      $region10: #{_lambda_.1} parent=5 // pred_check_branch
        %610 = sbr.rel (%p607) target = $region12
      $region11: #{_lambda_.1} parent=5 // pred_region
        %s611 = ssub.s32 %s41, 1
        // Predicated region
        $region13: #{_lambda_.1} parent=11 // pred_check
          %p612 = pneg %p88
        $region14: #{_lambda_.1} parent=11 // pred_check_branch
          %614 = sbr.rel (%p612) target = $region16
        $region15: #{_lambda_.1} parent=11 // pred_region
          %s616 = ssub.s32 2048, 2048
          %617 = vsyncadd [#allocation3], %s616
          %s618 = sshll.u32 [#allocation2], 4
          %s619 = int_to_ptr.vmem [resolvable:$true] %s618
          %624 = dma.hbm_to_vmem [thread:$0]  %s1, 2048, %s619, [#allocation3], 64, 64, 4
        $region16: #{_lambda_.1} parent=11 // pred_fallthru
          _
        // Predicated region
        $region17: #{_lambda_.1} parent=11 // pred_check
          %p625 = pneg %p109
        $region18: #{_lambda_.1} parent=11 // pred_check_branch
          %627 = sbr.rel (%p625) target = $region20
        $region19: #{_lambda_.1} parent=11 // pred_region
          %s629 = ssub.s32 512, 512
          %630 = vsyncadd [#allocation5], %s629
          %s631 = sshll.u32 [#allocation4], 4
          %s632 = int_to_ptr.vmem [resolvable:$true] %s631
          %637 = dma.hbm_to_vmem [thread:$0]  %s2, 512, %s632, [#allocation5], 64, 64, 4
        $region20: #{_lambda_.1} parent=11 // pred_fallthru
          _
        // Predicated region
        $region21: #{_lambda_.1} parent=11 // pred_check
          %p638 = pneg %p130
        $region22: #{_lambda_.1} parent=11 // pred_check_branch
          %640 = sbr.rel (%p638) target = $region24
        $region23: #{_lambda_.1} parent=11 // pred_region
          %s642 = ssub.s32 64, 64
          %643 = vsyncadd [#allocation5], %s642
          %s645 = sshll.u32 [#allocation6], 4
          %s646 = int_to_ptr.vmem [resolvable:$true] %s645
          %648 = dma.hbm_to_vmem [thread:$0]  %s3, 64, %s646, [#allocation5]
        $region24: #{_lambda_.1} parent=11 // pred_fallthru
          _
        // Predicated region
        $region25: #{_lambda_.1} parent=11 // pred_check
          %p649 = pneg %p151
        $region26: #{_lambda_.1} parent=11 // pred_check_branch
          %651 = sbr.rel (%p649) target = $region28
        $region27: #{_lambda_.1} parent=11 // pred_region
          %s653 = ssub.s32 2048, 2048
          %654 = vsyncadd [#allocation8], %s653
          %s655 = sshll.u32 [#allocation7], 4
          %s656 = int_to_ptr.vmem [resolvable:$true] %s655
          %661 = dma.hbm_to_vmem [thread:$0]  %s4, 2048, %s656, [#allocation8], 128, 128, 8
        $region28: #{_lambda_.1} parent=11 // pred_fallthru
          _
        // Predicated region
        $region29: #{_lambda_.1} parent=11 // pred_check
          %p662 = pneg %p172
        $region30: #{_lambda_.1} parent=11 // pred_check_branch
          %664 = sbr.rel (%p662) target = $region32
        $region31: #{_lambda_.1} parent=11 // pred_region
          %s666 = ssub.s32 128, 128
          %667 = vsyncadd [#allocation8], %s666
          %s669 = sshll.u32 [#allocation9], 4
          %s670 = int_to_ptr.vmem [resolvable:$true] %s669
          %672 = dma.hbm_to_vmem [thread:$0]  %s5, 128, %s670, [#allocation8]
        $region32: #{_lambda_.1} parent=11 // pred_fallthru
          _
        // Predicated region
        $region33: #{_lambda_.1} parent=11 // pred_check
          %p673 = pneg %p193
        $region34: #{_lambda_.1} parent=11 // pred_check_branch
          %675 = sbr.rel (%p673) target = $region36
        $region35: #{_lambda_.1} parent=11 // pred_region
          %s677 = ssub.s32 4096, 4096
          %678 = vsyncadd [#allocation11], %s677
          %s679 = sshll.u32 [#allocation10], 4
          %s680 = int_to_ptr.vmem [resolvable:$true] %s679
          %685 = dma.hbm_to_vmem [thread:$0]  %s6, 4096, %s680, [#allocation11], 64, 64, 4
        $region36: #{_lambda_.1} parent=11 // pred_fallthru
          _
        // Predicated region
        $region37: #{_lambda_.1} parent=11 // pred_check
          %p686 = pneg %p214
        $region38: #{_lambda_.1} parent=11 // pred_check_branch
          %688 = sbr.rel (%p686) target = $region40
        $region39: #{_lambda_.1} parent=11 // pred_region
          %s690 = ssub.s32 256, 256
          %691 = vsyncadd [#allocation11], %s690
          %s692 = sshll.u32 [#allocation12], 4
          %s693 = int_to_ptr.vmem [resolvable:$true] %s692
          %698 = dma.hbm_to_vmem [thread:$0]  %s7, 256, %s693, [#allocation11], 64, 64, 4
        $region40: #{_lambda_.1} parent=11 // pred_fallthru
          _
        // Predicated region
        $region41: #{_lambda_.1} parent=11 // pred_check
          %p699 = pneg %p235
        $region42: #{_lambda_.1} parent=11 // pred_check_branch
          %701 = sbr.rel (%p699) target = $region44
        $region43: #{_lambda_.1} parent=11 // pred_region
          %s703 = ssub.s32 64, 64
          %704 = vsyncadd [#allocation14], %s703
          %s706 = sshll.u32 [#allocation13], 4
          %s707 = int_to_ptr.vmem [resolvable:$true] %s706
          %709 = dma.hbm_to_vmem [thread:$0]  %s8, 64, %s707, [#allocation14]
        $region44: #{_lambda_.1} parent=11 // pred_fallthru
          _
        // Predicated region
        $region45: #{_lambda_.1} parent=11 // pred_check
          %p710 = pneg %p256
        $region46: #{_lambda_.1} parent=11 // pred_check_branch
          %712 = sbr.rel (%p710) target = $region48
        $region47: #{_lambda_.1} parent=11 // pred_region
          %s714 = ssub.s32 2048, 2048
          %715 = vsyncadd [#allocation14], %s714
          %s716 = sshll.u32 [#allocation15], 4
          %s717 = int_to_ptr.vmem [resolvable:$true] %s716
          %722 = dma.hbm_to_vmem [thread:$0]  %s9, 2048, %s717, [#allocation14], 128, 128, 8
        $region48: #{_lambda_.1} parent=11 // pred_fallthru
          _
        // Predicated region
        $region49: #{_lambda_.1} parent=11 // pred_check
          %p723 = pneg %p277
        $region50: #{_lambda_.1} parent=11 // pred_check_branch
          %725 = sbr.rel (%p723) target = $region52
        $region51: #{_lambda_.1} parent=11 // pred_region
          %s727 = ssub.s32 256, 256
          %728 = vsyncadd [#allocation17], %s727
          %s729 = sshll.u32 [#allocation16], 4
          %s730 = int_to_ptr.vmem [resolvable:$true] %s729
          %735 = dma.hbm_to_vmem [thread:$0]  %s10, 256, %s730, [#allocation17], 128, 128, 8
        $region52: #{_lambda_.1} parent=11 // pred_fallthru
          _
        // Predicated region
        $region53: #{_lambda_.1} parent=11 // pred_check
          %p736 = pneg %p298
        $region54: #{_lambda_.1} parent=11 // pred_check_branch
          %738 = sbr.rel (%p736) target = $region56
        $region55: #{_lambda_.1} parent=11 // pred_region
          _
        $region56: #{_lambda_.1} parent=11 // pred_fallthru
          _
        // Predicated region
        $region57: #{_lambda_.1} parent=11 // pred_check
          %p739 = pneg %p319
        $region58: #{_lambda_.1} parent=11 // pred_check_branch
          %741 = sbr.rel (%p739) target = $region60
        $region59: #{_lambda_.1} parent=11 // pred_region
          %s743 = ssub.s32 128, 128
          %744 = vsyncadd [#allocation17], %s743
          %s745 = sshll.u32 [#allocation18], 4
          %s746 = int_to_ptr.vmem [resolvable:$true] %s745
          %751 = dma.hbm_to_vmem [thread:$0]  %s12, 128, %s746, [#allocation17], 32, 32, 2
        $region60: #{_lambda_.1} parent=11 // pred_fallthru
          _
        // Predicated region
        $region61: #{_lambda_.1} parent=11 // pred_check
          %p752 = pneg %p340
        $region62: #{_lambda_.1} parent=11 // pred_check_branch
          %754 = sbr.rel (%p752) target = $region64
        $region63: #{_lambda_.1} parent=11 // pred_region
          %s756 = ssub.s32 64, 64
          %757 = vsyncadd [#allocation20], %s756
          %s759 = sshll.u32 [#allocation19], 4
          %s760 = int_to_ptr.vmem [resolvable:$true] %s759
          %762 = dma.hbm_to_vmem [thread:$0]  %s13, 64, %s760, [#allocation20]
        $region64: #{_lambda_.1} parent=11 // pred_fallthru
          _
        // Predicated region
        $region65: #{_lambda_.1} parent=11 // pred_check
          %p763 = pneg %p361
        $region66: #{_lambda_.1} parent=11 // pred_check_branch
          %765 = sbr.rel (%p763) target = $region68
        $region67: #{_lambda_.1} parent=11 // pred_region
          %s767 = ssub.s32 2048, 2048
          %768 = vsyncadd [#allocation20], %s767
          %s769 = sshll.u32 [#allocation21], 4
          %s770 = int_to_ptr.vmem [resolvable:$true] %s769
          %775 = dma.hbm_to_vmem [thread:$0]  %s14, 2048, %s770, [#allocation20], 128, 128, 8
        $region68: #{_lambda_.1} parent=11 // pred_fallthru
          _
        // Predicated region
        $region69: #{_lambda_.1} parent=11 // pred_check
          %p776 = pneg %p382
        $region70: #{_lambda_.1} parent=11 // pred_check_branch
          %778 = sbr.rel (%p776) target = $region72
        $region71: #{_lambda_.1} parent=11 // pred_region
          %s780 = ssub.s32 512, 512
          %781 = vsyncadd [#allocation23], %s780
          %s782 = sshll.u32 [#allocation22], 4
          %s783 = int_to_ptr.vmem [resolvable:$true] %s782
          %788 = dma.hbm_to_vmem [thread:$0]  %s15, 512, %s783, [#allocation23], 128, 128, 8
        $region72: #{_lambda_.1} parent=11 // pred_fallthru
          _
        // Predicated region
        $region73: #{_lambda_.1} parent=11 // pred_check
          %p789 = pneg %p403
        $region74: #{_lambda_.1} parent=11 // pred_check_branch
          %791 = sbr.rel (%p789) target = $region76
        $region75: #{_lambda_.1} parent=11 // pred_region
          _
        $region76: #{_lambda_.1} parent=11 // pred_fallthru
          _
        // Predicated region
        $region77: #{_lambda_.1} parent=11 // pred_check
          %p792 = pneg %p424
        $region78: #{_lambda_.1} parent=11 // pred_check_branch
          %794 = sbr.rel (%p792) target = $region80
        $region79: #{_lambda_.1} parent=11 // pred_region
          %s796 = ssub.s32 64, 64
          %797 = vsyncadd [#allocation23], %s796
          %s798 = sshll.u32 [#allocation24], 4
          %s799 = int_to_ptr.vmem [resolvable:$true] %s798
          %804 = dma.hbm_to_vmem [thread:$0]  %s17, 64, %s799, [#allocation23], 16, 16, 1
        $region80: #{_lambda_.1} parent=11 // pred_fallthru
          _
        // Predicated region
        $region81: #{_lambda_.1} parent=11 // pred_check
          %p805 = pneg %p445
        $region82: #{_lambda_.1} parent=11 // pred_check_branch
          %807 = sbr.rel (%p805) target = $region84
        $region83: #{_lambda_.1} parent=11 // pred_region
          _
        $region84: #{_lambda_.1} parent=11 // pred_fallthru
          _
        // Predicated region
        $region85: #{_lambda_.1} parent=11 // pred_check
          %p808 = pneg %p466
        $region86: #{_lambda_.1} parent=11 // pred_check_branch
          %810 = sbr.rel (%p808) target = $region88
        $region87: #{_lambda_.1} parent=11 // pred_region
          %s812 = ssub.s32 2048, 2048
          %813 = vsyncadd [#allocation26], %s812
          %s814 = sshll.u32 [#allocation25], 4
          %s815 = int_to_ptr.vmem [resolvable:$true] %s814
          %820 = dma.hbm_to_vmem [thread:$0]  %s19, 2048, %s815, [#allocation26], 128, 128, 8
        $region88: #{_lambda_.1} parent=11 // pred_fallthru
          _
        // Predicated region
        $region89: #{_lambda_.1} parent=11 // pred_check
          %p821 = pneg %p487
        $region90: #{_lambda_.1} parent=11 // pred_check_branch
          %823 = sbr.rel (%p821) target = $region92
        $region91: #{_lambda_.1} parent=11 // pred_region
          %s825 = ssub.s32 1024, 1024
          %826 = vsyncadd [#allocation26], %s825
          %s827 = sshll.u32 [#allocation27], 4
          %s828 = int_to_ptr.vmem [resolvable:$true] %s827
          %833 = dma.hbm_to_vmem [thread:$0]  %s20, 1024, %s828, [#allocation26], 128, 128, 8
        $region92: #{_lambda_.1} parent=11 // pred_fallthru
          _
        // Predicated region
        $region93: #{_lambda_.1} parent=11 // pred_check
          %p834 = pneg %p508
        $region94: #{_lambda_.1} parent=11 // pred_check_branch
          %836 = sbr.rel (%p834) target = $region96
        $region95: #{_lambda_.1} parent=11 // pred_region
          _
        $region96: #{_lambda_.1} parent=11 // pred_fallthru
          _
        // Predicated region
        $region97: #{_lambda_.1} parent=11 // pred_check
          %p837 = pneg %p529
        $region98: #{_lambda_.1} parent=11 // pred_check_branch
          %839 = sbr.rel (%p837) target = $region100
        $region99: #{_lambda_.1} parent=11 // pred_region
          _
        $region100: #{_lambda_.1} parent=11 // pred_fallthru
          _
        // Predicated region
        $region101: #{_lambda_.1} parent=11 // pred_check
          %p840 = pneg %p550
        $region102: #{_lambda_.1} parent=11 // pred_check_branch
          %842 = sbr.rel (%p840) target = $region104
        $region103: #{_lambda_.1} parent=11 // pred_region
          %s844 = ssub.s32 512, 512
          %845 = vsyncadd [#allocation29], %s844
          %s846 = sshll.u32 [#allocation28], 4
          %s847 = int_to_ptr.vmem [resolvable:$true] %s846
          %852 = dma.hbm_to_vmem [thread:$0]  %s23, 512, %s847, [#allocation29], 128, 128, 8
        $region104: #{_lambda_.1} parent=11 // pred_fallthru
          _
        // Predicated region
        $region105: #{_lambda_.1} parent=11 // pred_check
          %p853 = pneg %p571
        $region106: #{_lambda_.1} parent=11 // pred_check_branch
          %855 = sbr.rel (%p853) target = $region108
        $region107: #{_lambda_.1} parent=11 // pred_region
          _
        $region108: #{_lambda_.1} parent=11 // pred_fallthru
          _
      $region12: #{_lambda_.1} parent=5 // pred_fallthru
        _
      %p856 = scmp.lt.s32.totalorder %s41, 2
      // Predicated region
      $region109: #{_lambda_.1} parent=5 // pred_check
        %p857 = pneg %p856
      $region110: #{_lambda_.1} parent=5 // pred_check_branch
        %859 = sbr.rel (%p857) target = $region112
      $region111: #{_lambda_.1} parent=5 // pred_region
        // Predicated region
        $region113: #{_lambda_.1} parent=111 // pred_check
          %p860 = pneg %p61
        $region114: #{_lambda_.1} parent=111 // pred_check_branch
          %862 = sbr.rel (%p860) target = $region116
        $region115: #{_lambda_.1} parent=111 // pred_region
          %p863 = scmp.lt.s32.totalorder %s41, 1
          %s864 = scalar_select %p863, %s41, 1
          %s865 = smul.addr %s864, 4
          %s866 = smul.addr %s865, 4
          %s867 = scalar_lea.vmem %s0, %s866
        $region116: #{_lambda_.1} parent=111 // pred_fallthru
          _
      $region112: #{_lambda_.1} parent=5 // pred_fallthru
        _
      %p868 = scmp.le.s32.totalorder 1, %s41
      %p869 = scmp.lt.s32.totalorder %s41, 3
      %p870 = pnand %p868, %p869
      %p871 = pneg %p870
      // Predicated region
      $region117: #{_lambda_.1} parent=5 // pred_check
        _
      $region118: #{_lambda_.1} parent=5 // pred_check_branch
        %873 = sbr.rel (%p870) target = $region120
      $region119: #{_lambda_.1} parent=5 // pred_region
        %s874 = ssub.s32 %s41, 1
        // Predicated region
        $region121: #{_lambda_.1} parent=119 // pred_check
          %p875 = pneg %p88
        $region122: #{_lambda_.1} parent=119 // pred_check_branch
          %877 = sbr.rel (%p875) target = $region124
        $region123: #{_lambda_.1} parent=119 // pred_region
          %878 = dma.done [#allocation3], 2048
        $region124: #{_lambda_.1} parent=119 // pred_fallthru
          _
        // Predicated region
        $region125: #{_lambda_.1} parent=119 // pred_check
          %p879 = pneg %p109
        $region126: #{_lambda_.1} parent=119 // pred_check_branch
          %881 = sbr.rel (%p879) target = $region128
        $region127: #{_lambda_.1} parent=119 // pred_region
          %882 = dma.done [#allocation5], 512
        $region128: #{_lambda_.1} parent=119 // pred_fallthru
          _
        // Predicated region
        $region129: #{_lambda_.1} parent=119 // pred_check
          %p883 = pneg %p130
        $region130: #{_lambda_.1} parent=119 // pred_check_branch
          %885 = sbr.rel (%p883) target = $region132
        $region131: #{_lambda_.1} parent=119 // pred_region
          %886 = dma.done [#allocation5], 64
        $region132: #{_lambda_.1} parent=119 // pred_fallthru
          _
        // Predicated region
        $region133: #{_lambda_.1} parent=119 // pred_check
          %p887 = pneg %p151
        $region134: #{_lambda_.1} parent=119 // pred_check_branch
          %889 = sbr.rel (%p887) target = $region136
        $region135: #{_lambda_.1} parent=119 // pred_region
          %890 = dma.done [#allocation8], 2048
        $region136: #{_lambda_.1} parent=119 // pred_fallthru
          _
        // Predicated region
        $region137: #{_lambda_.1} parent=119 // pred_check
          %p891 = pneg %p172
        $region138: #{_lambda_.1} parent=119 // pred_check_branch
          %893 = sbr.rel (%p891) target = $region140
        $region139: #{_lambda_.1} parent=119 // pred_region
          %894 = dma.done [#allocation8], 128
        $region140: #{_lambda_.1} parent=119 // pred_fallthru
          _
        // Predicated region
        $region141: #{_lambda_.1} parent=119 // pred_check
          %p895 = pneg %p193
        $region142: #{_lambda_.1} parent=119 // pred_check_branch
          %897 = sbr.rel (%p895) target = $region144
        $region143: #{_lambda_.1} parent=119 // pred_region
          %898 = dma.done [#allocation11], 4096
        $region144: #{_lambda_.1} parent=119 // pred_fallthru
          _
        // Predicated region
        $region145: #{_lambda_.1} parent=119 // pred_check
          %p899 = pneg %p214
        $region146: #{_lambda_.1} parent=119 // pred_check_branch
          %901 = sbr.rel (%p899) target = $region148
        $region147: #{_lambda_.1} parent=119 // pred_region
          %902 = dma.done [#allocation11], 256
        $region148: #{_lambda_.1} parent=119 // pred_fallthru
          _
        // Predicated region
        $region149: #{_lambda_.1} parent=119 // pred_check
          %p903 = pneg %p235
        $region150: #{_lambda_.1} parent=119 // pred_check_branch
          %905 = sbr.rel (%p903) target = $region152
        $region151: #{_lambda_.1} parent=119 // pred_region
          %906 = dma.done [#allocation14], 64
        $region152: #{_lambda_.1} parent=119 // pred_fallthru
          _
        // Predicated region
        $region153: #{_lambda_.1} parent=119 // pred_check
          %p907 = pneg %p256
        $region154: #{_lambda_.1} parent=119 // pred_check_branch
          %909 = sbr.rel (%p907) target = $region156
        $region155: #{_lambda_.1} parent=119 // pred_region
          %910 = dma.done [#allocation14], 2048
        $region156: #{_lambda_.1} parent=119 // pred_fallthru
          _
        // Predicated region
        $region157: #{_lambda_.1} parent=119 // pred_check
          %p911 = pneg %p277
        $region158: #{_lambda_.1} parent=119 // pred_check_branch
          %913 = sbr.rel (%p911) target = $region160
        $region159: #{_lambda_.1} parent=119 // pred_region
          %914 = dma.done [#allocation17], 256
        $region160: #{_lambda_.1} parent=119 // pred_fallthru
          _
        // Predicated region
        $region161: #{_lambda_.1} parent=119 // pred_check
          %p915 = pneg %p319
        $region162: #{_lambda_.1} parent=119 // pred_check_branch
          %917 = sbr.rel (%p915) target = $region164
        $region163: #{_lambda_.1} parent=119 // pred_region
          %918 = dma.done [#allocation17], 128
        $region164: #{_lambda_.1} parent=119 // pred_fallthru
          _
        // Predicated region
        $region165: #{_lambda_.1} parent=119 // pred_check
          %p919 = pneg %p340
        $region166: #{_lambda_.1} parent=119 // pred_check_branch
          %921 = sbr.rel (%p919) target = $region168
        $region167: #{_lambda_.1} parent=119 // pred_region
          %922 = dma.done [#allocation20], 64
        $region168: #{_lambda_.1} parent=119 // pred_fallthru
          _
        // Predicated region
        $region169: #{_lambda_.1} parent=119 // pred_check
          %p923 = pneg %p361
        $region170: #{_lambda_.1} parent=119 // pred_check_branch
          %925 = sbr.rel (%p923) target = $region172
        $region171: #{_lambda_.1} parent=119 // pred_region
          %926 = dma.done [#allocation20], 2048
        $region172: #{_lambda_.1} parent=119 // pred_fallthru
          _
        // Predicated region
        $region173: #{_lambda_.1} parent=119 // pred_check
          %p927 = pneg %p382
        $region174: #{_lambda_.1} parent=119 // pred_check_branch
          %929 = sbr.rel (%p927) target = $region176
        $region175: #{_lambda_.1} parent=119 // pred_region
          %930 = dma.done [#allocation23], 512
        $region176: #{_lambda_.1} parent=119 // pred_fallthru
          _
        // Predicated region
        $region177: #{_lambda_.1} parent=119 // pred_check
          %p931 = pneg %p424
        $region178: #{_lambda_.1} parent=119 // pred_check_branch
          %933 = sbr.rel (%p931) target = $region180
        $region179: #{_lambda_.1} parent=119 // pred_region
          %934 = dma.done [#allocation23], 64
        $region180: #{_lambda_.1} parent=119 // pred_fallthru
          _
        // Predicated region
        $region181: #{_lambda_.1} parent=119 // pred_check
          %p935 = pneg %p466
        $region182: #{_lambda_.1} parent=119 // pred_check_branch
          %937 = sbr.rel (%p935) target = $region184
        $region183: #{_lambda_.1} parent=119 // pred_region
          %938 = dma.done [#allocation26], 2048
        $region184: #{_lambda_.1} parent=119 // pred_fallthru
          _
        // Predicated region
        $region185: #{_lambda_.1} parent=119 // pred_check
          %p939 = pneg %p487
        $region186: #{_lambda_.1} parent=119 // pred_check_branch
          %941 = sbr.rel (%p939) target = $region188
        $region187: #{_lambda_.1} parent=119 // pred_region
          %942 = dma.done [#allocation26], 1024
        $region188: #{_lambda_.1} parent=119 // pred_fallthru
          _
        // Predicated region
        $region189: #{_lambda_.1} parent=119 // pred_check
          %p943 = pneg %p550
        $region190: #{_lambda_.1} parent=119 // pred_check_branch
          %945 = sbr.rel (%p943) target = $region192
        $region191: #{_lambda_.1} parent=119 // pred_region
          %946 = dma.done [#allocation29], 512
        $region192: #{_lambda_.1} parent=119 // pred_fallthru
          _
        %p947 = scmp.lt.s32.totalorder %s46, 1
        %s948 = scalar_select %p947, %s46, 1
        %s949 = smul.addr %s948, 4
        %s950 = smul.addr %s949, 4
        %s951 = scalar_lea.vmem %s0, %s950
        %p952 = pneg %p67
        %p953 = pneg %p64
        %p954 = pneg %p88
        %p955 = pneg %p85
        %p956 = pneg %p109
        %p957 = pneg %p106
        %p958 = pneg %p130
        %p959 = pneg %p127
        %p960 = pneg %p151
        %p961 = pneg %p148
        %p962 = pneg %p172
        %p963 = pneg %p169
        %p964 = pneg %p193
        %p965 = pneg %p190
        %p966 = pneg %p214
        %p967 = pneg %p211
        %p968 = pneg %p235
        %p969 = pneg %p232
        %p970 = pneg %p256
        %p971 = pneg %p253
        %p972 = pneg %p277
        %p973 = pneg %p274
        %p974 = pneg %p298
        %p975 = pneg %p295
        %p976 = pneg %p319
        %p977 = pneg %p316
        %p978 = pneg %p340
        %p979 = pneg %p337
        %p980 = pneg %p361
        %p981 = pneg %p358
        %p982 = pneg %p382
        %p983 = pneg %p379
        %p984 = pneg %p403
        %p985 = pneg %p400
        %p986 = pneg %p424
        %p987 = pneg %p421
        %p988 = pneg %p445
        %p989 = pneg %p442
        %p990 = pneg %p466
        %p991 = pneg %p463
        %p992 = pneg %p487
        %p993 = pneg %p484
        %p994 = pneg %p508
        %p995 = pneg %p505
        %p996 = pneg %p529
        %p997 = pneg %p526
        %p998 = pneg %p550
        %p999 = pneg %p547
        %p1000 = pneg %p571
        %p1001 = pneg %p568
        %p1002 = pneg %p597
        %p1003 = pneg %p594
        %p1004 = scmp.lt.s32.totalorder %s46, 1
        %s1005 = scalar_select %p1004, %s46, 1
        %s1006 = scalar_lea.vmem %s25, %s1005
        %p1007 = scmp.lt.s32.totalorder %s46, 1
        %s1008 = scalar_select %p1007, %s46, 1
        %s1009 = smul.addr %s1008, 4
        %s1010 = smul.addr %s1009, 4
        %s1011 = scalar_lea.vmem %s0, %s1010
        %p1012 = scmp.lt.s32.totalorder %s46, 1
        %s1013 = scalar_select %p1012, %s46, 1
        %s1014 = scalar_lea.vmem %s25, %s1013
        %v1016 = vld [vmem:[%s1011] sm:$0xf]
        %v1017 = vld [vmem:[%s1011 + $0x4] sm:$0xf]
        %v1018 = vld [vmem:[%s1011 + $0x8] sm:$0xf]
        %v1019 = vld [vmem:[%s1011 + $0xc] sm:$0xf]
        %v1020 = vld [vmem:[#allocation4] sm:$0xf]
        %v1021 = vld [vmem:[#allocation4 + $0x4] sm:$0xf]
        %v1024 = vunpack.c.l.b16 %v1020
        %v1025 = vunpack.c.l.b16 %v1021
        %v1026 = vpack.c.b16 %v1025, %v1024
        %v1031 = vunpack.c.l.b16 %v1016
        %v1032 = vunpack.c.l.b16 %v1017
        %v1033 = vunpack.c.l.b16 %v1018
        %v1034 = vunpack.c.l.b16 %v1019
        %v1035 = vpack.c.b16 %v1032, %v1031
        %v1036 = vpack.c.b16 %v1034, %v1033
        %vm1039 = vcmask 261120
        %v1041 = vsel %vm1039, %v1026, 0
        %1043 = vmatprep.subr.bf16.mxu0 0
        %1044 = vmatpush1.bf16.msra.mxu0 0
        %1045 = vmatprep.subr.bf16.mxu0 0
        %1046 = vmatpush1.bf16.msra.mxu0 0
        %1047 = vmatprep.subr.bf16.mxu0 0
        %1048 = vmatpush1.bf16.msra.mxu0 0
        %1049 = vmatprep.subr.bf16.mxu0 0
        %1050 = vmatpush1.bf16.msra.mxu0 0
        %1051 = vmatprep.subr.bf16.mxu0 0
        %1052 = vmatpush1.bf16.msra.mxu0 0
        %1053 = vmatprep.subr.bf16.mxu0 0
        %1054 = vmatpush1.bf16.msra.mxu0 0
        %1055 = vmatprep.subr.bf16.mxu0 0
        %1056 = vmatpush1.bf16.msra.mxu0 %v1036
        %1057 = vmatprep.subr.bf16.mxu0 0
        %1058 = vmatpush1.bf16.msra.mxu0 %v1035
        %1059 = vmatprep.subr.bf16.mxu0 0
        %1060 = vmatpush2.bf16.msra.mxu0 0
        %1061 = vmatprep.subr.bf16.mxu0 0
        %1062 = vmatpush2.bf16.msra.mxu0 0
        %1063 = vmatprep.subr.bf16.mxu0 0
        %1064 = vmatpush2.bf16.msra.mxu0 0
        %1065 = vmatprep.subr.bf16.mxu0 0
        %1066 = vmatpush2.bf16.msra.mxu0 0
        %1067 = vmatprep.subr.bf16.mxu0 0
        %1068 = vmatpush2.bf16.msra.mxu0 0
        %1069 = vmatprep.subr.bf16.mxu0 0
        %1070 = vmatpush2.bf16.msra.mxu0 0
        %1071 = vmatprep.subr.bf16.mxu0 0
        %1072 = vmatpush2.bf16.msra.mxu0 0
        %1073 = vmatprep.subr.bf16.mxu0 0
        %1074 = vmatpush2.bf16.msra.mxu0 0
        %1075 = vmatprep.mubr.bf16.mxu0 0
        %1076 = vmatmul.mubr.bf16.gmra.mxu0 %v1041
        %v1077 = vpop.f32.mrf.mxu0
        %v1078 = vadd.f32 0.0, %v1077
        %v1079 = vpop.f32.mrf.mxu0
        %v1080 = vpop.f32.mrf.mxu0
        %v1081 = vadd.f32 0.0, %v1080
        %v1082 = vpop.f32.mrf.mxu0
        %1083 = vdwg.mxu0
        %v1084 = vpack.c.bf16 %v1081, %v1078
        %v1085 = vld [vmem:[#allocation2] sm:$0xf]
        %v1086 = vld [vmem:[#allocation2 + $0x4] sm:$0xf]
        %v1087 = vld [vmem:[#allocation2 + $0x8] sm:$0xf]
        %v1088 = vld [vmem:[#allocation2 + $0xc] sm:$0xf]
        %v1089 = vld [vmem:[#allocation2 + $0x10] sm:$0xf]
        %v1090 = vld [vmem:[#allocation2 + $0x14] sm:$0xf]
        %v1091 = vld [vmem:[#allocation2 + $0x18] sm:$0xf]
        %v1092 = vld [vmem:[#allocation2 + $0x1c] sm:$0xf]
        %s1093 = scalar_lea.vmem [#allocation4], 8
        %v1094 = vld [vmem:[%s1093] sm:$0xf]
        %v1095 = vld [vmem:[%s1093 + $0x4] sm:$0xf]
        %v1098 = vunpack.c.l.b16 %v1094
        %v1099 = vunpack.c.l.b16 %v1095
        %v1100 = vpack.c.b16 %v1099, %v1098
        %v1102 = vsel %vm1039, %v1100, 0
        %1104 = vmatprep.subr.bf16.mxu0 0
        %1105 = vmatpush1.bf16.msra.mxu0 0
        %1106 = vmatprep.subr.bf16.mxu0 0
        %1107 = vmatpush1.bf16.msra.mxu0 0
        %1108 = vmatprep.subr.bf16.mxu0 0
        %1109 = vmatpush1.bf16.msra.mxu0 0
        %1110 = vmatprep.subr.bf16.mxu0 0
        %1111 = vmatpush1.bf16.msra.mxu0 0
        %1112 = vmatprep.subr.bf16.mxu0 0
        %1113 = vmatpush1.bf16.msra.mxu0 0
        %1114 = vmatprep.subr.bf16.mxu0 0
        %1115 = vmatpush1.bf16.msra.mxu0 0
        %1116 = vmatprep.subr.bf16.mxu0 0
        %1117 = vmatpush1.bf16.msra.mxu0 %v1036
        %1118 = vmatprep.subr.bf16.mxu0 0
        %1119 = vmatpush1.bf16.msra.mxu0 %v1035
        %1120 = vmatprep.subr.bf16.mxu0 0
        %1121 = vmatpush2.bf16.msra.mxu0 0
        %1122 = vmatprep.subr.bf16.mxu0 0
        %1123 = vmatpush2.bf16.msra.mxu0 0
        %1124 = vmatprep.subr.bf16.mxu0 0
        %1125 = vmatpush2.bf16.msra.mxu0 0
        %1126 = vmatprep.subr.bf16.mxu0 0
        %1127 = vmatpush2.bf16.msra.mxu0 0
        %1128 = vmatprep.subr.bf16.mxu0 0
        %1129 = vmatpush2.bf16.msra.mxu0 0
        %1130 = vmatprep.subr.bf16.mxu0 0
        %1131 = vmatpush2.bf16.msra.mxu0 0
        %1132 = vmatprep.subr.bf16.mxu0 0
        %1133 = vmatpush2.bf16.msra.mxu0 0
        %1134 = vmatprep.subr.bf16.mxu0 0
        %1135 = vmatpush2.bf16.msra.mxu0 0
        %1136 = vmatprep.mubr.bf16.mxu0 0
        %1137 = vmatmul.mubr.bf16.gmra.mxu0 %v1102
        %v1138 = vpop.f32.mrf.mxu0
        %v1139 = vadd.f32 0.0, %v1138
        %v1140 = vpop.f32.mrf.mxu0
        %v1141 = vpop.f32.mrf.mxu0
        %v1142 = vadd.f32 0.0, %v1141
        %v1143 = vpop.f32.mrf.mxu0
        %1144 = vdwg.mxu0
        %v1145 = vpack.c.bf16 %v1142, %v1139
        %s1146 = scalar_lea.vmem [#allocation2], 32
        %v1147 = vld [vmem:[%s1146] sm:$0xf]
        %v1148 = vld [vmem:[%s1146 + $0x4] sm:$0xf]
        %v1149 = vld [vmem:[%s1146 + $0x8] sm:$0xf]
        %v1150 = vld [vmem:[%s1146 + $0xc] sm:$0xf]
        %v1151 = vld [vmem:[%s1146 + $0x10] sm:$0xf]
        %v1152 = vld [vmem:[%s1146 + $0x14] sm:$0xf]
        %v1153 = vld [vmem:[%s1146 + $0x18] sm:$0xf]
        %v1154 = vld [vmem:[%s1146 + $0x1c] sm:$0xf]
        %v1163 = vunpack.c.l.b16 %v1147
        %v1164 = vunpack.c.l.b16 %v1148
        %v1165 = vunpack.c.l.b16 %v1149
        %v1166 = vunpack.c.l.b16 %v1150
        %v1167 = vunpack.c.l.b16 %v1151
        %v1168 = vunpack.c.l.b16 %v1152
        %v1169 = vunpack.c.l.b16 %v1153
        %v1170 = vunpack.c.l.b16 %v1154
        %v1171 = vpack.c.b16 %v1164, %v1163
        %v1172 = vpack.c.b16 %v1166, %v1165
        %v1173 = vpack.c.b16 %v1168, %v1167
        %v1174 = vpack.c.b16 %v1170, %v1169
        %vm1179 = vcmask 523264
        %v1181 = vsel %vm1179, %v1145, 0
        %1183 = vmatprep.subr.bf16.mxu0 0
        %1184 = vmatpush1.bf16.msra.mxu0 0
        %1185 = vmatprep.subr.bf16.mxu0 0
        %1186 = vmatpush1.bf16.msra.mxu0 0
        %1187 = vmatprep.subr.bf16.mxu0 0
        %1188 = vmatpush1.bf16.msra.mxu0 0
        %1189 = vmatprep.subr.bf16.mxu0 0
        %1190 = vmatpush1.bf16.msra.mxu0 0
        %1191 = vmatprep.subr.bf16.mxu0 0
        %1192 = vmatpush1.bf16.msra.mxu0 %v1174
        %1193 = vmatprep.subr.bf16.mxu0 0
        %1194 = vmatpush1.bf16.msra.mxu0 %v1173
        %1195 = vmatprep.subr.bf16.mxu0 0
        %1196 = vmatpush1.bf16.msra.mxu0 %v1172
        %1197 = vmatprep.subr.bf16.mxu0 0
        %1198 = vmatpush1.bf16.msra.mxu0 %v1171
        %1199 = vmatprep.subr.bf16.mxu0 0
        %1200 = vmatpush2.bf16.msra.mxu0 0
        %1201 = vmatprep.subr.bf16.mxu0 0
        %1202 = vmatpush2.bf16.msra.mxu0 0
        %1203 = vmatprep.subr.bf16.mxu0 0
        %1204 = vmatpush2.bf16.msra.mxu0 0
        %1205 = vmatprep.subr.bf16.mxu0 0
        %1206 = vmatpush2.bf16.msra.mxu0 0
        %1207 = vmatprep.subr.bf16.mxu0 0
        %1208 = vmatpush2.bf16.msra.mxu0 0
        %1209 = vmatprep.subr.bf16.mxu0 0
        %1210 = vmatpush2.bf16.msra.mxu0 0
        %1211 = vmatprep.subr.bf16.mxu0 0
        %1212 = vmatpush2.bf16.msra.mxu0 0
        %1213 = vmatprep.subr.bf16.mxu0 0
        %1214 = vmatpush2.bf16.msra.mxu0 0
        %1215 = vmatprep.mubr.bf16.mxu0 0
        %1216 = vmatmul.mubr.bf16.gmra.mxu0 %v1181
        %v1217 = vpop.f32.mrf.mxu0
        %v1218 = vadd.f32 0.0, %v1217
        %v1219 = vpop.f32.mrf.mxu0
        %v1220 = vpop.f32.mrf.mxu0
        %v1221 = vadd.f32 0.0, %v1220
        %v1222 = vpop.f32.mrf.mxu0
        %1223 = vdwg.mxu0
        %v1232 = vunpack.c.l.b16 %v1085
        %v1233 = vunpack.c.l.b16 %v1086
        %v1234 = vunpack.c.l.b16 %v1087
        %v1235 = vunpack.c.l.b16 %v1088
        %v1236 = vunpack.c.l.b16 %v1089
        %v1237 = vunpack.c.l.b16 %v1090
        %v1238 = vunpack.c.l.b16 %v1091
        %v1239 = vunpack.c.l.b16 %v1092
        %v1240 = vpack.c.b16 %v1233, %v1232
        %v1241 = vpack.c.b16 %v1235, %v1234
        %v1242 = vpack.c.b16 %v1237, %v1236
        %v1243 = vpack.c.b16 %v1239, %v1238
        %v1249 = vsel %vm1179, %v1084, 0
        %1251 = vmatprep.subr.bf16.mxu0 0
        %1252 = vmatpush1.bf16.msra.mxu0 0
        %1253 = vmatprep.subr.bf16.mxu0 0
        %1254 = vmatpush1.bf16.msra.mxu0 0
        %1255 = vmatprep.subr.bf16.mxu0 0
        %1256 = vmatpush1.bf16.msra.mxu0 0
        %1257 = vmatprep.subr.bf16.mxu0 0
        %1258 = vmatpush1.bf16.msra.mxu0 0
        %1259 = vmatprep.subr.bf16.mxu0 0
        %1260 = vmatpush1.bf16.msra.mxu0 %v1243
        %1261 = vmatprep.subr.bf16.mxu0 0
        %1262 = vmatpush1.bf16.msra.mxu0 %v1242
        %1263 = vmatprep.subr.bf16.mxu0 0
        %1264 = vmatpush1.bf16.msra.mxu0 %v1241
        %1265 = vmatprep.subr.bf16.mxu0 0
        %1266 = vmatpush1.bf16.msra.mxu0 %v1240
        %1267 = vmatprep.subr.bf16.mxu0 0
        %1268 = vmatpush2.bf16.msra.mxu0 0
        %1269 = vmatprep.subr.bf16.mxu0 0
        %1270 = vmatpush2.bf16.msra.mxu0 0
        %1271 = vmatprep.subr.bf16.mxu0 0
        %1272 = vmatpush2.bf16.msra.mxu0 0
        %1273 = vmatprep.subr.bf16.mxu0 0
        %1274 = vmatpush2.bf16.msra.mxu0 0
        %1275 = vmatprep.subr.bf16.mxu0 0
        %1276 = vmatpush2.bf16.msra.mxu0 0
        %1277 = vmatprep.subr.bf16.mxu0 0
        %1278 = vmatpush2.bf16.msra.mxu0 0
        %1279 = vmatprep.subr.bf16.mxu0 0
        %1280 = vmatpush2.bf16.msra.mxu0 0
        %1281 = vmatprep.subr.bf16.mxu0 0
        %1282 = vmatpush2.bf16.msra.mxu0 0
        %1283 = vmatprep.mubr.bf16.mxu0 0
        %1284 = vmatmul.mubr.bf16.gmra.mxu0 %v1249
        %v1285 = vpop.f32.mrf.mxu0
        %v1286 = vadd.f32 %v1218, %v1285
        %v1287 = vpop.f32.mrf.mxu0
        %v1288 = vpop.f32.mrf.mxu0
        %v1289 = vadd.f32 %v1221, %v1288
        %v1290 = vpop.f32.mrf.mxu0
        %1291 = vdwg.mxu0
        %s1292 = scalar_lea.vmem [#allocation4], 16
        %v1293 = vld [vmem:[%s1292] sm:$0xf]
        %v1294 = vld [vmem:[%s1292 + $0x4] sm:$0xf]
        %v1297 = vunpack.c.l.b16 %v1293
        %v1298 = vunpack.c.l.b16 %v1294
        %v1299 = vpack.c.b16 %v1298, %v1297
        %v1301 = vsel %vm1039, %v1299, 0
        %1303 = vmatprep.subr.bf16.mxu0 0
        %1304 = vmatpush1.bf16.msra.mxu0 0
        %1305 = vmatprep.subr.bf16.mxu0 0
        %1306 = vmatpush1.bf16.msra.mxu0 0
        %1307 = vmatprep.subr.bf16.mxu0 0
        %1308 = vmatpush1.bf16.msra.mxu0 0
        %1309 = vmatprep.subr.bf16.mxu0 0
        %1310 = vmatpush1.bf16.msra.mxu0 0
        %1311 = vmatprep.subr.bf16.mxu0 0
        %1312 = vmatpush1.bf16.msra.mxu0 0
        %1313 = vmatprep.subr.bf16.mxu0 0
        %1314 = vmatpush1.bf16.msra.mxu0 0
        %1315 = vmatprep.subr.bf16.mxu0 0
        %1316 = vmatpush1.bf16.msra.mxu0 %v1036
        %1317 = vmatprep.subr.bf16.mxu0 0
        %1318 = vmatpush1.bf16.msra.mxu0 %v1035
        %1319 = vmatprep.subr.bf16.mxu0 0
        %1320 = vmatpush2.bf16.msra.mxu0 0
        %1321 = vmatprep.subr.bf16.mxu0 0
        %1322 = vmatpush2.bf16.msra.mxu0 0
        %1323 = vmatprep.subr.bf16.mxu0 0
        %1324 = vmatpush2.bf16.msra.mxu0 0
        %1325 = vmatprep.subr.bf16.mxu0 0
        %1326 = vmatpush2.bf16.msra.mxu0 0
        %1327 = vmatprep.subr.bf16.mxu0 0
        %1328 = vmatpush2.bf16.msra.mxu0 0
        %1329 = vmatprep.subr.bf16.mxu0 0
        %1330 = vmatpush2.bf16.msra.mxu0 0
        %1331 = vmatprep.subr.bf16.mxu0 0
        %1332 = vmatpush2.bf16.msra.mxu0 0
        %1333 = vmatprep.subr.bf16.mxu0 0
        %1334 = vmatpush2.bf16.msra.mxu0 0
        %1335 = vmatprep.mubr.bf16.mxu0 0
        %1336 = vmatmul.mubr.bf16.gmra.mxu0 %v1301
        %v1337 = vpop.f32.mrf.mxu0
        %v1338 = vadd.f32 0.0, %v1337
        %v1339 = vpop.f32.mrf.mxu0
        %v1340 = vpop.f32.mrf.mxu0
        %v1341 = vadd.f32 0.0, %v1340
        %v1342 = vpop.f32.mrf.mxu0
        %1343 = vdwg.mxu0
        %v1344 = vpack.c.bf16 %v1341, %v1338
        %s1345 = scalar_lea.vmem [#allocation2], 64
        %v1346 = vld [vmem:[%s1345] sm:$0xf]
        %v1347 = vld [vmem:[%s1345 + $0x4] sm:$0xf]
        %v1348 = vld [vmem:[%s1345 + $0x8] sm:$0xf]
        %v1349 = vld [vmem:[%s1345 + $0xc] sm:$0xf]
        %v1350 = vld [vmem:[%s1345 + $0x10] sm:$0xf]
        %v1351 = vld [vmem:[%s1345 + $0x14] sm:$0xf]
        %v1352 = vld [vmem:[%s1345 + $0x18] sm:$0xf]
        %v1353 = vld [vmem:[%s1345 + $0x1c] sm:$0xf]
        %v1362 = vunpack.c.l.b16 %v1346
        %v1363 = vunpack.c.l.b16 %v1347
        %v1364 = vunpack.c.l.b16 %v1348
        %v1365 = vunpack.c.l.b16 %v1349
        %v1366 = vunpack.c.l.b16 %v1350
        %v1367 = vunpack.c.l.b16 %v1351
        %v1368 = vunpack.c.l.b16 %v1352
        %v1369 = vunpack.c.l.b16 %v1353
        %v1370 = vpack.c.b16 %v1363, %v1362
        %v1371 = vpack.c.b16 %v1365, %v1364
        %v1372 = vpack.c.b16 %v1367, %v1366
        %v1373 = vpack.c.b16 %v1369, %v1368
        %v1379 = vsel %vm1179, %v1344, 0
        %1381 = vmatprep.subr.bf16.mxu0 0
        %1382 = vmatpush1.bf16.msra.mxu0 0
        %1383 = vmatprep.subr.bf16.mxu0 0
        %1384 = vmatpush1.bf16.msra.mxu0 0
        %1385 = vmatprep.subr.bf16.mxu0 0
        %1386 = vmatpush1.bf16.msra.mxu0 0
        %1387 = vmatprep.subr.bf16.mxu0 0
        %1388 = vmatpush1.bf16.msra.mxu0 0
        %1389 = vmatprep.subr.bf16.mxu0 0
        %1390 = vmatpush1.bf16.msra.mxu0 %v1373
        %1391 = vmatprep.subr.bf16.mxu0 0
        %1392 = vmatpush1.bf16.msra.mxu0 %v1372
        %1393 = vmatprep.subr.bf16.mxu0 0
        %1394 = vmatpush1.bf16.msra.mxu0 %v1371
        %1395 = vmatprep.subr.bf16.mxu0 0
        %1396 = vmatpush1.bf16.msra.mxu0 %v1370
        %1397 = vmatprep.subr.bf16.mxu0 0
        %1398 = vmatpush2.bf16.msra.mxu0 0
        %1399 = vmatprep.subr.bf16.mxu0 0
        %1400 = vmatpush2.bf16.msra.mxu0 0
        %1401 = vmatprep.subr.bf16.mxu0 0
        %1402 = vmatpush2.bf16.msra.mxu0 0
        %1403 = vmatprep.subr.bf16.mxu0 0
        %1404 = vmatpush2.bf16.msra.mxu0 0
        %1405 = vmatprep.subr.bf16.mxu0 0
        %1406 = vmatpush2.bf16.msra.mxu0 0
        %1407 = vmatprep.subr.bf16.mxu0 0
        %1408 = vmatpush2.bf16.msra.mxu0 0
        %1409 = vmatprep.subr.bf16.mxu0 0
        %1410 = vmatpush2.bf16.msra.mxu0 0
        %1411 = vmatprep.subr.bf16.mxu0 0
        %1412 = vmatpush2.bf16.msra.mxu0 0
        %1413 = vmatprep.mubr.bf16.mxu0 0
        %1414 = vmatmul.mubr.bf16.gmra.mxu0 %v1379
        %v1415 = vpop.f32.mrf.mxu0
        %v1416 = vadd.f32 0.0, %v1415
        %v1417 = vpop.f32.mrf.mxu0
        %v1418 = vpop.f32.mrf.mxu0
        %v1419 = vadd.f32 0.0, %v1418
        %v1420 = vpop.f32.mrf.mxu0
        %1421 = vdwg.mxu0
        %v1422 = vadd.f32 %v1286, %v1416
        %v1423 = vadd.f32 %v1289, %v1419
        %s1424 = scalar_lea.vmem [#allocation4], 24
        %v1425 = vld [vmem:[%s1424] sm:$0xf]
        %v1426 = vld [vmem:[%s1424 + $0x4] sm:$0xf]
        %v1429 = vunpack.c.l.b16 %v1425
        %v1430 = vunpack.c.l.b16 %v1426
        %v1431 = vpack.c.b16 %v1430, %v1429
        %v1433 = vsel %vm1039, %v1431, 0
        %1435 = vmatprep.subr.bf16.mxu0 0
        %1436 = vmatpush1.bf16.msra.mxu0 0
        %1437 = vmatprep.subr.bf16.mxu0 0
        %1438 = vmatpush1.bf16.msra.mxu0 0
        %1439 = vmatprep.subr.bf16.mxu0 0
        %1440 = vmatpush1.bf16.msra.mxu0 0
        %1441 = vmatprep.subr.bf16.mxu0 0
        %1442 = vmatpush1.bf16.msra.mxu0 0
        %1443 = vmatprep.subr.bf16.mxu0 0
        %1444 = vmatpush1.bf16.msra.mxu0 0
        %1445 = vmatprep.subr.bf16.mxu0 0
        %1446 = vmatpush1.bf16.msra.mxu0 0
        %1447 = vmatprep.subr.bf16.mxu0 0
        %1448 = vmatpush1.bf16.msra.mxu0 %v1036
        %1449 = vmatprep.subr.bf16.mxu0 0
        %1450 = vmatpush1.bf16.msra.mxu0 %v1035
        %1451 = vmatprep.subr.bf16.mxu0 0
        %1452 = vmatpush2.bf16.msra.mxu0 0
        %1453 = vmatprep.subr.bf16.mxu0 0
        %1454 = vmatpush2.bf16.msra.mxu0 0
        %1455 = vmatprep.subr.bf16.mxu0 0
        %1456 = vmatpush2.bf16.msra.mxu0 0
        %1457 = vmatprep.subr.bf16.mxu0 0
        %1458 = vmatpush2.bf16.msra.mxu0 0
        %1459 = vmatprep.subr.bf16.mxu0 0
        %1460 = vmatpush2.bf16.msra.mxu0 0
        %1461 = vmatprep.subr.bf16.mxu0 0
        %1462 = vmatpush2.bf16.msra.mxu0 0
        %1463 = vmatprep.subr.bf16.mxu0 0
        %1464 = vmatpush2.bf16.msra.mxu0 0
        %1465 = vmatprep.subr.bf16.mxu0 0
        %1466 = vmatpush2.bf16.msra.mxu0 0
        %1467 = vmatprep.mubr.bf16.mxu0 0
        %1468 = vmatmul.mubr.bf16.gmra.mxu0 %v1433
        %v1469 = vpop.f32.mrf.mxu0
        %v1470 = vadd.f32 0.0, %v1469
        %v1471 = vpop.f32.mrf.mxu0
        %v1472 = vpop.f32.mrf.mxu0
        %v1473 = vadd.f32 0.0, %v1472
        %v1474 = vpop.f32.mrf.mxu0
        %1475 = vdwg.mxu0
        %v1476 = vpack.c.bf16 %v1473, %v1470
        %s1477 = scalar_lea.vmem [#allocation2], 96
        %v1478 = vld [vmem:[%s1477] sm:$0xf]
        %v1479 = vld [vmem:[%s1477 + $0x4] sm:$0xf]
        %v1480 = vld [vmem:[%s1477 + $0x8] sm:$0xf]
        %v1481 = vld [vmem:[%s1477 + $0xc] sm:$0xf]
        %v1482 = vld [vmem:[%s1477 + $0x10] sm:$0xf]
        %v1483 = vld [vmem:[%s1477 + $0x14] sm:$0xf]
        %v1484 = vld [vmem:[%s1477 + $0x18] sm:$0xf]
        %v1485 = vld [vmem:[%s1477 + $0x1c] sm:$0xf]
        %v1494 = vunpack.c.l.b16 %v1478
        %v1495 = vunpack.c.l.b16 %v1479
        %v1496 = vunpack.c.l.b16 %v1480
        %v1497 = vunpack.c.l.b16 %v1481
        %v1498 = vunpack.c.l.b16 %v1482
        %v1499 = vunpack.c.l.b16 %v1483
        %v1500 = vunpack.c.l.b16 %v1484
        %v1501 = vunpack.c.l.b16 %v1485
        %v1502 = vpack.c.b16 %v1495, %v1494
        %v1503 = vpack.c.b16 %v1497, %v1496
        %v1504 = vpack.c.b16 %v1499, %v1498
        %v1505 = vpack.c.b16 %v1501, %v1500
        %v1511 = vsel %vm1179, %v1476, 0
        %1513 = vmatprep.subr.bf16.mxu0 0
        %1514 = vmatpush1.bf16.msra.mxu0 0
        %1515 = vmatprep.subr.bf16.mxu0 0
        %1516 = vmatpush1.bf16.msra.mxu0 0
        %1517 = vmatprep.subr.bf16.mxu0 0
        %1518 = vmatpush1.bf16.msra.mxu0 0
        %1519 = vmatprep.subr.bf16.mxu0 0
        %1520 = vmatpush1.bf16.msra.mxu0 0
        %1521 = vmatprep.subr.bf16.mxu0 0
        %1522 = vmatpush1.bf16.msra.mxu0 %v1505
        %1523 = vmatprep.subr.bf16.mxu0 0
        %1524 = vmatpush1.bf16.msra.mxu0 %v1504
        %1525 = vmatprep.subr.bf16.mxu0 0
        %1526 = vmatpush1.bf16.msra.mxu0 %v1503
        %1527 = vmatprep.subr.bf16.mxu0 0
        %1528 = vmatpush1.bf16.msra.mxu0 %v1502
        %1529 = vmatprep.subr.bf16.mxu0 0
        %1530 = vmatpush2.bf16.msra.mxu0 0
        %1531 = vmatprep.subr.bf16.mxu0 0
        %1532 = vmatpush2.bf16.msra.mxu0 0
        %1533 = vmatprep.subr.bf16.mxu0 0
        %1534 = vmatpush2.bf16.msra.mxu0 0
        %1535 = vmatprep.subr.bf16.mxu0 0
        %1536 = vmatpush2.bf16.msra.mxu0 0
        %1537 = vmatprep.subr.bf16.mxu0 0
        %1538 = vmatpush2.bf16.msra.mxu0 0
        %1539 = vmatprep.subr.bf16.mxu0 0
        %1540 = vmatpush2.bf16.msra.mxu0 0
        %1541 = vmatprep.subr.bf16.mxu0 0
        %1542 = vmatpush2.bf16.msra.mxu0 0
        %1543 = vmatprep.subr.bf16.mxu0 0
        %1544 = vmatpush2.bf16.msra.mxu0 0
        %1545 = vmatprep.mubr.bf16.mxu0 0
        %1546 = vmatmul.mubr.bf16.gmra.mxu0 %v1511
        %v1547 = vpop.f32.mrf.mxu0
        %v1548 = vadd.f32 0.0, %v1547
        %v1549 = vpop.f32.mrf.mxu0
        %v1550 = vpop.f32.mrf.mxu0
        %v1551 = vadd.f32 0.0, %v1550
        %v1552 = vpop.f32.mrf.mxu0
        %1553 = vdwg.mxu0
        %v1554 = vadd.f32 %v1422, %v1548
        %v1555 = vadd.f32 %v1423, %v1551
        %v1556 = vadd.f32 %v1554, %v1555
        %v1557 = vrot.slane %v1556, 4
        %v1558 = vadd.f32 %v1556, %v1557
        %v1559 = vrot.slane %v1558, 2
        %v1560 = vadd.f32 %v1558, %v1559
        %v1561 = vrot.slane %v1560, 1
        %v1562 = vadd.f32 %v1560, %v1561
        %v1563 = vmul.f32 %v1554, %v1554
        %v1564 = vmul.f32 %v1555, %v1555
        %v1565 = vadd.f32 %v1563, %v1564
        %v1566 = vrot.slane %v1565, 4
        %v1567 = vadd.f32 %v1565, %v1566
        %v1568 = vrot.slane %v1567, 2
        %v1569 = vadd.f32 %v1567, %v1568
        %v1570 = vrot.slane %v1569, 1
        %v1571 = vadd.f32 %v1569, %v1570
        %vm1572 = vcmask 1040384
        %v1573 = vsel %vm1572, %v1562, %v1571
        %v1574 = vld [vmem:[#allocation7] sm:$0xff]
        %v1575 = vld [vmem:[#allocation7 + $0x8] sm:$0xff]
        %v1576 = vld [vmem:[#allocation7 + $0x10] sm:$0xff]
        %v1577 = vld [vmem:[#allocation7 + $0x18] sm:$0xff]
        %v1578 = vld [vmem:[#allocation7 + $0x20] sm:$0xff]
        %v1579 = vld [vmem:[#allocation7 + $0x28] sm:$0xff]
        %v1580 = vld [vmem:[#allocation7 + $0x30] sm:$0xff]
        %v1581 = vld [vmem:[#allocation7 + $0x38] sm:$0xff]
        %v1582 = vld [vmem:[#allocation7 + $0x40] sm:$0xff]
        %v1583 = vld [vmem:[#allocation7 + $0x48] sm:$0xff]
        %v1584 = vld [vmem:[#allocation7 + $0x50] sm:$0xff]
        %v1585 = vld [vmem:[#allocation7 + $0x58] sm:$0xff]
        %v1586 = vld [vmem:[#allocation7 + $0x60] sm:$0xff]
        %v1587 = vld [vmem:[#allocation7 + $0x68] sm:$0xff]
        %v1588 = vld [vmem:[#allocation7 + $0x70] sm:$0xff]
        %v1589 = vld [vmem:[#allocation7 + $0x78] sm:$0xff]
        %1590 = vmatprep.subr.mxu0 0.0
        %1591 = vmatpush1.msra.mxu0 %v1589
        %1592 = vmatprep.subr.mxu0 0.0
        %1593 = vmatpush1.msra.mxu0 %v1588
        %1594 = vmatprep.subr.mxu0 0.0
        %1595 = vmatpush1.msra.mxu0 %v1587
        %1596 = vmatprep.subr.mxu0 0.0
        %1597 = vmatpush1.msra.mxu0 %v1586
        %1598 = vmatprep.subr.mxu0 0.0
        %1599 = vmatpush1.msra.mxu0 %v1585
        %1600 = vmatprep.subr.mxu0 0.0
        %1601 = vmatpush1.msra.mxu0 %v1584
        %1602 = vmatprep.subr.mxu0 0.0
        %1603 = vmatpush1.msra.mxu0 %v1583
        %1604 = vmatprep.subr.mxu0 0.0
        %1605 = vmatpush1.msra.mxu0 %v1582
        %1606 = vmatprep.subr.mxu0 0.0
        %1607 = vmatpush1.msra.mxu0 %v1581
        %1608 = vmatprep.subr.mxu0 0.0
        %1609 = vmatpush1.msra.mxu0 %v1580
        %1610 = vmatprep.subr.mxu0 0.0
        %1611 = vmatpush1.msra.mxu0 %v1579
        %1612 = vmatprep.subr.mxu0 0.0
        %1613 = vmatpush1.msra.mxu0 %v1578
        %1614 = vmatprep.subr.mxu0 0.0
        %1615 = vmatpush1.msra.mxu0 %v1577
        %1616 = vmatprep.subr.mxu0 0.0
        %1617 = vmatpush1.msra.mxu0 %v1576
        %1618 = vmatprep.subr.mxu0 0.0
        %1619 = vmatpush1.msra.mxu0 %v1575
        %1620 = vmatprep.subr.mxu0 0.0
        %1621 = vmatpush1.msra.mxu0 %v1574
        %1622 = vmatprep.subr.mxu0 0.0
        %1623 = vmatpush2.msra.mxu0 0.0
        %1624 = vmatprep.subr.mxu0 0.0
        %1625 = vmatpush2.msra.mxu0 0.0
        %1626 = vmatprep.subr.mxu0 0.0
        %1627 = vmatpush2.msra.mxu0 0.0
        %1628 = vmatprep.subr.mxu0 0.0
        %1629 = vmatpush2.msra.mxu0 0.0
        %1630 = vmatprep.subr.mxu0 0.0
        %1631 = vmatpush2.msra.mxu0 0.0
        %1632 = vmatprep.subr.mxu0 0.0
        %1633 = vmatpush2.msra.mxu0 0.0
        %1634 = vmatprep.subr.mxu0 0.0
        %1635 = vmatpush2.msra.mxu0 0.0
        %1636 = vmatprep.subr.mxu0 0.0
        %1637 = vmatpush2.msra.mxu0 0.0
        %1638 = vmatprep.subr.mxu0 0.0
        %1639 = vmatpush2.msra.mxu0 0.0
        %1640 = vmatprep.subr.mxu0 0.0
        %1641 = vmatpush2.msra.mxu0 0.0
        %1642 = vmatprep.subr.mxu0 0.0
        %1643 = vmatpush2.msra.mxu0 0.0
        %1644 = vmatprep.subr.mxu0 0.0
        %1645 = vmatpush2.msra.mxu0 0.0
        %1646 = vmatprep.subr.mxu0 0.0
        %1647 = vmatpush2.msra.mxu0 0.0
        %1648 = vmatprep.subr.mxu0 0.0
        %1649 = vmatpush2.msra.mxu0 0.0
        %1650 = vmatprep.subr.mxu0 0.0
        %1651 = vmatpush2.msra.mxu0 0.0
        %1652 = vmatprep.subr.mxu0 0.0
        %1653 = vmatpush2.msra.mxu0 0.0
        %1654 = vmatprep.mubr.f32.mxu0 0.0
        %1655 = vmatmul.mubr.f32.gmra.mxu0 %v1573
        %v1656 = vpop.f32.mrf.mxu0
        %v1657 = vadd.f32 0.0, %v1656
        %v1658 = vpop.f32.mrf.mxu0
        %1659 = vdwg.mxu0
        %v1660 = vmul.f32 %v1657, 0.00390625
        %v1661 = vmul.f32 %v1660, %v1660
        %v1663 = vrot.slane %v1661, 7
        %v1665 = vsub.f32 %v1660, %v1663
        %v1666 = vld [vmem:[#allocation6] sm:$0x1]
        %v1667 = vld [vmem:[#allocation6 + $0x1] sm:$0x1]
        %v1668 = vld [vmem:[#allocation6 + $0x2] sm:$0x1]
        %v1669 = vadd.f32 %v1665, 1e-05
        %v1670 = vrsqrt.pop %v1669
        %v1672 = vrot.slane %v1670, 1
        %v1674 = vmul.f32 %v1666, %v1672
        %v1675 = vmul.f32 %v1660, %v1674
        %v1676 = vsub.f32 %v1667, %v1675
        %v1678 = vrot.slane %v1676, 7
        %v1681 = vrot.slane %v1668, 6
        %v1683 = vsel %vm1572, %v1674, %v1678
        %vm1684 = vcmask 1041408
        %v1685 = vsel %vm1684, %v1683, %v1681
        %v1686 = vld [vmem:[#allocation9] sm:$0xff]
        %vm1687 = vcmask 64512
        %v1689 = vsel %vm1687, %v1685, 0
        %1691 = vmatprep.subr.mxu0 0.0
        %1692 = vmatpush1.msra.mxu0 0.0
        %1693 = vmatprep.subr.mxu0 0.0
        %1694 = vmatpush1.msra.mxu0 0.0
        %1695 = vmatprep.subr.mxu0 0.0
        %1696 = vmatpush1.msra.mxu0 0.0
        %1697 = vmatprep.subr.mxu0 0.0
        %1698 = vmatpush1.msra.mxu0 0.0
        %1699 = vmatprep.subr.mxu0 0.0
        %1700 = vmatpush1.msra.mxu0 0.0
        %1701 = vmatprep.subr.mxu0 0.0
        %1702 = vmatpush1.msra.mxu0 0.0
        %1703 = vmatprep.subr.mxu0 0.0
        %1704 = vmatpush1.msra.mxu0 0.0
        %1705 = vmatprep.subr.mxu0 0.0
        %1706 = vmatpush1.msra.mxu0 0.0
        %1707 = vmatprep.subr.mxu0 0.0
        %1708 = vmatpush1.msra.mxu0 0.0
        %1709 = vmatprep.subr.mxu0 0.0
        %1710 = vmatpush1.msra.mxu0 0.0
        %1711 = vmatprep.subr.mxu0 0.0
        %1712 = vmatpush1.msra.mxu0 0.0
        %1713 = vmatprep.subr.mxu0 0.0
        %1714 = vmatpush1.msra.mxu0 0.0
        %1715 = vmatprep.subr.mxu0 0.0
        %1716 = vmatpush1.msra.mxu0 0.0
        %1717 = vmatprep.subr.mxu0 0.0
        %1718 = vmatpush1.msra.mxu0 0.0
        %1719 = vmatprep.subr.mxu0 0.0
        %1720 = vmatpush1.msra.mxu0 0.0
        %1721 = vmatprep.subr.mxu0 0.0
        %1722 = vmatpush1.msra.mxu0 %v1686
        %1723 = vmatprep.subr.mxu0 0.0
        %1724 = vmatpush2.msra.mxu0 0.0
        %1725 = vmatprep.subr.mxu0 0.0
        %1726 = vmatpush2.msra.mxu0 0.0
        %1727 = vmatprep.subr.mxu0 0.0
        %1728 = vmatpush2.msra.mxu0 0.0
        %1729 = vmatprep.subr.mxu0 0.0
        %1730 = vmatpush2.msra.mxu0 0.0
        %1731 = vmatprep.subr.mxu0 0.0
        %1732 = vmatpush2.msra.mxu0 0.0
        %1733 = vmatprep.subr.mxu0 0.0
        %1734 = vmatpush2.msra.mxu0 0.0
        %1735 = vmatprep.subr.mxu0 0.0
        %1736 = vmatpush2.msra.mxu0 0.0
        %1737 = vmatprep.subr.mxu0 0.0
        %1738 = vmatpush2.msra.mxu0 0.0
        %1739 = vmatprep.subr.mxu0 0.0
        %1740 = vmatpush2.msra.mxu0 0.0
        %1741 = vmatprep.subr.mxu0 0.0
        %1742 = vmatpush2.msra.mxu0 0.0
        %1743 = vmatprep.subr.mxu0 0.0
        %1744 = vmatpush2.msra.mxu0 0.0
        %1745 = vmatprep.subr.mxu0 0.0
        %1746 = vmatpush2.msra.mxu0 0.0
        %1747 = vmatprep.subr.mxu0 0.0
        %1748 = vmatpush2.msra.mxu0 0.0
        %1749 = vmatprep.subr.mxu0 0.0
        %1750 = vmatpush2.msra.mxu0 0.0
        %1751 = vmatprep.subr.mxu0 0.0
        %1752 = vmatpush2.msra.mxu0 0.0
        %1753 = vmatprep.subr.mxu0 0.0
        %1754 = vmatpush2.msra.mxu0 0.0
        %1755 = vmatprep.mubr.f32.mxu0 0.0
        %1756 = vmatmul.mubr.f32.gmra.mxu0 %v1689
        %v1757 = vpop.f32.mrf.mxu0
        %v1758 = vadd.f32 0.0, %v1757
        %v1759 = vpop.f32.mrf.mxu0
        %1760 = vdwg.mxu0
        %v1761 = vlaneseq
        %v1762 = vshrl.u32 %v1761, 7
        %v1763 = vsub.s32 0, %v1762
        %v1764 = vrot.slane %v1758, %v1763
        %v1765 = vmul.f32 %v1554, %v1764
        %v1766 = vmul.f32 %v1555, %v1764
        %v1767 = vlaneseq
        %v1768 = vshrl.u32 %v1767, 7
        %v1769 = vsub.s32 1, %v1768
        %v1770 = vrot.slane %v1758, %v1769
        %v1771 = vadd.f32 %v1765, %v1770
        %v1772 = vadd.f32 %v1766, %v1770
        %vm1773 = vcmp.ge.f32.partialorder %v1771, 0.0
        %vm1774 = vcmp.ge.f32.partialorder %v1772, 0.0
        %v1775 = vlaneseq
        %v1776 = vshrl.u32 %v1775, 7
        %v1777 = vsub.s32 2, %v1776
        %v1778 = vrot.slane %v1758, %v1777
        %v1779 = vmul.f32 %v1778, %v1771
        %v1780 = vmul.f32 %v1778, %v1772
        %v1781 = vsel %vm1773, %v1771, %v1779
        %v1782 = vsel %vm1774, %v1772, %v1780
        %v1783 = vpack.c.bf16 %v1782, %v1781
        %v1784 = vld [vmem:[#allocation12] sm:$0xf]
        %vm1785 = vcmask 130048
        %v1787 = vsel %vm1785, %v1784, 0
        %1789 = vmatprep.subr.bf16.mxu0 0
        %1790 = vmatpush1.bf16.msra.mxu0 0
        %1791 = vmatprep.subr.bf16.mxu0 0
        %1792 = vmatpush1.bf16.msra.mxu0 0
        %1793 = vmatprep.subr.bf16.mxu0 0
        %1794 = vmatpush1.bf16.msra.mxu0 0
        %1795 = vmatprep.subr.bf16.mxu0 0
        %1796 = vmatpush1.bf16.msra.mxu0 0
        %1797 = vmatprep.subr.bf16.mxu0 0
        %1798 = vmatpush1.bf16.msra.mxu0 0
        %1799 = vmatprep.subr.bf16.mxu0 0
        %1800 = vmatpush1.bf16.msra.mxu0 0
        %1801 = vmatprep.subr.bf16.mxu0 0
        %1802 = vmatpush1.bf16.msra.mxu0 0
        %1803 = vmatprep.subr.bf16.mxu0 0
        %1804 = vmatpush1.bf16.msra.mxu0 %v1783
        %1805 = vmatprep.subr.bf16.mxu0 0
        %1806 = vmatpush2.bf16.msra.mxu0 0
        %1807 = vmatprep.subr.bf16.mxu0 0
        %1808 = vmatpush2.bf16.msra.mxu0 0
        %1809 = vmatprep.subr.bf16.mxu0 0
        %1810 = vmatpush2.bf16.msra.mxu0 0
        %1811 = vmatprep.subr.bf16.mxu0 0
        %1812 = vmatpush2.bf16.msra.mxu0 0
        %1813 = vmatprep.subr.bf16.mxu0 0
        %1814 = vmatpush2.bf16.msra.mxu0 0
        %1815 = vmatprep.subr.bf16.mxu0 0
        %1816 = vmatpush2.bf16.msra.mxu0 0
        %1817 = vmatprep.subr.bf16.mxu0 0
        %1818 = vmatpush2.bf16.msra.mxu0 0
        %1819 = vmatprep.subr.bf16.mxu0 0
        %1820 = vmatpush2.bf16.msra.mxu0 0
        %1821 = vmatprep.mubr.bf16.mxu0 0
        %1822 = vmatmul.mubr.bf16.gmra.mxu0 %v1787
        %v1823 = vpop.f32.mrf.mxu0
        %v1824 = vadd.f32 0.0, %v1823
        %v1825 = vpop.f32.mrf.mxu0
        %v1826 = vpop.f32.mrf.mxu0
        %v1827 = vpop.f32.mrf.mxu0
        %1828 = vdwg.mxu0
        %v1829 = vpack.c.bf16 %v1824, %v1824
        %v1830 = vld [vmem:[#allocation10] sm:$0xf]
        %v1831 = vld [vmem:[#allocation10 + $0x4] sm:$0xf]
        %v1832 = vld [vmem:[#allocation10 + $0x8] sm:$0xf]
        %v1833 = vld [vmem:[#allocation10 + $0xc] sm:$0xf]
        %v1834 = vld [vmem:[#allocation10 + $0x10] sm:$0xf]
        %v1835 = vld [vmem:[#allocation10 + $0x14] sm:$0xf]
        %v1836 = vld [vmem:[#allocation10 + $0x18] sm:$0xf]
        %v1837 = vld [vmem:[#allocation10 + $0x1c] sm:$0xf]
        %v1838 = vld [vmem:[#allocation10 + $0x20] sm:$0xf]
        %v1839 = vld [vmem:[#allocation10 + $0x24] sm:$0xf]
        %v1840 = vld [vmem:[#allocation10 + $0x28] sm:$0xf]
        %v1841 = vld [vmem:[#allocation10 + $0x2c] sm:$0xf]
        %v1842 = vld [vmem:[#allocation10 + $0x30] sm:$0xf]
        %v1843 = vld [vmem:[#allocation10 + $0x34] sm:$0xf]
        %v1844 = vld [vmem:[#allocation10 + $0x38] sm:$0xf]
        %v1845 = vld [vmem:[#allocation10 + $0x3c] sm:$0xf]
        %s1846 = scalar_lea.vmem [#allocation12], 4
        %v1847 = vld [vmem:[%s1846] sm:$0xf]
        %v1849 = vsel %vm1785, %v1847, 0
        %1851 = vmatprep.subr.bf16.mxu0 0
        %1852 = vmatpush1.bf16.msra.mxu0 0
        %1853 = vmatprep.subr.bf16.mxu0 0
        %1854 = vmatpush1.bf16.msra.mxu0 0
        %1855 = vmatprep.subr.bf16.mxu0 0
        %1856 = vmatpush1.bf16.msra.mxu0 0
        %1857 = vmatprep.subr.bf16.mxu0 0
        %1858 = vmatpush1.bf16.msra.mxu0 0
        %1859 = vmatprep.subr.bf16.mxu0 0
        %1860 = vmatpush1.bf16.msra.mxu0 0
        %1861 = vmatprep.subr.bf16.mxu0 0
        %1862 = vmatpush1.bf16.msra.mxu0 0
        %1863 = vmatprep.subr.bf16.mxu0 0
        %1864 = vmatpush1.bf16.msra.mxu0 0
        %1865 = vmatprep.subr.bf16.mxu0 0
        %1866 = vmatpush1.bf16.msra.mxu0 %v1783
        %1867 = vmatprep.subr.bf16.mxu0 0
        %1868 = vmatpush2.bf16.msra.mxu0 0
        %1869 = vmatprep.subr.bf16.mxu0 0
        %1870 = vmatpush2.bf16.msra.mxu0 0
        %1871 = vmatprep.subr.bf16.mxu0 0
        %1872 = vmatpush2.bf16.msra.mxu0 0
        %1873 = vmatprep.subr.bf16.mxu0 0
        %1874 = vmatpush2.bf16.msra.mxu0 0
        %1875 = vmatprep.subr.bf16.mxu0 0
        %1876 = vmatpush2.bf16.msra.mxu0 0
        %1877 = vmatprep.subr.bf16.mxu0 0
        %1878 = vmatpush2.bf16.msra.mxu0 0
        %1879 = vmatprep.subr.bf16.mxu0 0
        %1880 = vmatpush2.bf16.msra.mxu0 0
        %1881 = vmatprep.subr.bf16.mxu0 0
        %1882 = vmatpush2.bf16.msra.mxu0 0
        %1883 = vmatprep.mubr.bf16.mxu0 0
        %1884 = vmatmul.mubr.bf16.gmra.mxu0 %v1849
        %v1885 = vpop.f32.mrf.mxu0
        %v1886 = vadd.f32 0.0, %v1885
        %v1887 = vpop.f32.mrf.mxu0
        %v1888 = vpop.f32.mrf.mxu0
        %v1889 = vpop.f32.mrf.mxu0
        %1890 = vdwg.mxu0
        %v1891 = vpack.c.bf16 %v1886, %v1886
        %s1892 = scalar_lea.vmem [#allocation10], 64
        %v1893 = vld [vmem:[%s1892] sm:$0xf]
        %v1894 = vld [vmem:[%s1892 + $0x4] sm:$0xf]
        %v1895 = vld [vmem:[%s1892 + $0x8] sm:$0xf]
        %v1896 = vld [vmem:[%s1892 + $0xc] sm:$0xf]
        %v1897 = vld [vmem:[%s1892 + $0x10] sm:$0xf]
        %v1898 = vld [vmem:[%s1892 + $0x14] sm:$0xf]
        %v1899 = vld [vmem:[%s1892 + $0x18] sm:$0xf]
        %v1900 = vld [vmem:[%s1892 + $0x1c] sm:$0xf]
        %v1901 = vld [vmem:[%s1892 + $0x20] sm:$0xf]
        %v1902 = vld [vmem:[%s1892 + $0x24] sm:$0xf]
        %v1903 = vld [vmem:[%s1892 + $0x28] sm:$0xf]
        %v1904 = vld [vmem:[%s1892 + $0x2c] sm:$0xf]
        %v1905 = vld [vmem:[%s1892 + $0x30] sm:$0xf]
        %v1906 = vld [vmem:[%s1892 + $0x34] sm:$0xf]
        %v1907 = vld [vmem:[%s1892 + $0x38] sm:$0xf]
        %v1908 = vld [vmem:[%s1892 + $0x3c] sm:$0xf]
        %v1925 = vunpack.c.l.b16 %v1893
        %v1926 = vunpack.c.l.b16 %v1894
        %v1927 = vunpack.c.l.b16 %v1895
        %v1928 = vunpack.c.l.b16 %v1896
        %v1929 = vunpack.c.l.b16 %v1897
        %v1930 = vunpack.c.l.b16 %v1898
        %v1931 = vunpack.c.l.b16 %v1899
        %v1932 = vunpack.c.l.b16 %v1900
        %v1933 = vunpack.c.l.b16 %v1901
        %v1934 = vunpack.c.l.b16 %v1902
        %v1935 = vunpack.c.l.b16 %v1903
        %v1936 = vunpack.c.l.b16 %v1904
        %v1937 = vunpack.c.l.b16 %v1905
        %v1938 = vunpack.c.l.b16 %v1906
        %v1939 = vunpack.c.l.b16 %v1907
        %v1940 = vunpack.c.l.b16 %v1908
        %v1941 = vpack.c.b16 %v1926, %v1925
        %v1942 = vpack.c.b16 %v1928, %v1927
        %v1943 = vpack.c.b16 %v1930, %v1929
        %v1944 = vpack.c.b16 %v1932, %v1931
        %v1945 = vpack.c.b16 %v1934, %v1933
        %v1946 = vpack.c.b16 %v1936, %v1935
        %v1947 = vpack.c.b16 %v1938, %v1937
        %v1948 = vpack.c.b16 %v1940, %v1939
        %1957 = vmatprep.subr.bf16.mxu0 0
        %1958 = vmatpush1.bf16.msra.mxu0 %v1948
        %1959 = vmatprep.subr.bf16.mxu0 0
        %1960 = vmatpush1.bf16.msra.mxu0 %v1947
        %1961 = vmatprep.subr.bf16.mxu0 0
        %1962 = vmatpush1.bf16.msra.mxu0 %v1946
        %1963 = vmatprep.subr.bf16.mxu0 0
        %1964 = vmatpush1.bf16.msra.mxu0 %v1945
        %1965 = vmatprep.subr.bf16.mxu0 0
        %1966 = vmatpush1.bf16.msra.mxu0 %v1944
        %1967 = vmatprep.subr.bf16.mxu0 0
        %1968 = vmatpush1.bf16.msra.mxu0 %v1943
        %1969 = vmatprep.subr.bf16.mxu0 0
        %1970 = vmatpush1.bf16.msra.mxu0 %v1942
        %1971 = vmatprep.subr.bf16.mxu0 0
        %1972 = vmatpush1.bf16.msra.mxu0 %v1941
        %1973 = vmatprep.subr.bf16.mxu0 0
        %1974 = vmatpush2.bf16.msra.mxu0 0
        %1975 = vmatprep.subr.bf16.mxu0 0
        %1976 = vmatpush2.bf16.msra.mxu0 0
        %1977 = vmatprep.subr.bf16.mxu0 0
        %1978 = vmatpush2.bf16.msra.mxu0 0
        %1979 = vmatprep.subr.bf16.mxu0 0
        %1980 = vmatpush2.bf16.msra.mxu0 0
        %1981 = vmatprep.subr.bf16.mxu0 0
        %1982 = vmatpush2.bf16.msra.mxu0 0
        %1983 = vmatprep.subr.bf16.mxu0 0
        %1984 = vmatpush2.bf16.msra.mxu0 0
        %1985 = vmatprep.subr.bf16.mxu0 0
        %1986 = vmatpush2.bf16.msra.mxu0 0
        %1987 = vmatprep.subr.bf16.mxu0 0
        %1988 = vmatpush2.bf16.msra.mxu0 0
        %1989 = vmatprep.mubr.bf16.mxu0 0
        %1990 = vmatmul.mubr.bf16.gmra.mxu0 %v1891
        %v1991 = vpop.f32.mrf.mxu0
        %v1992 = vadd.f32 0.0, %v1991
        %v1993 = vpop.f32.mrf.mxu0
        %v1994 = vpop.f32.mrf.mxu0
        %v1995 = vpop.f32.mrf.mxu0
        %1996 = vdwg.mxu0
        %v2013 = vunpack.c.l.b16 %v1830
        %v2014 = vunpack.c.l.b16 %v1831
        %v2015 = vunpack.c.l.b16 %v1832
        %v2016 = vunpack.c.l.b16 %v1833
        %v2017 = vunpack.c.l.b16 %v1834
        %v2018 = vunpack.c.l.b16 %v1835
        %v2019 = vunpack.c.l.b16 %v1836
        %v2020 = vunpack.c.l.b16 %v1837
        %v2021 = vunpack.c.l.b16 %v1838
        %v2022 = vunpack.c.l.b16 %v1839
        %v2023 = vunpack.c.l.b16 %v1840
        %v2024 = vunpack.c.l.b16 %v1841
        %v2025 = vunpack.c.l.b16 %v1842
        %v2026 = vunpack.c.l.b16 %v1843
        %v2027 = vunpack.c.l.b16 %v1844
        %v2028 = vunpack.c.l.b16 %v1845
        %v2029 = vpack.c.b16 %v2014, %v2013
        %v2030 = vpack.c.b16 %v2016, %v2015
        %v2031 = vpack.c.b16 %v2018, %v2017
        %v2032 = vpack.c.b16 %v2020, %v2019
        %v2033 = vpack.c.b16 %v2022, %v2021
        %v2034 = vpack.c.b16 %v2024, %v2023
        %v2035 = vpack.c.b16 %v2026, %v2025
        %v2036 = vpack.c.b16 %v2028, %v2027
        %2045 = vmatprep.subr.bf16.mxu0 0
        %2046 = vmatpush1.bf16.msra.mxu0 %v2036
        %2047 = vmatprep.subr.bf16.mxu0 0
        %2048 = vmatpush1.bf16.msra.mxu0 %v2035
        %2049 = vmatprep.subr.bf16.mxu0 0
        %2050 = vmatpush1.bf16.msra.mxu0 %v2034
        %2051 = vmatprep.subr.bf16.mxu0 0
        %2052 = vmatpush1.bf16.msra.mxu0 %v2033
        %2053 = vmatprep.subr.bf16.mxu0 0
        %2054 = vmatpush1.bf16.msra.mxu0 %v2032
        %2055 = vmatprep.subr.bf16.mxu0 0
        %2056 = vmatpush1.bf16.msra.mxu0 %v2031
        %2057 = vmatprep.subr.bf16.mxu0 0
        %2058 = vmatpush1.bf16.msra.mxu0 %v2030
        %2059 = vmatprep.subr.bf16.mxu0 0
        %2060 = vmatpush1.bf16.msra.mxu0 %v2029
        %2061 = vmatprep.subr.bf16.mxu0 0
        %2062 = vmatpush2.bf16.msra.mxu0 0
        %2063 = vmatprep.subr.bf16.mxu0 0
        %2064 = vmatpush2.bf16.msra.mxu0 0
        %2065 = vmatprep.subr.bf16.mxu0 0
        %2066 = vmatpush2.bf16.msra.mxu0 0
        %2067 = vmatprep.subr.bf16.mxu0 0
        %2068 = vmatpush2.bf16.msra.mxu0 0
        %2069 = vmatprep.subr.bf16.mxu0 0
        %2070 = vmatpush2.bf16.msra.mxu0 0
        %2071 = vmatprep.subr.bf16.mxu0 0
        %2072 = vmatpush2.bf16.msra.mxu0 0
        %2073 = vmatprep.subr.bf16.mxu0 0
        %2074 = vmatpush2.bf16.msra.mxu0 0
        %2075 = vmatprep.subr.bf16.mxu0 0
        %2076 = vmatpush2.bf16.msra.mxu0 0
        %2077 = vmatprep.mubr.bf16.mxu0 0
        %2078 = vmatmul.mubr.bf16.gmra.mxu0 %v1829
        %v2079 = vpop.f32.mrf.mxu0
        %v2080 = vadd.f32 %v1992, %v2079
        %v2081 = vpop.f32.mrf.mxu0
        %v2082 = vpop.f32.mrf.mxu0
        %v2083 = vpop.f32.mrf.mxu0
        %2084 = vdwg.mxu0
        %s2085 = scalar_lea.vmem [#allocation12], 8
        %v2086 = vld [vmem:[%s2085] sm:$0xf]
        %v2088 = vsel %vm1785, %v2086, 0
        %2090 = vmatprep.subr.bf16.mxu0 0
        %2091 = vmatpush1.bf16.msra.mxu0 0
        %2092 = vmatprep.subr.bf16.mxu0 0
        %2093 = vmatpush1.bf16.msra.mxu0 0
        %2094 = vmatprep.subr.bf16.mxu0 0
        %2095 = vmatpush1.bf16.msra.mxu0 0
        %2096 = vmatprep.subr.bf16.mxu0 0
        %2097 = vmatpush1.bf16.msra.mxu0 0
        %2098 = vmatprep.subr.bf16.mxu0 0
        %2099 = vmatpush1.bf16.msra.mxu0 0
        %2100 = vmatprep.subr.bf16.mxu0 0
        %2101 = vmatpush1.bf16.msra.mxu0 0
        %2102 = vmatprep.subr.bf16.mxu0 0
        %2103 = vmatpush1.bf16.msra.mxu0 0
        %2104 = vmatprep.subr.bf16.mxu0 0
        %2105 = vmatpush1.bf16.msra.mxu0 %v1783
        %2106 = vmatprep.subr.bf16.mxu0 0
        %2107 = vmatpush2.bf16.msra.mxu0 0
        %2108 = vmatprep.subr.bf16.mxu0 0
        %2109 = vmatpush2.bf16.msra.mxu0 0
        %2110 = vmatprep.subr.bf16.mxu0 0
        %2111 = vmatpush2.bf16.msra.mxu0 0
        %2112 = vmatprep.subr.bf16.mxu0 0
        %2113 = vmatpush2.bf16.msra.mxu0 0
        %2114 = vmatprep.subr.bf16.mxu0 0
        %2115 = vmatpush2.bf16.msra.mxu0 0
        %2116 = vmatprep.subr.bf16.mxu0 0
        %2117 = vmatpush2.bf16.msra.mxu0 0
        %2118 = vmatprep.subr.bf16.mxu0 0
        %2119 = vmatpush2.bf16.msra.mxu0 0
        %2120 = vmatprep.subr.bf16.mxu0 0
        %2121 = vmatpush2.bf16.msra.mxu0 0
        %2122 = vmatprep.mubr.bf16.mxu0 0
        %2123 = vmatmul.mubr.bf16.gmra.mxu0 %v2088
        %v2124 = vpop.f32.mrf.mxu0
        %v2125 = vadd.f32 0.0, %v2124
        %v2126 = vpop.f32.mrf.mxu0
        %v2127 = vpop.f32.mrf.mxu0
        %v2128 = vpop.f32.mrf.mxu0
        %2129 = vdwg.mxu0
        %v2130 = vpack.c.bf16 %v2125, %v2125
        %s2131 = scalar_lea.vmem [#allocation10], 128
        %v2132 = vld [vmem:[%s2131] sm:$0xf]
        %v2133 = vld [vmem:[%s2131 + $0x4] sm:$0xf]
        %v2134 = vld [vmem:[%s2131 + $0x8] sm:$0xf]
        %v2135 = vld [vmem:[%s2131 + $0xc] sm:$0xf]
        %v2136 = vld [vmem:[%s2131 + $0x10] sm:$0xf]
        %v2137 = vld [vmem:[%s2131 + $0x14] sm:$0xf]
        %v2138 = vld [vmem:[%s2131 + $0x18] sm:$0xf]
        %v2139 = vld [vmem:[%s2131 + $0x1c] sm:$0xf]
        %v2140 = vld [vmem:[%s2131 + $0x20] sm:$0xf]
        %v2141 = vld [vmem:[%s2131 + $0x24] sm:$0xf]
        %v2142 = vld [vmem:[%s2131 + $0x28] sm:$0xf]
        %v2143 = vld [vmem:[%s2131 + $0x2c] sm:$0xf]
        %v2144 = vld [vmem:[%s2131 + $0x30] sm:$0xf]
        %v2145 = vld [vmem:[%s2131 + $0x34] sm:$0xf]
        %v2146 = vld [vmem:[%s2131 + $0x38] sm:$0xf]
        %v2147 = vld [vmem:[%s2131 + $0x3c] sm:$0xf]
        %v2164 = vunpack.c.l.b16 %v2132
        %v2165 = vunpack.c.l.b16 %v2133
        %v2166 = vunpack.c.l.b16 %v2134
        %v2167 = vunpack.c.l.b16 %v2135
        %v2168 = vunpack.c.l.b16 %v2136
        %v2169 = vunpack.c.l.b16 %v2137
        %v2170 = vunpack.c.l.b16 %v2138
        %v2171 = vunpack.c.l.b16 %v2139
        %v2172 = vunpack.c.l.b16 %v2140
        %v2173 = vunpack.c.l.b16 %v2141
        %v2174 = vunpack.c.l.b16 %v2142
        %v2175 = vunpack.c.l.b16 %v2143
        %v2176 = vunpack.c.l.b16 %v2144
        %v2177 = vunpack.c.l.b16 %v2145
        %v2178 = vunpack.c.l.b16 %v2146
        %v2179 = vunpack.c.l.b16 %v2147
        %v2180 = vpack.c.b16 %v2165, %v2164
        %v2181 = vpack.c.b16 %v2167, %v2166
        %v2182 = vpack.c.b16 %v2169, %v2168
        %v2183 = vpack.c.b16 %v2171, %v2170
        %v2184 = vpack.c.b16 %v2173, %v2172
        %v2185 = vpack.c.b16 %v2175, %v2174
        %v2186 = vpack.c.b16 %v2177, %v2176
        %v2187 = vpack.c.b16 %v2179, %v2178
        %2196 = vmatprep.subr.bf16.mxu0 0
        %2197 = vmatpush1.bf16.msra.mxu0 %v2187
        %2198 = vmatprep.subr.bf16.mxu0 0
        %2199 = vmatpush1.bf16.msra.mxu0 %v2186
        %2200 = vmatprep.subr.bf16.mxu0 0
        %2201 = vmatpush1.bf16.msra.mxu0 %v2185
        %2202 = vmatprep.subr.bf16.mxu0 0
        %2203 = vmatpush1.bf16.msra.mxu0 %v2184
        %2204 = vmatprep.subr.bf16.mxu0 0
        %2205 = vmatpush1.bf16.msra.mxu0 %v2183
        %2206 = vmatprep.subr.bf16.mxu0 0
        %2207 = vmatpush1.bf16.msra.mxu0 %v2182
        %2208 = vmatprep.subr.bf16.mxu0 0
        %2209 = vmatpush1.bf16.msra.mxu0 %v2181
        %2210 = vmatprep.subr.bf16.mxu0 0
        %2211 = vmatpush1.bf16.msra.mxu0 %v2180
        %2212 = vmatprep.subr.bf16.mxu0 0
        %2213 = vmatpush2.bf16.msra.mxu0 0
        %2214 = vmatprep.subr.bf16.mxu0 0
        %2215 = vmatpush2.bf16.msra.mxu0 0
        %2216 = vmatprep.subr.bf16.mxu0 0
        %2217 = vmatpush2.bf16.msra.mxu0 0
        %2218 = vmatprep.subr.bf16.mxu0 0
        %2219 = vmatpush2.bf16.msra.mxu0 0
        %2220 = vmatprep.subr.bf16.mxu0 0
        %2221 = vmatpush2.bf16.msra.mxu0 0
        %2222 = vmatprep.subr.bf16.mxu0 0
        %2223 = vmatpush2.bf16.msra.mxu0 0
        %2224 = vmatprep.subr.bf16.mxu0 0
        %2225 = vmatpush2.bf16.msra.mxu0 0
        %2226 = vmatprep.subr.bf16.mxu0 0
        %2227 = vmatpush2.bf16.msra.mxu0 0
        %2228 = vmatprep.mubr.bf16.mxu0 0
        %2229 = vmatmul.mubr.bf16.gmra.mxu0 %v2130
        %v2230 = vpop.f32.mrf.mxu0
        %v2231 = vadd.f32 0.0, %v2230
        %v2232 = vpop.f32.mrf.mxu0
        %v2233 = vpop.f32.mrf.mxu0
        %v2234 = vpop.f32.mrf.mxu0
        %2235 = vdwg.mxu0
        %v2236 = vadd.f32 %v2080, %v2231
        %s2237 = scalar_lea.vmem [#allocation12], 12
        %v2238 = vld [vmem:[%s2237] sm:$0xf]
        %v2240 = vsel %vm1785, %v2238, 0
        %2242 = vmatprep.subr.bf16.mxu0 0
        %2243 = vmatpush1.bf16.msra.mxu0 0
        %2244 = vmatprep.subr.bf16.mxu0 0
        %2245 = vmatpush1.bf16.msra.mxu0 0
        %2246 = vmatprep.subr.bf16.mxu0 0
        %2247 = vmatpush1.bf16.msra.mxu0 0
        %2248 = vmatprep.subr.bf16.mxu0 0
        %2249 = vmatpush1.bf16.msra.mxu0 0
        %2250 = vmatprep.subr.bf16.mxu0 0
        %2251 = vmatpush1.bf16.msra.mxu0 0
        %2252 = vmatprep.subr.bf16.mxu0 0
        %2253 = vmatpush1.bf16.msra.mxu0 0
        %2254 = vmatprep.subr.bf16.mxu0 0
        %2255 = vmatpush1.bf16.msra.mxu0 0
        %2256 = vmatprep.subr.bf16.mxu0 0
        %2257 = vmatpush1.bf16.msra.mxu0 %v1783
        %2258 = vmatprep.subr.bf16.mxu0 0
        %2259 = vmatpush2.bf16.msra.mxu0 0
        %2260 = vmatprep.subr.bf16.mxu0 0
        %2261 = vmatpush2.bf16.msra.mxu0 0
        %2262 = vmatprep.subr.bf16.mxu0 0
        %2263 = vmatpush2.bf16.msra.mxu0 0
        %2264 = vmatprep.subr.bf16.mxu0 0
        %2265 = vmatpush2.bf16.msra.mxu0 0
        %2266 = vmatprep.subr.bf16.mxu0 0
        %2267 = vmatpush2.bf16.msra.mxu0 0
        %2268 = vmatprep.subr.bf16.mxu0 0
        %2269 = vmatpush2.bf16.msra.mxu0 0
        %2270 = vmatprep.subr.bf16.mxu0 0
        %2271 = vmatpush2.bf16.msra.mxu0 0
        %2272 = vmatprep.subr.bf16.mxu0 0
        %2273 = vmatpush2.bf16.msra.mxu0 0
        %2274 = vmatprep.mubr.bf16.mxu0 0
        %2275 = vmatmul.mubr.bf16.gmra.mxu0 %v2240
        %v2276 = vpop.f32.mrf.mxu0
        %v2277 = vadd.f32 0.0, %v2276
        %v2278 = vpop.f32.mrf.mxu0
        %v2279 = vpop.f32.mrf.mxu0
        %v2280 = vpop.f32.mrf.mxu0
        %2281 = vdwg.mxu0
        %v2282 = vpack.c.bf16 %v2277, %v2277
        %s2283 = scalar_lea.vmem [#allocation10], 192
        %v2284 = vld [vmem:[%s2283] sm:$0xf]
        %v2285 = vld [vmem:[%s2283 + $0x4] sm:$0xf]
        %v2286 = vld [vmem:[%s2283 + $0x8] sm:$0xf]
        %v2287 = vld [vmem:[%s2283 + $0xc] sm:$0xf]
        %v2288 = vld [vmem:[%s2283 + $0x10] sm:$0xf]
        %v2289 = vld [vmem:[%s2283 + $0x14] sm:$0xf]
        %v2290 = vld [vmem:[%s2283 + $0x18] sm:$0xf]
        %v2291 = vld [vmem:[%s2283 + $0x1c] sm:$0xf]
        %v2292 = vld [vmem:[%s2283 + $0x20] sm:$0xf]
        %v2293 = vld [vmem:[%s2283 + $0x24] sm:$0xf]
        %v2294 = vld [vmem:[%s2283 + $0x28] sm:$0xf]
        %v2295 = vld [vmem:[%s2283 + $0x2c] sm:$0xf]
        %v2296 = vld [vmem:[%s2283 + $0x30] sm:$0xf]
        %v2297 = vld [vmem:[%s2283 + $0x34] sm:$0xf]
        %v2298 = vld [vmem:[%s2283 + $0x38] sm:$0xf]
        %v2299 = vld [vmem:[%s2283 + $0x3c] sm:$0xf]
        %v2316 = vunpack.c.l.b16 %v2284
        %v2317 = vunpack.c.l.b16 %v2285
        %v2318 = vunpack.c.l.b16 %v2286
        %v2319 = vunpack.c.l.b16 %v2287
        %v2320 = vunpack.c.l.b16 %v2288
        %v2321 = vunpack.c.l.b16 %v2289
        %v2322 = vunpack.c.l.b16 %v2290
        %v2323 = vunpack.c.l.b16 %v2291
        %v2324 = vunpack.c.l.b16 %v2292
        %v2325 = vunpack.c.l.b16 %v2293
        %v2326 = vunpack.c.l.b16 %v2294
        %v2327 = vunpack.c.l.b16 %v2295
        %v2328 = vunpack.c.l.b16 %v2296
        %v2329 = vunpack.c.l.b16 %v2297
        %v2330 = vunpack.c.l.b16 %v2298
        %v2331 = vunpack.c.l.b16 %v2299
        %v2332 = vpack.c.b16 %v2317, %v2316
        %v2333 = vpack.c.b16 %v2319, %v2318
        %v2334 = vpack.c.b16 %v2321, %v2320
        %v2335 = vpack.c.b16 %v2323, %v2322
        %v2336 = vpack.c.b16 %v2325, %v2324
        %v2337 = vpack.c.b16 %v2327, %v2326
        %v2338 = vpack.c.b16 %v2329, %v2328
        %v2339 = vpack.c.b16 %v2331, %v2330
        %2348 = vmatprep.subr.bf16.mxu0 0
        %2349 = vmatpush1.bf16.msra.mxu0 %v2339
        %2350 = vmatprep.subr.bf16.mxu0 0
        %2351 = vmatpush1.bf16.msra.mxu0 %v2338
        %2352 = vmatprep.subr.bf16.mxu0 0
        %2353 = vmatpush1.bf16.msra.mxu0 %v2337
        %2354 = vmatprep.subr.bf16.mxu0 0
        %2355 = vmatpush1.bf16.msra.mxu0 %v2336
        %2356 = vmatprep.subr.bf16.mxu0 0
        %2357 = vmatpush1.bf16.msra.mxu0 %v2335
        %2358 = vmatprep.subr.bf16.mxu0 0
        %2359 = vmatpush1.bf16.msra.mxu0 %v2334
        %2360 = vmatprep.subr.bf16.mxu0 0
        %2361 = vmatpush1.bf16.msra.mxu0 %v2333
        %2362 = vmatprep.subr.bf16.mxu0 0
        %2363 = vmatpush1.bf16.msra.mxu0 %v2332
        %2364 = vmatprep.subr.bf16.mxu0 0
        %2365 = vmatpush2.bf16.msra.mxu0 0
        %2366 = vmatprep.subr.bf16.mxu0 0
        %2367 = vmatpush2.bf16.msra.mxu0 0
        %2368 = vmatprep.subr.bf16.mxu0 0
        %2369 = vmatpush2.bf16.msra.mxu0 0
        %2370 = vmatprep.subr.bf16.mxu0 0
        %2371 = vmatpush2.bf16.msra.mxu0 0
        %2372 = vmatprep.subr.bf16.mxu0 0
        %2373 = vmatpush2.bf16.msra.mxu0 0
        %2374 = vmatprep.subr.bf16.mxu0 0
        %2375 = vmatpush2.bf16.msra.mxu0 0
        %2376 = vmatprep.subr.bf16.mxu0 0
        %2377 = vmatpush2.bf16.msra.mxu0 0
        %2378 = vmatprep.subr.bf16.mxu0 0
        %2379 = vmatpush2.bf16.msra.mxu0 0
        %2380 = vmatprep.mubr.bf16.mxu0 0
        %2381 = vmatmul.mubr.bf16.gmra.mxu0 %v2282
        %v2382 = vpop.f32.mrf.mxu0
        %v2383 = vadd.f32 0.0, %v2382
        %v2384 = vpop.f32.mrf.mxu0
        %v2385 = vpop.f32.mrf.mxu0
        %v2386 = vpop.f32.mrf.mxu0
        %2387 = vdwg.mxu0
        %v2388 = vadd.f32 %v2236, %v2383
        %v2389 = vrot.slane %v2388, 4
        %v2390 = vadd.f32 %v2388, %v2389
        %v2391 = vrot.slane %v2390, 2
        %v2392 = vadd.f32 %v2390, %v2391
        %v2393 = vrot.slane %v2392, 1
        %v2394 = vadd.f32 %v2392, %v2393
        %v2395 = vmul.f32 %v2388, %v2388
        %v2396 = vrot.slane %v2395, 4
        %v2397 = vadd.f32 %v2395, %v2396
        %v2398 = vrot.slane %v2397, 2
        %v2399 = vadd.f32 %v2397, %v2398
        %v2400 = vrot.slane %v2399, 1
        %v2401 = vadd.f32 %v2399, %v2400
        %v2402 = vsel %vm1572, %v2394, %v2401
        %v2403 = vld [vmem:[#allocation15] sm:$0xff]
        %v2404 = vld [vmem:[#allocation15 + $0x8] sm:$0xff]
        %v2405 = vld [vmem:[#allocation15 + $0x10] sm:$0xff]
        %v2406 = vld [vmem:[#allocation15 + $0x18] sm:$0xff]
        %v2407 = vld [vmem:[#allocation15 + $0x20] sm:$0xff]
        %v2408 = vld [vmem:[#allocation15 + $0x28] sm:$0xff]
        %v2409 = vld [vmem:[#allocation15 + $0x30] sm:$0xff]
        %v2410 = vld [vmem:[#allocation15 + $0x38] sm:$0xff]
        %v2411 = vld [vmem:[#allocation15 + $0x40] sm:$0xff]
        %v2412 = vld [vmem:[#allocation15 + $0x48] sm:$0xff]
        %v2413 = vld [vmem:[#allocation15 + $0x50] sm:$0xff]
        %v2414 = vld [vmem:[#allocation15 + $0x58] sm:$0xff]
        %v2415 = vld [vmem:[#allocation15 + $0x60] sm:$0xff]
        %v2416 = vld [vmem:[#allocation15 + $0x68] sm:$0xff]
        %v2417 = vld [vmem:[#allocation15 + $0x70] sm:$0xff]
        %v2418 = vld [vmem:[#allocation15 + $0x78] sm:$0xff]
        %2419 = vmatprep.subr.mxu0 0.0
        %2420 = vmatpush1.msra.mxu0 %v2418
        %2421 = vmatprep.subr.mxu0 0.0
        %2422 = vmatpush1.msra.mxu0 %v2417
        %2423 = vmatprep.subr.mxu0 0.0
        %2424 = vmatpush1.msra.mxu0 %v2416
        %2425 = vmatprep.subr.mxu0 0.0
        %2426 = vmatpush1.msra.mxu0 %v2415
        %2427 = vmatprep.subr.mxu0 0.0
        %2428 = vmatpush1.msra.mxu0 %v2414
        %2429 = vmatprep.subr.mxu0 0.0
        %2430 = vmatpush1.msra.mxu0 %v2413
        %2431 = vmatprep.subr.mxu0 0.0
        %2432 = vmatpush1.msra.mxu0 %v2412
        %2433 = vmatprep.subr.mxu0 0.0
        %2434 = vmatpush1.msra.mxu0 %v2411
        %2435 = vmatprep.subr.mxu0 0.0
        %2436 = vmatpush1.msra.mxu0 %v2410
        %2437 = vmatprep.subr.mxu0 0.0
        %2438 = vmatpush1.msra.mxu0 %v2409
        %2439 = vmatprep.subr.mxu0 0.0
        %2440 = vmatpush1.msra.mxu0 %v2408
        %2441 = vmatprep.subr.mxu0 0.0
        %2442 = vmatpush1.msra.mxu0 %v2407
        %2443 = vmatprep.subr.mxu0 0.0
        %2444 = vmatpush1.msra.mxu0 %v2406
        %2445 = vmatprep.subr.mxu0 0.0
        %2446 = vmatpush1.msra.mxu0 %v2405
        %2447 = vmatprep.subr.mxu0 0.0
        %2448 = vmatpush1.msra.mxu0 %v2404
        %2449 = vmatprep.subr.mxu0 0.0
        %2450 = vmatpush1.msra.mxu0 %v2403
        %2451 = vmatprep.subr.mxu0 0.0
        %2452 = vmatpush2.msra.mxu0 0.0
        %2453 = vmatprep.subr.mxu0 0.0
        %2454 = vmatpush2.msra.mxu0 0.0
        %2455 = vmatprep.subr.mxu0 0.0
        %2456 = vmatpush2.msra.mxu0 0.0
        %2457 = vmatprep.subr.mxu0 0.0
        %2458 = vmatpush2.msra.mxu0 0.0
        %2459 = vmatprep.subr.mxu0 0.0
        %2460 = vmatpush2.msra.mxu0 0.0
        %2461 = vmatprep.subr.mxu0 0.0
        %2462 = vmatpush2.msra.mxu0 0.0
        %2463 = vmatprep.subr.mxu0 0.0
        %2464 = vmatpush2.msra.mxu0 0.0
        %2465 = vmatprep.subr.mxu0 0.0
        %2466 = vmatpush2.msra.mxu0 0.0
        %2467 = vmatprep.subr.mxu0 0.0
        %2468 = vmatpush2.msra.mxu0 0.0
        %2469 = vmatprep.subr.mxu0 0.0
        %2470 = vmatpush2.msra.mxu0 0.0
        %2471 = vmatprep.subr.mxu0 0.0
        %2472 = vmatpush2.msra.mxu0 0.0
        %2473 = vmatprep.subr.mxu0 0.0
        %2474 = vmatpush2.msra.mxu0 0.0
        %2475 = vmatprep.subr.mxu0 0.0
        %2476 = vmatpush2.msra.mxu0 0.0
        %2477 = vmatprep.subr.mxu0 0.0
        %2478 = vmatpush2.msra.mxu0 0.0
        %2479 = vmatprep.subr.mxu0 0.0
        %2480 = vmatpush2.msra.mxu0 0.0
        %2481 = vmatprep.subr.mxu0 0.0
        %2482 = vmatpush2.msra.mxu0 0.0
        %2483 = vmatprep.mubr.f32.mxu0 0.0
        %2484 = vmatmul.mubr.f32.gmra.mxu0 %v2402
        %v2485 = vpop.f32.mrf.mxu0
        %v2486 = vadd.f32 0.0, %v2485
        %v2487 = vpop.f32.mrf.mxu0
        %2488 = vdwg.mxu0
        %v2489 = vmul.f32 %v2486, 0.015625
        %v2490 = vmul.f32 %v2489, %v2489
        %v2492 = vrot.slane %v2490, 7
        %v2494 = vsub.f32 %v2489, %v2492
        %v2495 = vld [vmem:[#allocation13] sm:$0x1]
        %v2496 = vld [vmem:[#allocation13 + $0x1] sm:$0x1]
        %v2497 = vld [vmem:[#allocation13 + $0x2] sm:$0x1]
        %v2498 = vadd.f32 %v2494, 1e-05
        %v2499 = vrsqrt.pop %v2498
        %v2501 = vrot.slane %v2499, 1
        %v2503 = vmul.f32 %v2495, %v2501
        %v2504 = vmul.f32 %v2489, %v2503
        %v2505 = vsub.f32 %v2496, %v2504
        %v2507 = vrot.slane %v2505, 7
        %v2510 = vrot.slane %v2497, 6
        %v2512 = vsel %vm1572, %v2503, %v2507
        %v2513 = vsel %vm1684, %v2512, %v2510
        %v2514 = vld [vmem:[#allocation16] sm:$0xff]
        %v2515 = vld [vmem:[#allocation16 + $0x8] sm:$0xff]
        %v2517 = vsel %vm1785, %v2513, 0
        %2519 = vmatprep.subr.mxu0 0.0
        %2520 = vmatpush1.msra.mxu0 0.0
        %2521 = vmatprep.subr.mxu0 0.0
        %2522 = vmatpush1.msra.mxu0 0.0
        %2523 = vmatprep.subr.mxu0 0.0
        %2524 = vmatpush1.msra.mxu0 0.0
        %2525 = vmatprep.subr.mxu0 0.0
        %2526 = vmatpush1.msra.mxu0 0.0
        %2527 = vmatprep.subr.mxu0 0.0
        %2528 = vmatpush1.msra.mxu0 0.0
        %2529 = vmatprep.subr.mxu0 0.0
        %2530 = vmatpush1.msra.mxu0 0.0
        %2531 = vmatprep.subr.mxu0 0.0
        %2532 = vmatpush1.msra.mxu0 0.0
        %2533 = vmatprep.subr.mxu0 0.0
        %2534 = vmatpush1.msra.mxu0 0.0
        %2535 = vmatprep.subr.mxu0 0.0
        %2536 = vmatpush1.msra.mxu0 0.0
        %2537 = vmatprep.subr.mxu0 0.0
        %2538 = vmatpush1.msra.mxu0 0.0
        %2539 = vmatprep.subr.mxu0 0.0
        %2540 = vmatpush1.msra.mxu0 0.0
        %2541 = vmatprep.subr.mxu0 0.0
        %2542 = vmatpush1.msra.mxu0 0.0
        %2543 = vmatprep.subr.mxu0 0.0
        %2544 = vmatpush1.msra.mxu0 0.0
        %2545 = vmatprep.subr.mxu0 0.0
        %2546 = vmatpush1.msra.mxu0 0.0
        %2547 = vmatprep.subr.mxu0 0.0
        %2548 = vmatpush1.msra.mxu0 %v2515
        %2549 = vmatprep.subr.mxu0 0.0
        %2550 = vmatpush1.msra.mxu0 %v2514
        %2551 = vmatprep.subr.mxu0 0.0
        %2552 = vmatpush2.msra.mxu0 0.0
        %2553 = vmatprep.subr.mxu0 0.0
        %2554 = vmatpush2.msra.mxu0 0.0
        %2555 = vmatprep.subr.mxu0 0.0
        %2556 = vmatpush2.msra.mxu0 0.0
        %2557 = vmatprep.subr.mxu0 0.0
        %2558 = vmatpush2.msra.mxu0 0.0
        %2559 = vmatprep.subr.mxu0 0.0
        %2560 = vmatpush2.msra.mxu0 0.0
        %2561 = vmatprep.subr.mxu0 0.0
        %2562 = vmatpush2.msra.mxu0 0.0
        %2563 = vmatprep.subr.mxu0 0.0
        %2564 = vmatpush2.msra.mxu0 0.0
        %2565 = vmatprep.subr.mxu0 0.0
        %2566 = vmatpush2.msra.mxu0 0.0
        %2567 = vmatprep.subr.mxu0 0.0
        %2568 = vmatpush2.msra.mxu0 0.0
        %2569 = vmatprep.subr.mxu0 0.0
        %2570 = vmatpush2.msra.mxu0 0.0
        %2571 = vmatprep.subr.mxu0 0.0
        %2572 = vmatpush2.msra.mxu0 0.0
        %2573 = vmatprep.subr.mxu0 0.0
        %2574 = vmatpush2.msra.mxu0 0.0
        %2575 = vmatprep.subr.mxu0 0.0
        %2576 = vmatpush2.msra.mxu0 0.0
        %2577 = vmatprep.subr.mxu0 0.0
        %2578 = vmatpush2.msra.mxu0 0.0
        %2579 = vmatprep.subr.mxu0 0.0
        %2580 = vmatpush2.msra.mxu0 0.0
        %2581 = vmatprep.subr.mxu0 0.0
        %2582 = vmatpush2.msra.mxu0 0.0
        %2583 = vmatprep.mubr.f32.mxu0 0.0
        %2584 = vmatmul.mubr.f32.gmra.mxu0 %v2517
        %v2585 = vpop.f32.mrf.mxu0
        %v2586 = vadd.f32 0.0, %v2585
        %v2587 = vpop.f32.mrf.mxu0
        %2588 = vdwg.mxu0
        %v2589 = vlaneseq
        %v2590 = vshrl.u32 %v2589, 7
        %v2591 = vsub.s32 0, %v2590
        %v2592 = vrot.slane %v2586, %v2591
        %v2593 = vmul.f32 %v2388, %v2592
        %v2594 = vlaneseq
        %v2595 = vshrl.u32 %v2594, 7
        %v2596 = vsub.s32 1, %v2595
        %v2597 = vrot.slane %v2586, %v2596
        %v2598 = vadd.f32 %v2593, %v2597
        %vm2599 = vcmp.ge.f32.partialorder %v2598, 0.0
        %v2600 = vlaneseq
        %v2601 = vshrl.u32 %v2600, 7
        %v2602 = vsub.s32 2, %v2601
        %v2603 = vrot.slane %v2586, %v2602
        %v2604 = vmul.f32 %v2603, %v2598
        %v2605 = vsel %vm2599, %v2598, %v2604
        %v2606 = vpack.c.bf16 %v2605, %v2605
        %v2607 = vld [vmem:[#allocation18] sm:$0x3]
        %v2609 = vsel %vm1687, %v2607, 0
        %vm2611 = vcmask 1043456
        %v2613 = vsel %vm2611, %v2606, 0
        %2615 = vmatprep.subr.bf16.mxu0 0
        %2616 = vmatpush1.bf16.msra.mxu0 0
        %2617 = vmatprep.subr.bf16.mxu0 0
        %2618 = vmatpush1.bf16.msra.mxu0 0
        %2619 = vmatprep.subr.bf16.mxu0 0
        %2620 = vmatpush1.bf16.msra.mxu0 0
        %2621 = vmatprep.subr.bf16.mxu0 0
        %2622 = vmatpush1.bf16.msra.mxu0 0
        %2623 = vmatprep.subr.bf16.mxu0 0
        %2624 = vmatpush1.bf16.msra.mxu0 0
        %2625 = vmatprep.subr.bf16.mxu0 0
        %2626 = vmatpush1.bf16.msra.mxu0 0
        %2627 = vmatprep.subr.bf16.mxu0 0
        %2628 = vmatpush1.bf16.msra.mxu0 0
        %2629 = vmatprep.subr.bf16.mxu0 0
        %2630 = vmatpush1.bf16.msra.mxu0 %v2613
        %2631 = vmatprep.subr.bf16.mxu0 0
        %2632 = vmatpush2.bf16.msra.mxu0 0
        %2633 = vmatprep.subr.bf16.mxu0 0
        %2634 = vmatpush2.bf16.msra.mxu0 0
        %2635 = vmatprep.subr.bf16.mxu0 0
        %2636 = vmatpush2.bf16.msra.mxu0 0
        %2637 = vmatprep.subr.bf16.mxu0 0
        %2638 = vmatpush2.bf16.msra.mxu0 0
        %2639 = vmatprep.subr.bf16.mxu0 0
        %2640 = vmatpush2.bf16.msra.mxu0 0
        %2641 = vmatprep.subr.bf16.mxu0 0
        %2642 = vmatpush2.bf16.msra.mxu0 0
        %2643 = vmatprep.subr.bf16.mxu0 0
        %2644 = vmatpush2.bf16.msra.mxu0 0
        %2645 = vmatprep.subr.bf16.mxu0 0
        %2646 = vmatpush2.bf16.msra.mxu0 0
        %2647 = vmatprep.mubr.bf16.mxu0 0
        %2648 = vmatmul.mubr.bf16.gmra.mxu0 %v2609
        %v2649 = vpop.f32.mrf.mxu0
        %v2650 = vadd.f32 0.0, %v2649
        %v2651 = vpop.f32.mrf.mxu0
        %v2652 = vpop.f32.mrf.mxu0
        %v2653 = vpop.f32.mrf.mxu0
        %2654 = vdwg.mxu0
        %v2655 = vpack.c.bf16 %v2650, %v2650
        %v2656 = vld [vmem:[%s11] sm:$0xf]
        %v2657 = vld [vmem:[%s11 + $0x4] sm:$0xf]
        %v2658 = vld [vmem:[%s11 + $0x8] sm:$0xf]
        %v2659 = vld [vmem:[%s11 + $0xc] sm:$0xf]
        %v2660 = vld [vmem:[%s11 + $0x10] sm:$0xf]
        %v2661 = vld [vmem:[%s11 + $0x14] sm:$0xf]
        %v2662 = vld [vmem:[%s11 + $0x18] sm:$0xf]
        %v2663 = vld [vmem:[%s11 + $0x1c] sm:$0xf]
        %v2664 = vld [vmem:[%s11 + $0x20] sm:$0xf]
        %v2665 = vld [vmem:[%s11 + $0x24] sm:$0xf]
        %v2666 = vld [vmem:[%s11 + $0x28] sm:$0xf]
        %v2667 = vld [vmem:[%s11 + $0x2c] sm:$0xf]
        %v2668 = vld [vmem:[%s11 + $0x30] sm:$0xf]
        %v2669 = vld [vmem:[%s11 + $0x34] sm:$0xf]
        %v2670 = vld [vmem:[%s11 + $0x38] sm:$0xf]
        %v2671 = vld [vmem:[%s11 + $0x3c] sm:$0xf]
        %s2672 = scalar_lea.vmem [#allocation18], 2
        %v2673 = vld [vmem:[%s2672] sm:$0x3]
        %v2675 = vsel %vm1687, %v2673, 0
        %2677 = vmatprep.subr.bf16.mxu0 0
        %2678 = vmatpush1.bf16.msra.mxu0 0
        %2679 = vmatprep.subr.bf16.mxu0 0
        %2680 = vmatpush1.bf16.msra.mxu0 0
        %2681 = vmatprep.subr.bf16.mxu0 0
        %2682 = vmatpush1.bf16.msra.mxu0 0
        %2683 = vmatprep.subr.bf16.mxu0 0
        %2684 = vmatpush1.bf16.msra.mxu0 0
        %2685 = vmatprep.subr.bf16.mxu0 0
        %2686 = vmatpush1.bf16.msra.mxu0 0
        %2687 = vmatprep.subr.bf16.mxu0 0
        %2688 = vmatpush1.bf16.msra.mxu0 0
        %2689 = vmatprep.subr.bf16.mxu0 0
        %2690 = vmatpush1.bf16.msra.mxu0 0
        %2691 = vmatprep.subr.bf16.mxu0 0
        %2692 = vmatpush1.bf16.msra.mxu0 %v2613
        %2693 = vmatprep.subr.bf16.mxu0 0
        %2694 = vmatpush2.bf16.msra.mxu0 0
        %2695 = vmatprep.subr.bf16.mxu0 0
        %2696 = vmatpush2.bf16.msra.mxu0 0
        %2697 = vmatprep.subr.bf16.mxu0 0
        %2698 = vmatpush2.bf16.msra.mxu0 0
        %2699 = vmatprep.subr.bf16.mxu0 0
        %2700 = vmatpush2.bf16.msra.mxu0 0
        %2701 = vmatprep.subr.bf16.mxu0 0
        %2702 = vmatpush2.bf16.msra.mxu0 0
        %2703 = vmatprep.subr.bf16.mxu0 0
        %2704 = vmatpush2.bf16.msra.mxu0 0
        %2705 = vmatprep.subr.bf16.mxu0 0
        %2706 = vmatpush2.bf16.msra.mxu0 0
        %2707 = vmatprep.subr.bf16.mxu0 0
        %2708 = vmatpush2.bf16.msra.mxu0 0
        %2709 = vmatprep.mubr.bf16.mxu0 0
        %2710 = vmatmul.mubr.bf16.gmra.mxu0 %v2675
        %v2711 = vpop.f32.mrf.mxu0
        %v2712 = vadd.f32 0.0, %v2711
        %v2713 = vpop.f32.mrf.mxu0
        %v2714 = vpop.f32.mrf.mxu0
        %v2715 = vpop.f32.mrf.mxu0
        %2716 = vdwg.mxu0
        %v2717 = vpack.c.bf16 %v2712, %v2712
        %s2718 = scalar_lea.vmem %s11, 64
        %v2719 = vld [vmem:[%s2718] sm:$0xf]
        %v2720 = vld [vmem:[%s2718 + $0x4] sm:$0xf]
        %v2721 = vld [vmem:[%s2718 + $0x8] sm:$0xf]
        %v2722 = vld [vmem:[%s2718 + $0xc] sm:$0xf]
        %v2723 = vld [vmem:[%s2718 + $0x10] sm:$0xf]
        %v2724 = vld [vmem:[%s2718 + $0x14] sm:$0xf]
        %v2725 = vld [vmem:[%s2718 + $0x18] sm:$0xf]
        %v2726 = vld [vmem:[%s2718 + $0x1c] sm:$0xf]
        %v2727 = vld [vmem:[%s2718 + $0x20] sm:$0xf]
        %v2728 = vld [vmem:[%s2718 + $0x24] sm:$0xf]
        %v2729 = vld [vmem:[%s2718 + $0x28] sm:$0xf]
        %v2730 = vld [vmem:[%s2718 + $0x2c] sm:$0xf]
        %v2731 = vld [vmem:[%s2718 + $0x30] sm:$0xf]
        %v2732 = vld [vmem:[%s2718 + $0x34] sm:$0xf]
        %v2733 = vld [vmem:[%s2718 + $0x38] sm:$0xf]
        %v2734 = vld [vmem:[%s2718 + $0x3c] sm:$0xf]
        %v2751 = vunpack.c.l.b16 %v2719
        %v2752 = vunpack.c.l.b16 %v2720
        %v2753 = vunpack.c.l.b16 %v2721
        %v2754 = vunpack.c.l.b16 %v2722
        %v2755 = vunpack.c.l.b16 %v2723
        %v2756 = vunpack.c.l.b16 %v2724
        %v2757 = vunpack.c.l.b16 %v2725
        %v2758 = vunpack.c.l.b16 %v2726
        %v2759 = vunpack.c.l.b16 %v2727
        %v2760 = vunpack.c.l.b16 %v2728
        %v2761 = vunpack.c.l.b16 %v2729
        %v2762 = vunpack.c.l.b16 %v2730
        %v2763 = vunpack.c.l.b16 %v2731
        %v2764 = vunpack.c.l.b16 %v2732
        %v2765 = vunpack.c.l.b16 %v2733
        %v2766 = vunpack.c.l.b16 %v2734
        %v2767 = vpack.c.b16 %v2752, %v2751
        %v2768 = vpack.c.b16 %v2754, %v2753
        %v2769 = vpack.c.b16 %v2756, %v2755
        %v2770 = vpack.c.b16 %v2758, %v2757
        %v2771 = vpack.c.b16 %v2760, %v2759
        %v2772 = vpack.c.b16 %v2762, %v2761
        %v2773 = vpack.c.b16 %v2764, %v2763
        %v2774 = vpack.c.b16 %v2766, %v2765
        %2783 = vmatprep.subr.bf16.mxu0 0
        %2784 = vmatpush1.bf16.msra.mxu0 %v2774
        %2785 = vmatprep.subr.bf16.mxu0 0
        %2786 = vmatpush1.bf16.msra.mxu0 %v2773
        %2787 = vmatprep.subr.bf16.mxu0 0
        %2788 = vmatpush1.bf16.msra.mxu0 %v2772
        %2789 = vmatprep.subr.bf16.mxu0 0
        %2790 = vmatpush1.bf16.msra.mxu0 %v2771
        %2791 = vmatprep.subr.bf16.mxu0 0
        %2792 = vmatpush1.bf16.msra.mxu0 %v2770
        %2793 = vmatprep.subr.bf16.mxu0 0
        %2794 = vmatpush1.bf16.msra.mxu0 %v2769
        %2795 = vmatprep.subr.bf16.mxu0 0
        %2796 = vmatpush1.bf16.msra.mxu0 %v2768
        %2797 = vmatprep.subr.bf16.mxu0 0
        %2798 = vmatpush1.bf16.msra.mxu0 %v2767
        %2799 = vmatprep.subr.bf16.mxu0 0
        %2800 = vmatpush2.bf16.msra.mxu0 0
        %2801 = vmatprep.subr.bf16.mxu0 0
        %2802 = vmatpush2.bf16.msra.mxu0 0
        %2803 = vmatprep.subr.bf16.mxu0 0
        %2804 = vmatpush2.bf16.msra.mxu0 0
        %2805 = vmatprep.subr.bf16.mxu0 0
        %2806 = vmatpush2.bf16.msra.mxu0 0
        %2807 = vmatprep.subr.bf16.mxu0 0
        %2808 = vmatpush2.bf16.msra.mxu0 0
        %2809 = vmatprep.subr.bf16.mxu0 0
        %2810 = vmatpush2.bf16.msra.mxu0 0
        %2811 = vmatprep.subr.bf16.mxu0 0
        %2812 = vmatpush2.bf16.msra.mxu0 0
        %2813 = vmatprep.subr.bf16.mxu0 0
        %2814 = vmatpush2.bf16.msra.mxu0 0
        %2815 = vmatprep.mubr.bf16.mxu0 0
        %2816 = vmatmul.mubr.bf16.gmra.mxu0 %v2717
        %v2817 = vpop.f32.mrf.mxu0
        %v2818 = vadd.f32 0.0, %v2817
        %v2819 = vpop.f32.mrf.mxu0
        %v2820 = vpop.f32.mrf.mxu0
        %v2821 = vpop.f32.mrf.mxu0
        %2822 = vdwg.mxu0
        %v2839 = vunpack.c.l.b16 %v2656
        %v2840 = vunpack.c.l.b16 %v2657
        %v2841 = vunpack.c.l.b16 %v2658
        %v2842 = vunpack.c.l.b16 %v2659
        %v2843 = vunpack.c.l.b16 %v2660
        %v2844 = vunpack.c.l.b16 %v2661
        %v2845 = vunpack.c.l.b16 %v2662
        %v2846 = vunpack.c.l.b16 %v2663
        %v2847 = vunpack.c.l.b16 %v2664
        %v2848 = vunpack.c.l.b16 %v2665
        %v2849 = vunpack.c.l.b16 %v2666
        %v2850 = vunpack.c.l.b16 %v2667
        %v2851 = vunpack.c.l.b16 %v2668
        %v2852 = vunpack.c.l.b16 %v2669
        %v2853 = vunpack.c.l.b16 %v2670
        %v2854 = vunpack.c.l.b16 %v2671
        %v2855 = vpack.c.b16 %v2840, %v2839
        %v2856 = vpack.c.b16 %v2842, %v2841
        %v2857 = vpack.c.b16 %v2844, %v2843
        %v2858 = vpack.c.b16 %v2846, %v2845
        %v2859 = vpack.c.b16 %v2848, %v2847
        %v2860 = vpack.c.b16 %v2850, %v2849
        %v2861 = vpack.c.b16 %v2852, %v2851
        %v2862 = vpack.c.b16 %v2854, %v2853
        %2871 = vmatprep.subr.bf16.mxu0 0
        %2872 = vmatpush1.bf16.msra.mxu0 %v2862
        %2873 = vmatprep.subr.bf16.mxu0 0
        %2874 = vmatpush1.bf16.msra.mxu0 %v2861
        %2875 = vmatprep.subr.bf16.mxu0 0
        %2876 = vmatpush1.bf16.msra.mxu0 %v2860
        %2877 = vmatprep.subr.bf16.mxu0 0
        %2878 = vmatpush1.bf16.msra.mxu0 %v2859
        %2879 = vmatprep.subr.bf16.mxu0 0
        %2880 = vmatpush1.bf16.msra.mxu0 %v2858
        %2881 = vmatprep.subr.bf16.mxu0 0
        %2882 = vmatpush1.bf16.msra.mxu0 %v2857
        %2883 = vmatprep.subr.bf16.mxu0 0
        %2884 = vmatpush1.bf16.msra.mxu0 %v2856
        %2885 = vmatprep.subr.bf16.mxu0 0
        %2886 = vmatpush1.bf16.msra.mxu0 %v2855
        %2887 = vmatprep.subr.bf16.mxu0 0
        %2888 = vmatpush2.bf16.msra.mxu0 0
        %2889 = vmatprep.subr.bf16.mxu0 0
        %2890 = vmatpush2.bf16.msra.mxu0 0
        %2891 = vmatprep.subr.bf16.mxu0 0
        %2892 = vmatpush2.bf16.msra.mxu0 0
        %2893 = vmatprep.subr.bf16.mxu0 0
        %2894 = vmatpush2.bf16.msra.mxu0 0
        %2895 = vmatprep.subr.bf16.mxu0 0
        %2896 = vmatpush2.bf16.msra.mxu0 0
        %2897 = vmatprep.subr.bf16.mxu0 0
        %2898 = vmatpush2.bf16.msra.mxu0 0
        %2899 = vmatprep.subr.bf16.mxu0 0
        %2900 = vmatpush2.bf16.msra.mxu0 0
        %2901 = vmatprep.subr.bf16.mxu0 0
        %2902 = vmatpush2.bf16.msra.mxu0 0
        %2903 = vmatprep.mubr.bf16.mxu0 0
        %2904 = vmatmul.mubr.bf16.gmra.mxu0 %v2655
        %v2905 = vpop.f32.mrf.mxu0
        %v2906 = vadd.f32 %v2818, %v2905
        %v2907 = vpop.f32.mrf.mxu0
        %v2908 = vpop.f32.mrf.mxu0
        %v2909 = vpop.f32.mrf.mxu0
        %2910 = vdwg.mxu0
        %s2911 = scalar_lea.vmem [#allocation18], 4
        %v2912 = vld [vmem:[%s2911] sm:$0x3]
        %v2914 = vsel %vm1687, %v2912, 0
        %2916 = vmatprep.subr.bf16.mxu0 0
        %2917 = vmatpush1.bf16.msra.mxu0 0
        %2918 = vmatprep.subr.bf16.mxu0 0
        %2919 = vmatpush1.bf16.msra.mxu0 0
        %2920 = vmatprep.subr.bf16.mxu0 0
        %2921 = vmatpush1.bf16.msra.mxu0 0
        %2922 = vmatprep.subr.bf16.mxu0 0
        %2923 = vmatpush1.bf16.msra.mxu0 0
        %2924 = vmatprep.subr.bf16.mxu0 0
        %2925 = vmatpush1.bf16.msra.mxu0 0
        %2926 = vmatprep.subr.bf16.mxu0 0
        %2927 = vmatpush1.bf16.msra.mxu0 0
        %2928 = vmatprep.subr.bf16.mxu0 0
        %2929 = vmatpush1.bf16.msra.mxu0 0
        %2930 = vmatprep.subr.bf16.mxu0 0
        %2931 = vmatpush1.bf16.msra.mxu0 %v2613
        %2932 = vmatprep.subr.bf16.mxu0 0
        %2933 = vmatpush2.bf16.msra.mxu0 0
        %2934 = vmatprep.subr.bf16.mxu0 0
        %2935 = vmatpush2.bf16.msra.mxu0 0
        %2936 = vmatprep.subr.bf16.mxu0 0
        %2937 = vmatpush2.bf16.msra.mxu0 0
        %2938 = vmatprep.subr.bf16.mxu0 0
        %2939 = vmatpush2.bf16.msra.mxu0 0
        %2940 = vmatprep.subr.bf16.mxu0 0
        %2941 = vmatpush2.bf16.msra.mxu0 0
        %2942 = vmatprep.subr.bf16.mxu0 0
        %2943 = vmatpush2.bf16.msra.mxu0 0
        %2944 = vmatprep.subr.bf16.mxu0 0
        %2945 = vmatpush2.bf16.msra.mxu0 0
        %2946 = vmatprep.subr.bf16.mxu0 0
        %2947 = vmatpush2.bf16.msra.mxu0 0
        %2948 = vmatprep.mubr.bf16.mxu0 0
        %2949 = vmatmul.mubr.bf16.gmra.mxu0 %v2914
        %v2950 = vpop.f32.mrf.mxu0
        %v2951 = vadd.f32 0.0, %v2950
        %v2952 = vpop.f32.mrf.mxu0
        %v2953 = vpop.f32.mrf.mxu0
        %v2954 = vpop.f32.mrf.mxu0
        %2955 = vdwg.mxu0
        %v2956 = vpack.c.bf16 %v2951, %v2951
        %s2957 = scalar_lea.vmem %s11, 128
        %v2958 = vld [vmem:[%s2957] sm:$0xf]
        %v2959 = vld [vmem:[%s2957 + $0x4] sm:$0xf]
        %v2960 = vld [vmem:[%s2957 + $0x8] sm:$0xf]
        %v2961 = vld [vmem:[%s2957 + $0xc] sm:$0xf]
        %v2962 = vld [vmem:[%s2957 + $0x10] sm:$0xf]
        %v2963 = vld [vmem:[%s2957 + $0x14] sm:$0xf]
        %v2964 = vld [vmem:[%s2957 + $0x18] sm:$0xf]
        %v2965 = vld [vmem:[%s2957 + $0x1c] sm:$0xf]
        %v2966 = vld [vmem:[%s2957 + $0x20] sm:$0xf]
        %v2967 = vld [vmem:[%s2957 + $0x24] sm:$0xf]
        %v2968 = vld [vmem:[%s2957 + $0x28] sm:$0xf]
        %v2969 = vld [vmem:[%s2957 + $0x2c] sm:$0xf]
        %v2970 = vld [vmem:[%s2957 + $0x30] sm:$0xf]
        %v2971 = vld [vmem:[%s2957 + $0x34] sm:$0xf]
        %v2972 = vld [vmem:[%s2957 + $0x38] sm:$0xf]
        %v2973 = vld [vmem:[%s2957 + $0x3c] sm:$0xf]
        %v2990 = vunpack.c.l.b16 %v2958
        %v2991 = vunpack.c.l.b16 %v2959
        %v2992 = vunpack.c.l.b16 %v2960
        %v2993 = vunpack.c.l.b16 %v2961
        %v2994 = vunpack.c.l.b16 %v2962
        %v2995 = vunpack.c.l.b16 %v2963
        %v2996 = vunpack.c.l.b16 %v2964
        %v2997 = vunpack.c.l.b16 %v2965
        %v2998 = vunpack.c.l.b16 %v2966
        %v2999 = vunpack.c.l.b16 %v2967
        %v3000 = vunpack.c.l.b16 %v2968
        %v3001 = vunpack.c.l.b16 %v2969
        %v3002 = vunpack.c.l.b16 %v2970
        %v3003 = vunpack.c.l.b16 %v2971
        %v3004 = vunpack.c.l.b16 %v2972
        %v3005 = vunpack.c.l.b16 %v2973
        %v3006 = vpack.c.b16 %v2991, %v2990
        %v3007 = vpack.c.b16 %v2993, %v2992
        %v3008 = vpack.c.b16 %v2995, %v2994
        %v3009 = vpack.c.b16 %v2997, %v2996
        %v3010 = vpack.c.b16 %v2999, %v2998
        %v3011 = vpack.c.b16 %v3001, %v3000
        %v3012 = vpack.c.b16 %v3003, %v3002
        %v3013 = vpack.c.b16 %v3005, %v3004
        %3022 = vmatprep.subr.bf16.mxu0 0
        %3023 = vmatpush1.bf16.msra.mxu0 %v3013
        %3024 = vmatprep.subr.bf16.mxu0 0
        %3025 = vmatpush1.bf16.msra.mxu0 %v3012
        %3026 = vmatprep.subr.bf16.mxu0 0
        %3027 = vmatpush1.bf16.msra.mxu0 %v3011
        %3028 = vmatprep.subr.bf16.mxu0 0
        %3029 = vmatpush1.bf16.msra.mxu0 %v3010
        %3030 = vmatprep.subr.bf16.mxu0 0
        %3031 = vmatpush1.bf16.msra.mxu0 %v3009
        %3032 = vmatprep.subr.bf16.mxu0 0
        %3033 = vmatpush1.bf16.msra.mxu0 %v3008
        %3034 = vmatprep.subr.bf16.mxu0 0
        %3035 = vmatpush1.bf16.msra.mxu0 %v3007
        %3036 = vmatprep.subr.bf16.mxu0 0
        %3037 = vmatpush1.bf16.msra.mxu0 %v3006
        %3038 = vmatprep.subr.bf16.mxu0 0
        %3039 = vmatpush2.bf16.msra.mxu0 0
        %3040 = vmatprep.subr.bf16.mxu0 0
        %3041 = vmatpush2.bf16.msra.mxu0 0
        %3042 = vmatprep.subr.bf16.mxu0 0
        %3043 = vmatpush2.bf16.msra.mxu0 0
        %3044 = vmatprep.subr.bf16.mxu0 0
        %3045 = vmatpush2.bf16.msra.mxu0 0
        %3046 = vmatprep.subr.bf16.mxu0 0
        %3047 = vmatpush2.bf16.msra.mxu0 0
        %3048 = vmatprep.subr.bf16.mxu0 0
        %3049 = vmatpush2.bf16.msra.mxu0 0
        %3050 = vmatprep.subr.bf16.mxu0 0
        %3051 = vmatpush2.bf16.msra.mxu0 0
        %3052 = vmatprep.subr.bf16.mxu0 0
        %3053 = vmatpush2.bf16.msra.mxu0 0
        %3054 = vmatprep.mubr.bf16.mxu0 0
        %3055 = vmatmul.mubr.bf16.gmra.mxu0 %v2956
        %v3056 = vpop.f32.mrf.mxu0
        %v3057 = vadd.f32 0.0, %v3056
        %v3058 = vpop.f32.mrf.mxu0
        %v3059 = vpop.f32.mrf.mxu0
        %v3060 = vpop.f32.mrf.mxu0
        %3061 = vdwg.mxu0
        %v3062 = vadd.f32 %v2906, %v3057
        %s3063 = scalar_lea.vmem [#allocation18], 6
        %v3064 = vld [vmem:[%s3063] sm:$0x3]
        %v3066 = vsel %vm1687, %v3064, 0
        %3068 = vmatprep.subr.bf16.mxu0 0
        %3069 = vmatpush1.bf16.msra.mxu0 0
        %3070 = vmatprep.subr.bf16.mxu0 0
        %3071 = vmatpush1.bf16.msra.mxu0 0
        %3072 = vmatprep.subr.bf16.mxu0 0
        %3073 = vmatpush1.bf16.msra.mxu0 0
        %3074 = vmatprep.subr.bf16.mxu0 0
        %3075 = vmatpush1.bf16.msra.mxu0 0
        %3076 = vmatprep.subr.bf16.mxu0 0
        %3077 = vmatpush1.bf16.msra.mxu0 0
        %3078 = vmatprep.subr.bf16.mxu0 0
        %3079 = vmatpush1.bf16.msra.mxu0 0
        %3080 = vmatprep.subr.bf16.mxu0 0
        %3081 = vmatpush1.bf16.msra.mxu0 0
        %3082 = vmatprep.subr.bf16.mxu0 0
        %3083 = vmatpush1.bf16.msra.mxu0 %v2613
        %3084 = vmatprep.subr.bf16.mxu0 0
        %3085 = vmatpush2.bf16.msra.mxu0 0
        %3086 = vmatprep.subr.bf16.mxu0 0
        %3087 = vmatpush2.bf16.msra.mxu0 0
        %3088 = vmatprep.subr.bf16.mxu0 0
        %3089 = vmatpush2.bf16.msra.mxu0 0
        %3090 = vmatprep.subr.bf16.mxu0 0
        %3091 = vmatpush2.bf16.msra.mxu0 0
        %3092 = vmatprep.subr.bf16.mxu0 0
        %3093 = vmatpush2.bf16.msra.mxu0 0
        %3094 = vmatprep.subr.bf16.mxu0 0
        %3095 = vmatpush2.bf16.msra.mxu0 0
        %3096 = vmatprep.subr.bf16.mxu0 0
        %3097 = vmatpush2.bf16.msra.mxu0 0
        %3098 = vmatprep.subr.bf16.mxu0 0
        %3099 = vmatpush2.bf16.msra.mxu0 0
        %3100 = vmatprep.mubr.bf16.mxu0 0
        %3101 = vmatmul.mubr.bf16.gmra.mxu0 %v3066
        %v3102 = vpop.f32.mrf.mxu0
        %v3103 = vadd.f32 0.0, %v3102
        %v3104 = vpop.f32.mrf.mxu0
        %v3105 = vpop.f32.mrf.mxu0
        %v3106 = vpop.f32.mrf.mxu0
        %3107 = vdwg.mxu0
        %v3108 = vpack.c.bf16 %v3103, %v3103
        %s3109 = scalar_lea.vmem %s11, 192
        %v3110 = vld [vmem:[%s3109] sm:$0xf]
        %v3111 = vld [vmem:[%s3109 + $0x4] sm:$0xf]
        %v3112 = vld [vmem:[%s3109 + $0x8] sm:$0xf]
        %v3113 = vld [vmem:[%s3109 + $0xc] sm:$0xf]
        %v3114 = vld [vmem:[%s3109 + $0x10] sm:$0xf]
        %v3115 = vld [vmem:[%s3109 + $0x14] sm:$0xf]
        %v3116 = vld [vmem:[%s3109 + $0x18] sm:$0xf]
        %v3117 = vld [vmem:[%s3109 + $0x1c] sm:$0xf]
        %v3118 = vld [vmem:[%s3109 + $0x20] sm:$0xf]
        %v3119 = vld [vmem:[%s3109 + $0x24] sm:$0xf]
        %v3120 = vld [vmem:[%s3109 + $0x28] sm:$0xf]
        %v3121 = vld [vmem:[%s3109 + $0x2c] sm:$0xf]
        %v3122 = vld [vmem:[%s3109 + $0x30] sm:$0xf]
        %v3123 = vld [vmem:[%s3109 + $0x34] sm:$0xf]
        %v3124 = vld [vmem:[%s3109 + $0x38] sm:$0xf]
        %v3125 = vld [vmem:[%s3109 + $0x3c] sm:$0xf]
        %v3142 = vunpack.c.l.b16 %v3110
        %v3143 = vunpack.c.l.b16 %v3111
        %v3144 = vunpack.c.l.b16 %v3112
        %v3145 = vunpack.c.l.b16 %v3113
        %v3146 = vunpack.c.l.b16 %v3114
        %v3147 = vunpack.c.l.b16 %v3115
        %v3148 = vunpack.c.l.b16 %v3116
        %v3149 = vunpack.c.l.b16 %v3117
        %v3150 = vunpack.c.l.b16 %v3118
        %v3151 = vunpack.c.l.b16 %v3119
        %v3152 = vunpack.c.l.b16 %v3120
        %v3153 = vunpack.c.l.b16 %v3121
        %v3154 = vunpack.c.l.b16 %v3122
        %v3155 = vunpack.c.l.b16 %v3123
        %v3156 = vunpack.c.l.b16 %v3124
        %v3157 = vunpack.c.l.b16 %v3125
        %v3158 = vpack.c.b16 %v3143, %v3142
        %v3159 = vpack.c.b16 %v3145, %v3144
        %v3160 = vpack.c.b16 %v3147, %v3146
        %v3161 = vpack.c.b16 %v3149, %v3148
        %v3162 = vpack.c.b16 %v3151, %v3150
        %v3163 = vpack.c.b16 %v3153, %v3152
        %v3164 = vpack.c.b16 %v3155, %v3154
        %v3165 = vpack.c.b16 %v3157, %v3156
        %3174 = vmatprep.subr.bf16.mxu0 0
        %3175 = vmatpush1.bf16.msra.mxu0 %v3165
        %3176 = vmatprep.subr.bf16.mxu0 0
        %3177 = vmatpush1.bf16.msra.mxu0 %v3164
        %3178 = vmatprep.subr.bf16.mxu0 0
        %3179 = vmatpush1.bf16.msra.mxu0 %v3163
        %3180 = vmatprep.subr.bf16.mxu0 0
        %3181 = vmatpush1.bf16.msra.mxu0 %v3162
        %3182 = vmatprep.subr.bf16.mxu0 0
        %3183 = vmatpush1.bf16.msra.mxu0 %v3161
        %3184 = vmatprep.subr.bf16.mxu0 0
        %3185 = vmatpush1.bf16.msra.mxu0 %v3160
        %3186 = vmatprep.subr.bf16.mxu0 0
        %3187 = vmatpush1.bf16.msra.mxu0 %v3159
        %3188 = vmatprep.subr.bf16.mxu0 0
        %3189 = vmatpush1.bf16.msra.mxu0 %v3158
        %3190 = vmatprep.subr.bf16.mxu0 0
        %3191 = vmatpush2.bf16.msra.mxu0 0
        %3192 = vmatprep.subr.bf16.mxu0 0
        %3193 = vmatpush2.bf16.msra.mxu0 0
        %3194 = vmatprep.subr.bf16.mxu0 0
        %3195 = vmatpush2.bf16.msra.mxu0 0
        %3196 = vmatprep.subr.bf16.mxu0 0
        %3197 = vmatpush2.bf16.msra.mxu0 0
        %3198 = vmatprep.subr.bf16.mxu0 0
        %3199 = vmatpush2.bf16.msra.mxu0 0
        %3200 = vmatprep.subr.bf16.mxu0 0
        %3201 = vmatpush2.bf16.msra.mxu0 0
        %3202 = vmatprep.subr.bf16.mxu0 0
        %3203 = vmatpush2.bf16.msra.mxu0 0
        %3204 = vmatprep.subr.bf16.mxu0 0
        %3205 = vmatpush2.bf16.msra.mxu0 0
        %3206 = vmatprep.mubr.bf16.mxu0 0
        %3207 = vmatmul.mubr.bf16.gmra.mxu0 %v3108
        %v3208 = vpop.f32.mrf.mxu0
        %v3209 = vadd.f32 0.0, %v3208
        %v3210 = vpop.f32.mrf.mxu0
        %v3211 = vpop.f32.mrf.mxu0
        %v3212 = vpop.f32.mrf.mxu0
        %3213 = vdwg.mxu0
        %v3214 = vadd.f32 %v3062, %v3209
        %v3215 = vsel %vm2611, %v3214, 0.0
        %v3216 = vrot.slane %v3215, 4
        %v3217 = vadd.f32 %v3215, %v3216
        %v3218 = vrot.slane %v3217, 2
        %v3219 = vadd.f32 %v3217, %v3218
        %v3220 = vrot.slane %v3219, 1
        %v3221 = vadd.f32 %v3219, %v3220
        %v3222 = vmul.f32 %v3214, %v3214
        %v3223 = vsel %vm2611, %v3222, 0.0
        %v3224 = vrot.slane %v3223, 4
        %v3225 = vadd.f32 %v3223, %v3224
        %v3226 = vrot.slane %v3225, 2
        %v3227 = vadd.f32 %v3225, %v3226
        %v3228 = vrot.slane %v3227, 1
        %v3229 = vadd.f32 %v3227, %v3228
        %v3230 = vsel %vm1572, %v3221, %v3229
        %v3231 = vld [vmem:[#allocation21] sm:$0xff]
        %v3232 = vld [vmem:[#allocation21 + $0x8] sm:$0xff]
        %v3233 = vld [vmem:[#allocation21 + $0x10] sm:$0xff]
        %v3234 = vld [vmem:[#allocation21 + $0x18] sm:$0xff]
        %v3235 = vld [vmem:[#allocation21 + $0x20] sm:$0xff]
        %v3236 = vld [vmem:[#allocation21 + $0x28] sm:$0xff]
        %v3237 = vld [vmem:[#allocation21 + $0x30] sm:$0xff]
        %v3238 = vld [vmem:[#allocation21 + $0x38] sm:$0xff]
        %v3239 = vld [vmem:[#allocation21 + $0x40] sm:$0xff]
        %v3240 = vld [vmem:[#allocation21 + $0x48] sm:$0xff]
        %v3241 = vld [vmem:[#allocation21 + $0x50] sm:$0xff]
        %v3242 = vld [vmem:[#allocation21 + $0x58] sm:$0xff]
        %v3243 = vld [vmem:[#allocation21 + $0x60] sm:$0xff]
        %v3244 = vld [vmem:[#allocation21 + $0x68] sm:$0xff]
        %v3245 = vld [vmem:[#allocation21 + $0x70] sm:$0xff]
        %v3246 = vld [vmem:[#allocation21 + $0x78] sm:$0xff]
        %3247 = vmatprep.subr.mxu0 0.0
        %3248 = vmatpush1.msra.mxu0 %v3246
        %3249 = vmatprep.subr.mxu0 0.0
        %3250 = vmatpush1.msra.mxu0 %v3245
        %3251 = vmatprep.subr.mxu0 0.0
        %3252 = vmatpush1.msra.mxu0 %v3244
        %3253 = vmatprep.subr.mxu0 0.0
        %3254 = vmatpush1.msra.mxu0 %v3243
        %3255 = vmatprep.subr.mxu0 0.0
        %3256 = vmatpush1.msra.mxu0 %v3242
        %3257 = vmatprep.subr.mxu0 0.0
        %3258 = vmatpush1.msra.mxu0 %v3241
        %3259 = vmatprep.subr.mxu0 0.0
        %3260 = vmatpush1.msra.mxu0 %v3240
        %3261 = vmatprep.subr.mxu0 0.0
        %3262 = vmatpush1.msra.mxu0 %v3239
        %3263 = vmatprep.subr.mxu0 0.0
        %3264 = vmatpush1.msra.mxu0 %v3238
        %3265 = vmatprep.subr.mxu0 0.0
        %3266 = vmatpush1.msra.mxu0 %v3237
        %3267 = vmatprep.subr.mxu0 0.0
        %3268 = vmatpush1.msra.mxu0 %v3236
        %3269 = vmatprep.subr.mxu0 0.0
        %3270 = vmatpush1.msra.mxu0 %v3235
        %3271 = vmatprep.subr.mxu0 0.0
        %3272 = vmatpush1.msra.mxu0 %v3234
        %3273 = vmatprep.subr.mxu0 0.0
        %3274 = vmatpush1.msra.mxu0 %v3233
        %3275 = vmatprep.subr.mxu0 0.0
        %3276 = vmatpush1.msra.mxu0 %v3232
        %3277 = vmatprep.subr.mxu0 0.0
        %3278 = vmatpush1.msra.mxu0 %v3231
        %3279 = vmatprep.subr.mxu0 0.0
        %3280 = vmatpush2.msra.mxu0 0.0
        %3281 = vmatprep.subr.mxu0 0.0
        %3282 = vmatpush2.msra.mxu0 0.0
        %3283 = vmatprep.subr.mxu0 0.0
        %3284 = vmatpush2.msra.mxu0 0.0
        %3285 = vmatprep.subr.mxu0 0.0
        %3286 = vmatpush2.msra.mxu0 0.0
        %3287 = vmatprep.subr.mxu0 0.0
        %3288 = vmatpush2.msra.mxu0 0.0
        %3289 = vmatprep.subr.mxu0 0.0
        %3290 = vmatpush2.msra.mxu0 0.0
        %3291 = vmatprep.subr.mxu0 0.0
        %3292 = vmatpush2.msra.mxu0 0.0
        %3293 = vmatprep.subr.mxu0 0.0
        %3294 = vmatpush2.msra.mxu0 0.0
        %3295 = vmatprep.subr.mxu0 0.0
        %3296 = vmatpush2.msra.mxu0 0.0
        %3297 = vmatprep.subr.mxu0 0.0
        %3298 = vmatpush2.msra.mxu0 0.0
        %3299 = vmatprep.subr.mxu0 0.0
        %3300 = vmatpush2.msra.mxu0 0.0
        %3301 = vmatprep.subr.mxu0 0.0
        %3302 = vmatpush2.msra.mxu0 0.0
        %3303 = vmatprep.subr.mxu0 0.0
        %3304 = vmatpush2.msra.mxu0 0.0
        %3305 = vmatprep.subr.mxu0 0.0
        %3306 = vmatpush2.msra.mxu0 0.0
        %3307 = vmatprep.subr.mxu0 0.0
        %3308 = vmatpush2.msra.mxu0 0.0
        %3309 = vmatprep.subr.mxu0 0.0
        %3310 = vmatpush2.msra.mxu0 0.0
        %3311 = vmatprep.mubr.f32.mxu0 0.0
        %3312 = vmatmul.mubr.f32.gmra.mxu0 %v3230
        %v3313 = vpop.f32.mrf.mxu0
        %v3314 = vadd.f32 0.0, %v3313
        %v3315 = vpop.f32.mrf.mxu0
        %3316 = vdwg.mxu0
        %v3317 = vmul.f32 %v3314, 0.0625
        %v3318 = vmul.f32 %v3317, %v3317
        %v3320 = vrot.slane %v3318, 7
        %v3322 = vsub.f32 %v3317, %v3320
        %v3323 = vld [vmem:[#allocation19] sm:$0x1]
        %v3324 = vld [vmem:[#allocation19 + $0x1] sm:$0x1]
        %v3325 = vld [vmem:[#allocation19 + $0x2] sm:$0x1]
        %v3326 = vadd.f32 %v3322, 1e-05
        %v3327 = vrsqrt.pop %v3326
        %v3329 = vrot.slane %v3327, 1
        %v3331 = vmul.f32 %v3323, %v3329
        %v3332 = vmul.f32 %v3317, %v3331
        %v3333 = vsub.f32 %v3324, %v3332
        %v3335 = vrot.slane %v3333, 7
        %v3338 = vrot.slane %v3325, 6
        %v3340 = vsel %vm1572, %v3331, %v3335
        %v3341 = vsel %vm1684, %v3340, %v3338
        %v3342 = vld [vmem:[#allocation22] sm:$0xff]
        %v3343 = vld [vmem:[#allocation22 + $0x8] sm:$0xff]
        %v3344 = vld [vmem:[#allocation22 + $0x10] sm:$0xff]
        %v3345 = vld [vmem:[#allocation22 + $0x18] sm:$0xff]
        %v3347 = vsel %vm1039, %v3341, 0
        %3349 = vmatprep.subr.mxu0 0.0
        %3350 = vmatpush1.msra.mxu0 0.0
        %3351 = vmatprep.subr.mxu0 0.0
        %3352 = vmatpush1.msra.mxu0 0.0
        %3353 = vmatprep.subr.mxu0 0.0
        %3354 = vmatpush1.msra.mxu0 0.0
        %3355 = vmatprep.subr.mxu0 0.0
        %3356 = vmatpush1.msra.mxu0 0.0
        %3357 = vmatprep.subr.mxu0 0.0
        %3358 = vmatpush1.msra.mxu0 0.0
        %3359 = vmatprep.subr.mxu0 0.0
        %3360 = vmatpush1.msra.mxu0 0.0
        %3361 = vmatprep.subr.mxu0 0.0
        %3362 = vmatpush1.msra.mxu0 0.0
        %3363 = vmatprep.subr.mxu0 0.0
        %3364 = vmatpush1.msra.mxu0 0.0
        %3365 = vmatprep.subr.mxu0 0.0
        %3366 = vmatpush1.msra.mxu0 0.0
        %3367 = vmatprep.subr.mxu0 0.0
        %3368 = vmatpush1.msra.mxu0 0.0
        %3369 = vmatprep.subr.mxu0 0.0
        %3370 = vmatpush1.msra.mxu0 0.0
        %3371 = vmatprep.subr.mxu0 0.0
        %3372 = vmatpush1.msra.mxu0 0.0
        %3373 = vmatprep.subr.mxu0 0.0
        %3374 = vmatpush1.msra.mxu0 %v3345
        %3375 = vmatprep.subr.mxu0 0.0
        %3376 = vmatpush1.msra.mxu0 %v3344
        %3377 = vmatprep.subr.mxu0 0.0
        %3378 = vmatpush1.msra.mxu0 %v3343
        %3379 = vmatprep.subr.mxu0 0.0
        %3380 = vmatpush1.msra.mxu0 %v3342
        %3381 = vmatprep.subr.mxu0 0.0
        %3382 = vmatpush2.msra.mxu0 0.0
        %3383 = vmatprep.subr.mxu0 0.0
        %3384 = vmatpush2.msra.mxu0 0.0
        %3385 = vmatprep.subr.mxu0 0.0
        %3386 = vmatpush2.msra.mxu0 0.0
        %3387 = vmatprep.subr.mxu0 0.0
        %3388 = vmatpush2.msra.mxu0 0.0
        %3389 = vmatprep.subr.mxu0 0.0
        %3390 = vmatpush2.msra.mxu0 0.0
        %3391 = vmatprep.subr.mxu0 0.0
        %3392 = vmatpush2.msra.mxu0 0.0
        %3393 = vmatprep.subr.mxu0 0.0
        %3394 = vmatpush2.msra.mxu0 0.0
        %3395 = vmatprep.subr.mxu0 0.0
        %3396 = vmatpush2.msra.mxu0 0.0
        %3397 = vmatprep.subr.mxu0 0.0
        %3398 = vmatpush2.msra.mxu0 0.0
        %3399 = vmatprep.subr.mxu0 0.0
        %3400 = vmatpush2.msra.mxu0 0.0
        %3401 = vmatprep.subr.mxu0 0.0
        %3402 = vmatpush2.msra.mxu0 0.0
        %3403 = vmatprep.subr.mxu0 0.0
        %3404 = vmatpush2.msra.mxu0 0.0
        %3405 = vmatprep.subr.mxu0 0.0
        %3406 = vmatpush2.msra.mxu0 0.0
        %3407 = vmatprep.subr.mxu0 0.0
        %3408 = vmatpush2.msra.mxu0 0.0
        %3409 = vmatprep.subr.mxu0 0.0
        %3410 = vmatpush2.msra.mxu0 0.0
        %3411 = vmatprep.subr.mxu0 0.0
        %3412 = vmatpush2.msra.mxu0 0.0
        %3413 = vmatprep.mubr.f32.mxu0 0.0
        %3414 = vmatmul.mubr.f32.gmra.mxu0 %v3347
        %v3415 = vpop.f32.mrf.mxu0
        %v3416 = vadd.f32 0.0, %v3415
        %v3417 = vpop.f32.mrf.mxu0
        %3418 = vdwg.mxu0
        %v3419 = vlaneseq
        %v3420 = vshrl.u32 %v3419, 7
        %v3421 = vsub.s32 0, %v3420
        %v3422 = vrot.slane %v3416, %v3421
        %v3423 = vmul.f32 %v3214, %v3422
        %v3424 = vlaneseq
        %v3425 = vshrl.u32 %v3424, 7
        %v3426 = vsub.s32 1, %v3425
        %v3427 = vrot.slane %v3416, %v3426
        %v3428 = vadd.f32 %v3423, %v3427
        %vm3429 = vcmp.ge.f32.partialorder %v3428, 0.0
        %v3430 = vlaneseq
        %v3431 = vshrl.u32 %v3430, 7
        %v3432 = vsub.s32 2, %v3431
        %v3433 = vrot.slane %v3416, %v3432
        %v3434 = vmul.f32 %v3433, %v3428
        %v3435 = vsel %vm3429, %v3428, %v3434
        %v3436 = vpack.c.bf16 %v3435, %v3435
        %v3437 = vld [vmem:[#allocation24] sm:$0x1]
        %vm3438 = vcmask 31744
        %v3440 = vsel %vm3438, %v3437, 0
        %v3443 = vsel %vm1684, %v3436, 0
        %3445 = vmatprep.subr.bf16.mxu0 0
        %3446 = vmatpush1.bf16.msra.mxu0 0
        %3447 = vmatprep.subr.bf16.mxu0 0
        %3448 = vmatpush1.bf16.msra.mxu0 0
        %3449 = vmatprep.subr.bf16.mxu0 0
        %3450 = vmatpush1.bf16.msra.mxu0 0
        %3451 = vmatprep.subr.bf16.mxu0 0
        %3452 = vmatpush1.bf16.msra.mxu0 0
        %3453 = vmatprep.subr.bf16.mxu0 0
        %3454 = vmatpush1.bf16.msra.mxu0 0
        %3455 = vmatprep.subr.bf16.mxu0 0
        %3456 = vmatpush1.bf16.msra.mxu0 0
        %3457 = vmatprep.subr.bf16.mxu0 0
        %3458 = vmatpush1.bf16.msra.mxu0 0
        %3459 = vmatprep.subr.bf16.mxu0 0
        %3460 = vmatpush1.bf16.msra.mxu0 %v3443
        %3461 = vmatprep.subr.bf16.mxu0 0
        %3462 = vmatpush2.bf16.msra.mxu0 0
        %3463 = vmatprep.subr.bf16.mxu0 0
        %3464 = vmatpush2.bf16.msra.mxu0 0
        %3465 = vmatprep.subr.bf16.mxu0 0
        %3466 = vmatpush2.bf16.msra.mxu0 0
        %3467 = vmatprep.subr.bf16.mxu0 0
        %3468 = vmatpush2.bf16.msra.mxu0 0
        %3469 = vmatprep.subr.bf16.mxu0 0
        %3470 = vmatpush2.bf16.msra.mxu0 0
        %3471 = vmatprep.subr.bf16.mxu0 0
        %3472 = vmatpush2.bf16.msra.mxu0 0
        %3473 = vmatprep.subr.bf16.mxu0 0
        %3474 = vmatpush2.bf16.msra.mxu0 0
        %3475 = vmatprep.subr.bf16.mxu0 0
        %3476 = vmatpush2.bf16.msra.mxu0 0
        %3477 = vmatprep.mubr.bf16.mxu0 0
        %3478 = vmatmul.mubr.bf16.gmra.mxu0 %v3440
        %v3479 = vpop.f32.mrf.mxu0
        %v3480 = vadd.f32 0.0, %v3479
        %v3481 = vpop.f32.mrf.mxu0
        %v3482 = vpop.f32.mrf.mxu0
        %v3483 = vpop.f32.mrf.mxu0
        %3484 = vdwg.mxu0
        %v3485 = vpack.c.bf16 %v3480, %v3480
        %v3486 = vld [vmem:[%s16] sm:$0xf]
        %v3487 = vld [vmem:[%s16 + $0x4] sm:$0xf]
        %v3488 = vld [vmem:[%s16 + $0x8] sm:$0xf]
        %v3489 = vld [vmem:[%s16 + $0xc] sm:$0xf]
        %v3490 = vld [vmem:[%s16 + $0x10] sm:$0xf]
        %v3491 = vld [vmem:[%s16 + $0x14] sm:$0xf]
        %v3492 = vld [vmem:[%s16 + $0x18] sm:$0xf]
        %v3493 = vld [vmem:[%s16 + $0x1c] sm:$0xf]
        %v3494 = vld [vmem:[%s16 + $0x20] sm:$0xf]
        %v3495 = vld [vmem:[%s16 + $0x24] sm:$0xf]
        %v3496 = vld [vmem:[%s16 + $0x28] sm:$0xf]
        %v3497 = vld [vmem:[%s16 + $0x2c] sm:$0xf]
        %v3498 = vld [vmem:[%s16 + $0x30] sm:$0xf]
        %v3499 = vld [vmem:[%s16 + $0x34] sm:$0xf]
        %v3500 = vld [vmem:[%s16 + $0x38] sm:$0xf]
        %v3501 = vld [vmem:[%s16 + $0x3c] sm:$0xf]
        %s3502 = scalar_lea.vmem [#allocation24], 1
        %v3503 = vld [vmem:[%s3502] sm:$0x1]
        %v3505 = vsel %vm3438, %v3503, 0
        %3507 = vmatprep.subr.bf16.mxu0 0
        %3508 = vmatpush1.bf16.msra.mxu0 0
        %3509 = vmatprep.subr.bf16.mxu0 0
        %3510 = vmatpush1.bf16.msra.mxu0 0
        %3511 = vmatprep.subr.bf16.mxu0 0
        %3512 = vmatpush1.bf16.msra.mxu0 0
        %3513 = vmatprep.subr.bf16.mxu0 0
        %3514 = vmatpush1.bf16.msra.mxu0 0
        %3515 = vmatprep.subr.bf16.mxu0 0
        %3516 = vmatpush1.bf16.msra.mxu0 0
        %3517 = vmatprep.subr.bf16.mxu0 0
        %3518 = vmatpush1.bf16.msra.mxu0 0
        %3519 = vmatprep.subr.bf16.mxu0 0
        %3520 = vmatpush1.bf16.msra.mxu0 0
        %3521 = vmatprep.subr.bf16.mxu0 0
        %3522 = vmatpush1.bf16.msra.mxu0 %v3443
        %3523 = vmatprep.subr.bf16.mxu0 0
        %3524 = vmatpush2.bf16.msra.mxu0 0
        %3525 = vmatprep.subr.bf16.mxu0 0
        %3526 = vmatpush2.bf16.msra.mxu0 0
        %3527 = vmatprep.subr.bf16.mxu0 0
        %3528 = vmatpush2.bf16.msra.mxu0 0
        %3529 = vmatprep.subr.bf16.mxu0 0
        %3530 = vmatpush2.bf16.msra.mxu0 0
        %3531 = vmatprep.subr.bf16.mxu0 0
        %3532 = vmatpush2.bf16.msra.mxu0 0
        %3533 = vmatprep.subr.bf16.mxu0 0
        %3534 = vmatpush2.bf16.msra.mxu0 0
        %3535 = vmatprep.subr.bf16.mxu0 0
        %3536 = vmatpush2.bf16.msra.mxu0 0
        %3537 = vmatprep.subr.bf16.mxu0 0
        %3538 = vmatpush2.bf16.msra.mxu0 0
        %3539 = vmatprep.mubr.bf16.mxu0 0
        %3540 = vmatmul.mubr.bf16.gmra.mxu0 %v3505
        %v3541 = vpop.f32.mrf.mxu0
        %v3542 = vadd.f32 0.0, %v3541
        %v3543 = vpop.f32.mrf.mxu0
        %v3544 = vpop.f32.mrf.mxu0
        %v3545 = vpop.f32.mrf.mxu0
        %3546 = vdwg.mxu0
        %v3547 = vpack.c.bf16 %v3542, %v3542
        %s3548 = scalar_lea.vmem %s16, 64
        %v3549 = vld [vmem:[%s3548] sm:$0xf]
        %v3550 = vld [vmem:[%s3548 + $0x4] sm:$0xf]
        %v3551 = vld [vmem:[%s3548 + $0x8] sm:$0xf]
        %v3552 = vld [vmem:[%s3548 + $0xc] sm:$0xf]
        %v3553 = vld [vmem:[%s3548 + $0x10] sm:$0xf]
        %v3554 = vld [vmem:[%s3548 + $0x14] sm:$0xf]
        %v3555 = vld [vmem:[%s3548 + $0x18] sm:$0xf]
        %v3556 = vld [vmem:[%s3548 + $0x1c] sm:$0xf]
        %v3557 = vld [vmem:[%s3548 + $0x20] sm:$0xf]
        %v3558 = vld [vmem:[%s3548 + $0x24] sm:$0xf]
        %v3559 = vld [vmem:[%s3548 + $0x28] sm:$0xf]
        %v3560 = vld [vmem:[%s3548 + $0x2c] sm:$0xf]
        %v3561 = vld [vmem:[%s3548 + $0x30] sm:$0xf]
        %v3562 = vld [vmem:[%s3548 + $0x34] sm:$0xf]
        %v3563 = vld [vmem:[%s3548 + $0x38] sm:$0xf]
        %v3564 = vld [vmem:[%s3548 + $0x3c] sm:$0xf]
        %v3581 = vunpack.c.l.b16 %v3549
        %v3582 = vunpack.c.l.b16 %v3550
        %v3583 = vunpack.c.l.b16 %v3551
        %v3584 = vunpack.c.l.b16 %v3552
        %v3585 = vunpack.c.l.b16 %v3553
        %v3586 = vunpack.c.l.b16 %v3554
        %v3587 = vunpack.c.l.b16 %v3555
        %v3588 = vunpack.c.l.b16 %v3556
        %v3589 = vunpack.c.l.b16 %v3557
        %v3590 = vunpack.c.l.b16 %v3558
        %v3591 = vunpack.c.l.b16 %v3559
        %v3592 = vunpack.c.l.b16 %v3560
        %v3593 = vunpack.c.l.b16 %v3561
        %v3594 = vunpack.c.l.b16 %v3562
        %v3595 = vunpack.c.l.b16 %v3563
        %v3596 = vunpack.c.l.b16 %v3564
        %v3597 = vpack.c.b16 %v3582, %v3581
        %v3598 = vpack.c.b16 %v3584, %v3583
        %v3599 = vpack.c.b16 %v3586, %v3585
        %v3600 = vpack.c.b16 %v3588, %v3587
        %v3601 = vpack.c.b16 %v3590, %v3589
        %v3602 = vpack.c.b16 %v3592, %v3591
        %v3603 = vpack.c.b16 %v3594, %v3593
        %v3604 = vpack.c.b16 %v3596, %v3595
        %3613 = vmatprep.subr.bf16.mxu0 0
        %3614 = vmatpush1.bf16.msra.mxu0 %v3604
        %3615 = vmatprep.subr.bf16.mxu0 0
        %3616 = vmatpush1.bf16.msra.mxu0 %v3603
        %3617 = vmatprep.subr.bf16.mxu0 0
        %3618 = vmatpush1.bf16.msra.mxu0 %v3602
        %3619 = vmatprep.subr.bf16.mxu0 0
        %3620 = vmatpush1.bf16.msra.mxu0 %v3601
        %3621 = vmatprep.subr.bf16.mxu0 0
        %3622 = vmatpush1.bf16.msra.mxu0 %v3600
        %3623 = vmatprep.subr.bf16.mxu0 0
        %3624 = vmatpush1.bf16.msra.mxu0 %v3599
        %3625 = vmatprep.subr.bf16.mxu0 0
        %3626 = vmatpush1.bf16.msra.mxu0 %v3598
        %3627 = vmatprep.subr.bf16.mxu0 0
        %3628 = vmatpush1.bf16.msra.mxu0 %v3597
        %3629 = vmatprep.subr.bf16.mxu0 0
        %3630 = vmatpush2.bf16.msra.mxu0 0
        %3631 = vmatprep.subr.bf16.mxu0 0
        %3632 = vmatpush2.bf16.msra.mxu0 0
        %3633 = vmatprep.subr.bf16.mxu0 0
        %3634 = vmatpush2.bf16.msra.mxu0 0
        %3635 = vmatprep.subr.bf16.mxu0 0
        %3636 = vmatpush2.bf16.msra.mxu0 0
        %3637 = vmatprep.subr.bf16.mxu0 0
        %3638 = vmatpush2.bf16.msra.mxu0 0
        %3639 = vmatprep.subr.bf16.mxu0 0
        %3640 = vmatpush2.bf16.msra.mxu0 0
        %3641 = vmatprep.subr.bf16.mxu0 0
        %3642 = vmatpush2.bf16.msra.mxu0 0
        %3643 = vmatprep.subr.bf16.mxu0 0
        %3644 = vmatpush2.bf16.msra.mxu0 0
        %3645 = vmatprep.mubr.bf16.mxu0 0
        %3646 = vmatmul.mubr.bf16.gmra.mxu0 %v3547
        %v3647 = vpop.f32.mrf.mxu0
        %v3648 = vadd.f32 0.0, %v3647
        %v3649 = vpop.f32.mrf.mxu0
        %v3650 = vpop.f32.mrf.mxu0
        %v3651 = vpop.f32.mrf.mxu0
        %3652 = vdwg.mxu0
        %v3669 = vunpack.c.l.b16 %v3486
        %v3670 = vunpack.c.l.b16 %v3487
        %v3671 = vunpack.c.l.b16 %v3488
        %v3672 = vunpack.c.l.b16 %v3489
        %v3673 = vunpack.c.l.b16 %v3490
        %v3674 = vunpack.c.l.b16 %v3491
        %v3675 = vunpack.c.l.b16 %v3492
        %v3676 = vunpack.c.l.b16 %v3493
        %v3677 = vunpack.c.l.b16 %v3494
        %v3678 = vunpack.c.l.b16 %v3495
        %v3679 = vunpack.c.l.b16 %v3496
        %v3680 = vunpack.c.l.b16 %v3497
        %v3681 = vunpack.c.l.b16 %v3498
        %v3682 = vunpack.c.l.b16 %v3499
        %v3683 = vunpack.c.l.b16 %v3500
        %v3684 = vunpack.c.l.b16 %v3501
        %v3685 = vpack.c.b16 %v3670, %v3669
        %v3686 = vpack.c.b16 %v3672, %v3671
        %v3687 = vpack.c.b16 %v3674, %v3673
        %v3688 = vpack.c.b16 %v3676, %v3675
        %v3689 = vpack.c.b16 %v3678, %v3677
        %v3690 = vpack.c.b16 %v3680, %v3679
        %v3691 = vpack.c.b16 %v3682, %v3681
        %v3692 = vpack.c.b16 %v3684, %v3683
        %3701 = vmatprep.subr.bf16.mxu0 0
        %3702 = vmatpush1.bf16.msra.mxu0 %v3692
        %3703 = vmatprep.subr.bf16.mxu0 0
        %3704 = vmatpush1.bf16.msra.mxu0 %v3691
        %3705 = vmatprep.subr.bf16.mxu0 0
        %3706 = vmatpush1.bf16.msra.mxu0 %v3690
        %3707 = vmatprep.subr.bf16.mxu0 0
        %3708 = vmatpush1.bf16.msra.mxu0 %v3689
        %3709 = vmatprep.subr.bf16.mxu0 0
        %3710 = vmatpush1.bf16.msra.mxu0 %v3688
        %3711 = vmatprep.subr.bf16.mxu0 0
        %3712 = vmatpush1.bf16.msra.mxu0 %v3687
        %3713 = vmatprep.subr.bf16.mxu0 0
        %3714 = vmatpush1.bf16.msra.mxu0 %v3686
        %3715 = vmatprep.subr.bf16.mxu0 0
        %3716 = vmatpush1.bf16.msra.mxu0 %v3685
        %3717 = vmatprep.subr.bf16.mxu0 0
        %3718 = vmatpush2.bf16.msra.mxu0 0
        %3719 = vmatprep.subr.bf16.mxu0 0
        %3720 = vmatpush2.bf16.msra.mxu0 0
        %3721 = vmatprep.subr.bf16.mxu0 0
        %3722 = vmatpush2.bf16.msra.mxu0 0
        %3723 = vmatprep.subr.bf16.mxu0 0
        %3724 = vmatpush2.bf16.msra.mxu0 0
        %3725 = vmatprep.subr.bf16.mxu0 0
        %3726 = vmatpush2.bf16.msra.mxu0 0
        %3727 = vmatprep.subr.bf16.mxu0 0
        %3728 = vmatpush2.bf16.msra.mxu0 0
        %3729 = vmatprep.subr.bf16.mxu0 0
        %3730 = vmatpush2.bf16.msra.mxu0 0
        %3731 = vmatprep.subr.bf16.mxu0 0
        %3732 = vmatpush2.bf16.msra.mxu0 0
        %3733 = vmatprep.mubr.bf16.mxu0 0
        %3734 = vmatmul.mubr.bf16.gmra.mxu0 %v3485
        %v3735 = vpop.f32.mrf.mxu0
        %v3736 = vadd.f32 %v3648, %v3735
        %v3737 = vpop.f32.mrf.mxu0
        %v3738 = vpop.f32.mrf.mxu0
        %v3739 = vpop.f32.mrf.mxu0
        %3740 = vdwg.mxu0
        %s3741 = scalar_lea.vmem [#allocation24], 2
        %v3742 = vld [vmem:[%s3741] sm:$0x1]
        %v3744 = vsel %vm3438, %v3742, 0
        %3746 = vmatprep.subr.bf16.mxu0 0
        %3747 = vmatpush1.bf16.msra.mxu0 0
        %3748 = vmatprep.subr.bf16.mxu0 0
        %3749 = vmatpush1.bf16.msra.mxu0 0
        %3750 = vmatprep.subr.bf16.mxu0 0
        %3751 = vmatpush1.bf16.msra.mxu0 0
        %3752 = vmatprep.subr.bf16.mxu0 0
        %3753 = vmatpush1.bf16.msra.mxu0 0
        %3754 = vmatprep.subr.bf16.mxu0 0
        %3755 = vmatpush1.bf16.msra.mxu0 0
        %3756 = vmatprep.subr.bf16.mxu0 0
        %3757 = vmatpush1.bf16.msra.mxu0 0
        %3758 = vmatprep.subr.bf16.mxu0 0
        %3759 = vmatpush1.bf16.msra.mxu0 0
        %3760 = vmatprep.subr.bf16.mxu0 0
        %3761 = vmatpush1.bf16.msra.mxu0 %v3443
        %3762 = vmatprep.subr.bf16.mxu0 0
        %3763 = vmatpush2.bf16.msra.mxu0 0
        %3764 = vmatprep.subr.bf16.mxu0 0
        %3765 = vmatpush2.bf16.msra.mxu0 0
        %3766 = vmatprep.subr.bf16.mxu0 0
        %3767 = vmatpush2.bf16.msra.mxu0 0
        %3768 = vmatprep.subr.bf16.mxu0 0
        %3769 = vmatpush2.bf16.msra.mxu0 0
        %3770 = vmatprep.subr.bf16.mxu0 0
        %3771 = vmatpush2.bf16.msra.mxu0 0
        %3772 = vmatprep.subr.bf16.mxu0 0
        %3773 = vmatpush2.bf16.msra.mxu0 0
        %3774 = vmatprep.subr.bf16.mxu0 0
        %3775 = vmatpush2.bf16.msra.mxu0 0
        %3776 = vmatprep.subr.bf16.mxu0 0
        %3777 = vmatpush2.bf16.msra.mxu0 0
        %3778 = vmatprep.mubr.bf16.mxu0 0
        %3779 = vmatmul.mubr.bf16.gmra.mxu0 %v3744
        %v3780 = vpop.f32.mrf.mxu0
        %v3781 = vadd.f32 0.0, %v3780
        %v3782 = vpop.f32.mrf.mxu0
        %v3783 = vpop.f32.mrf.mxu0
        %v3784 = vpop.f32.mrf.mxu0
        %3785 = vdwg.mxu0
        %v3786 = vpack.c.bf16 %v3781, %v3781
        %s3787 = scalar_lea.vmem %s16, 128
        %v3788 = vld [vmem:[%s3787] sm:$0xf]
        %v3789 = vld [vmem:[%s3787 + $0x4] sm:$0xf]
        %v3790 = vld [vmem:[%s3787 + $0x8] sm:$0xf]
        %v3791 = vld [vmem:[%s3787 + $0xc] sm:$0xf]
        %v3792 = vld [vmem:[%s3787 + $0x10] sm:$0xf]
        %v3793 = vld [vmem:[%s3787 + $0x14] sm:$0xf]
        %v3794 = vld [vmem:[%s3787 + $0x18] sm:$0xf]
        %v3795 = vld [vmem:[%s3787 + $0x1c] sm:$0xf]
        %v3796 = vld [vmem:[%s3787 + $0x20] sm:$0xf]
        %v3797 = vld [vmem:[%s3787 + $0x24] sm:$0xf]
        %v3798 = vld [vmem:[%s3787 + $0x28] sm:$0xf]
        %v3799 = vld [vmem:[%s3787 + $0x2c] sm:$0xf]
        %v3800 = vld [vmem:[%s3787 + $0x30] sm:$0xf]
        %v3801 = vld [vmem:[%s3787 + $0x34] sm:$0xf]
        %v3802 = vld [vmem:[%s3787 + $0x38] sm:$0xf]
        %v3803 = vld [vmem:[%s3787 + $0x3c] sm:$0xf]
        %v3820 = vunpack.c.l.b16 %v3788
        %v3821 = vunpack.c.l.b16 %v3789
        %v3822 = vunpack.c.l.b16 %v3790
        %v3823 = vunpack.c.l.b16 %v3791
        %v3824 = vunpack.c.l.b16 %v3792
        %v3825 = vunpack.c.l.b16 %v3793
        %v3826 = vunpack.c.l.b16 %v3794
        %v3827 = vunpack.c.l.b16 %v3795
        %v3828 = vunpack.c.l.b16 %v3796
        %v3829 = vunpack.c.l.b16 %v3797
        %v3830 = vunpack.c.l.b16 %v3798
        %v3831 = vunpack.c.l.b16 %v3799
        %v3832 = vunpack.c.l.b16 %v3800
        %v3833 = vunpack.c.l.b16 %v3801
        %v3834 = vunpack.c.l.b16 %v3802
        %v3835 = vunpack.c.l.b16 %v3803
        %v3836 = vpack.c.b16 %v3821, %v3820
        %v3837 = vpack.c.b16 %v3823, %v3822
        %v3838 = vpack.c.b16 %v3825, %v3824
        %v3839 = vpack.c.b16 %v3827, %v3826
        %v3840 = vpack.c.b16 %v3829, %v3828
        %v3841 = vpack.c.b16 %v3831, %v3830
        %v3842 = vpack.c.b16 %v3833, %v3832
        %v3843 = vpack.c.b16 %v3835, %v3834
        %3852 = vmatprep.subr.bf16.mxu0 0
        %3853 = vmatpush1.bf16.msra.mxu0 %v3843
        %3854 = vmatprep.subr.bf16.mxu0 0
        %3855 = vmatpush1.bf16.msra.mxu0 %v3842
        %3856 = vmatprep.subr.bf16.mxu0 0
        %3857 = vmatpush1.bf16.msra.mxu0 %v3841
        %3858 = vmatprep.subr.bf16.mxu0 0
        %3859 = vmatpush1.bf16.msra.mxu0 %v3840
        %3860 = vmatprep.subr.bf16.mxu0 0
        %3861 = vmatpush1.bf16.msra.mxu0 %v3839
        %3862 = vmatprep.subr.bf16.mxu0 0
        %3863 = vmatpush1.bf16.msra.mxu0 %v3838
        %3864 = vmatprep.subr.bf16.mxu0 0
        %3865 = vmatpush1.bf16.msra.mxu0 %v3837
        %3866 = vmatprep.subr.bf16.mxu0 0
        %3867 = vmatpush1.bf16.msra.mxu0 %v3836
        %3868 = vmatprep.subr.bf16.mxu0 0
        %3869 = vmatpush2.bf16.msra.mxu0 0
        %3870 = vmatprep.subr.bf16.mxu0 0
        %3871 = vmatpush2.bf16.msra.mxu0 0
        %3872 = vmatprep.subr.bf16.mxu0 0
        %3873 = vmatpush2.bf16.msra.mxu0 0
        %3874 = vmatprep.subr.bf16.mxu0 0
        %3875 = vmatpush2.bf16.msra.mxu0 0
        %3876 = vmatprep.subr.bf16.mxu0 0
        %3877 = vmatpush2.bf16.msra.mxu0 0
        %3878 = vmatprep.subr.bf16.mxu0 0
        %3879 = vmatpush2.bf16.msra.mxu0 0
        %3880 = vmatprep.subr.bf16.mxu0 0
        %3881 = vmatpush2.bf16.msra.mxu0 0
        %3882 = vmatprep.subr.bf16.mxu0 0
        %3883 = vmatpush2.bf16.msra.mxu0 0
        %3884 = vmatprep.mubr.bf16.mxu0 0
        %3885 = vmatmul.mubr.bf16.gmra.mxu0 %v3786
        %v3886 = vpop.f32.mrf.mxu0
        %v3887 = vadd.f32 0.0, %v3886
        %v3888 = vpop.f32.mrf.mxu0
        %v3889 = vpop.f32.mrf.mxu0
        %v3890 = vpop.f32.mrf.mxu0
        %3891 = vdwg.mxu0
        %v3892 = vadd.f32 %v3736, %v3887
        %s3893 = scalar_lea.vmem [#allocation24], 3
        %v3894 = vld [vmem:[%s3893] sm:$0x1]
        %v3896 = vsel %vm3438, %v3894, 0
        %3898 = vmatprep.subr.bf16.mxu0 0
        %3899 = vmatpush1.bf16.msra.mxu0 0
        %3900 = vmatprep.subr.bf16.mxu0 0
        %3901 = vmatpush1.bf16.msra.mxu0 0
        %3902 = vmatprep.subr.bf16.mxu0 0
        %3903 = vmatpush1.bf16.msra.mxu0 0
        %3904 = vmatprep.subr.bf16.mxu0 0
        %3905 = vmatpush1.bf16.msra.mxu0 0
        %3906 = vmatprep.subr.bf16.mxu0 0
        %3907 = vmatpush1.bf16.msra.mxu0 0
        %3908 = vmatprep.subr.bf16.mxu0 0
        %3909 = vmatpush1.bf16.msra.mxu0 0
        %3910 = vmatprep.subr.bf16.mxu0 0
        %3911 = vmatpush1.bf16.msra.mxu0 0
        %3912 = vmatprep.subr.bf16.mxu0 0
        %3913 = vmatpush1.bf16.msra.mxu0 %v3443
        %3914 = vmatprep.subr.bf16.mxu0 0
        %3915 = vmatpush2.bf16.msra.mxu0 0
        %3916 = vmatprep.subr.bf16.mxu0 0
        %3917 = vmatpush2.bf16.msra.mxu0 0
        %3918 = vmatprep.subr.bf16.mxu0 0
        %3919 = vmatpush2.bf16.msra.mxu0 0
        %3920 = vmatprep.subr.bf16.mxu0 0
        %3921 = vmatpush2.bf16.msra.mxu0 0
        %3922 = vmatprep.subr.bf16.mxu0 0
        %3923 = vmatpush2.bf16.msra.mxu0 0
        %3924 = vmatprep.subr.bf16.mxu0 0
        %3925 = vmatpush2.bf16.msra.mxu0 0
        %3926 = vmatprep.subr.bf16.mxu0 0
        %3927 = vmatpush2.bf16.msra.mxu0 0
        %3928 = vmatprep.subr.bf16.mxu0 0
        %3929 = vmatpush2.bf16.msra.mxu0 0
        %3930 = vmatprep.mubr.bf16.mxu0 0
        %3931 = vmatmul.mubr.bf16.gmra.mxu0 %v3896
        %v3932 = vpop.f32.mrf.mxu0
        %v3933 = vadd.f32 0.0, %v3932
        %v3934 = vpop.f32.mrf.mxu0
        %v3935 = vpop.f32.mrf.mxu0
        %v3936 = vpop.f32.mrf.mxu0
        %3937 = vdwg.mxu0
        %v3938 = vpack.c.bf16 %v3933, %v3933
        %s3939 = scalar_lea.vmem %s16, 192
        %v3940 = vld [vmem:[%s3939] sm:$0xf]
        %v3941 = vld [vmem:[%s3939 + $0x4] sm:$0xf]
        %v3942 = vld [vmem:[%s3939 + $0x8] sm:$0xf]
        %v3943 = vld [vmem:[%s3939 + $0xc] sm:$0xf]
        %v3944 = vld [vmem:[%s3939 + $0x10] sm:$0xf]
        %v3945 = vld [vmem:[%s3939 + $0x14] sm:$0xf]
        %v3946 = vld [vmem:[%s3939 + $0x18] sm:$0xf]
        %v3947 = vld [vmem:[%s3939 + $0x1c] sm:$0xf]
        %v3948 = vld [vmem:[%s3939 + $0x20] sm:$0xf]
        %v3949 = vld [vmem:[%s3939 + $0x24] sm:$0xf]
        %v3950 = vld [vmem:[%s3939 + $0x28] sm:$0xf]
        %v3951 = vld [vmem:[%s3939 + $0x2c] sm:$0xf]
        %v3952 = vld [vmem:[%s3939 + $0x30] sm:$0xf]
        %v3953 = vld [vmem:[%s3939 + $0x34] sm:$0xf]
        %v3954 = vld [vmem:[%s3939 + $0x38] sm:$0xf]
        %v3955 = vld [vmem:[%s3939 + $0x3c] sm:$0xf]
        %v3972 = vunpack.c.l.b16 %v3940
        %v3973 = vunpack.c.l.b16 %v3941
        %v3974 = vunpack.c.l.b16 %v3942
        %v3975 = vunpack.c.l.b16 %v3943
        %v3976 = vunpack.c.l.b16 %v3944
        %v3977 = vunpack.c.l.b16 %v3945
        %v3978 = vunpack.c.l.b16 %v3946
        %v3979 = vunpack.c.l.b16 %v3947
        %v3980 = vunpack.c.l.b16 %v3948
        %v3981 = vunpack.c.l.b16 %v3949
        %v3982 = vunpack.c.l.b16 %v3950
        %v3983 = vunpack.c.l.b16 %v3951
        %v3984 = vunpack.c.l.b16 %v3952
        %v3985 = vunpack.c.l.b16 %v3953
        %v3986 = vunpack.c.l.b16 %v3954
        %v3987 = vunpack.c.l.b16 %v3955
        %v3988 = vpack.c.b16 %v3973, %v3972
        %v3989 = vpack.c.b16 %v3975, %v3974
        %v3990 = vpack.c.b16 %v3977, %v3976
        %v3991 = vpack.c.b16 %v3979, %v3978
        %v3992 = vpack.c.b16 %v3981, %v3980
        %v3993 = vpack.c.b16 %v3983, %v3982
        %v3994 = vpack.c.b16 %v3985, %v3984
        %v3995 = vpack.c.b16 %v3987, %v3986
        %4004 = vmatprep.subr.bf16.mxu0 0
        %4005 = vmatpush1.bf16.msra.mxu0 %v3995
        %4006 = vmatprep.subr.bf16.mxu0 0
        %4007 = vmatpush1.bf16.msra.mxu0 %v3994
        %4008 = vmatprep.subr.bf16.mxu0 0
        %4009 = vmatpush1.bf16.msra.mxu0 %v3993
        %4010 = vmatprep.subr.bf16.mxu0 0
        %4011 = vmatpush1.bf16.msra.mxu0 %v3992
        %4012 = vmatprep.subr.bf16.mxu0 0
        %4013 = vmatpush1.bf16.msra.mxu0 %v3991
        %4014 = vmatprep.subr.bf16.mxu0 0
        %4015 = vmatpush1.bf16.msra.mxu0 %v3990
        %4016 = vmatprep.subr.bf16.mxu0 0
        %4017 = vmatpush1.bf16.msra.mxu0 %v3989
        %4018 = vmatprep.subr.bf16.mxu0 0
        %4019 = vmatpush1.bf16.msra.mxu0 %v3988
        %4020 = vmatprep.subr.bf16.mxu0 0
        %4021 = vmatpush2.bf16.msra.mxu0 0
        %4022 = vmatprep.subr.bf16.mxu0 0
        %4023 = vmatpush2.bf16.msra.mxu0 0
        %4024 = vmatprep.subr.bf16.mxu0 0
        %4025 = vmatpush2.bf16.msra.mxu0 0
        %4026 = vmatprep.subr.bf16.mxu0 0
        %4027 = vmatpush2.bf16.msra.mxu0 0
        %4028 = vmatprep.subr.bf16.mxu0 0
        %4029 = vmatpush2.bf16.msra.mxu0 0
        %4030 = vmatprep.subr.bf16.mxu0 0
        %4031 = vmatpush2.bf16.msra.mxu0 0
        %4032 = vmatprep.subr.bf16.mxu0 0
        %4033 = vmatpush2.bf16.msra.mxu0 0
        %4034 = vmatprep.subr.bf16.mxu0 0
        %4035 = vmatpush2.bf16.msra.mxu0 0
        %4036 = vmatprep.mubr.bf16.mxu0 0
        %4037 = vmatmul.mubr.bf16.gmra.mxu0 %v3938
        %v4038 = vpop.f32.mrf.mxu0
        %v4039 = vadd.f32 0.0, %v4038
        %v4040 = vpop.f32.mrf.mxu0
        %v4041 = vpop.f32.mrf.mxu0
        %v4042 = vpop.f32.mrf.mxu0
        %4043 = vdwg.mxu0
        %v4044 = vadd.f32 %v3892, %v4039
        %v4045 = vsel %vm1684, %v4044, 0.0
        %v4046 = vrot.slane %v4045, 4
        %v4047 = vadd.f32 %v4045, %v4046
        %v4048 = vrot.slane %v4047, 2
        %v4049 = vadd.f32 %v4047, %v4048
        %v4050 = vrot.slane %v4049, 1
        %v4051 = vadd.f32 %v4049, %v4050
        %v4052 = vmul.f32 %v4044, %v4044
        %v4053 = vsel %vm1684, %v4052, 0.0
        %v4054 = vrot.slane %v4053, 4
        %v4055 = vadd.f32 %v4053, %v4054
        %v4056 = vrot.slane %v4055, 2
        %v4057 = vadd.f32 %v4055, %v4056
        %v4058 = vrot.slane %v4057, 1
        %v4059 = vadd.f32 %v4057, %v4058
        %v4060 = vsel %vm1572, %v4051, %v4059
        %v4061 = vld [vmem:[#allocation25] sm:$0xff]
        %v4062 = vld [vmem:[#allocation25 + $0x8] sm:$0xff]
        %v4063 = vld [vmem:[#allocation25 + $0x10] sm:$0xff]
        %v4064 = vld [vmem:[#allocation25 + $0x18] sm:$0xff]
        %v4065 = vld [vmem:[#allocation25 + $0x20] sm:$0xff]
        %v4066 = vld [vmem:[#allocation25 + $0x28] sm:$0xff]
        %v4067 = vld [vmem:[#allocation25 + $0x30] sm:$0xff]
        %v4068 = vld [vmem:[#allocation25 + $0x38] sm:$0xff]
        %v4069 = vld [vmem:[#allocation25 + $0x40] sm:$0xff]
        %v4070 = vld [vmem:[#allocation25 + $0x48] sm:$0xff]
        %v4071 = vld [vmem:[#allocation25 + $0x50] sm:$0xff]
        %v4072 = vld [vmem:[#allocation25 + $0x58] sm:$0xff]
        %v4073 = vld [vmem:[#allocation25 + $0x60] sm:$0xff]
        %v4074 = vld [vmem:[#allocation25 + $0x68] sm:$0xff]
        %v4075 = vld [vmem:[#allocation25 + $0x70] sm:$0xff]
        %v4076 = vld [vmem:[#allocation25 + $0x78] sm:$0xff]
        %4077 = vmatprep.subr.mxu0 0.0
        %4078 = vmatpush1.msra.mxu0 %v4076
        %4079 = vmatprep.subr.mxu0 0.0
        %4080 = vmatpush1.msra.mxu0 %v4075
        %4081 = vmatprep.subr.mxu0 0.0
        %4082 = vmatpush1.msra.mxu0 %v4074
        %4083 = vmatprep.subr.mxu0 0.0
        %4084 = vmatpush1.msra.mxu0 %v4073
        %4085 = vmatprep.subr.mxu0 0.0
        %4086 = vmatpush1.msra.mxu0 %v4072
        %4087 = vmatprep.subr.mxu0 0.0
        %4088 = vmatpush1.msra.mxu0 %v4071
        %4089 = vmatprep.subr.mxu0 0.0
        %4090 = vmatpush1.msra.mxu0 %v4070
        %4091 = vmatprep.subr.mxu0 0.0
        %4092 = vmatpush1.msra.mxu0 %v4069
        %4093 = vmatprep.subr.mxu0 0.0
        %4094 = vmatpush1.msra.mxu0 %v4068
        %4095 = vmatprep.subr.mxu0 0.0
        %4096 = vmatpush1.msra.mxu0 %v4067
        %4097 = vmatprep.subr.mxu0 0.0
        %4098 = vmatpush1.msra.mxu0 %v4066
        %4099 = vmatprep.subr.mxu0 0.0
        %4100 = vmatpush1.msra.mxu0 %v4065
        %4101 = vmatprep.subr.mxu0 0.0
        %4102 = vmatpush1.msra.mxu0 %v4064
        %4103 = vmatprep.subr.mxu0 0.0
        %4104 = vmatpush1.msra.mxu0 %v4063
        %4105 = vmatprep.subr.mxu0 0.0
        %4106 = vmatpush1.msra.mxu0 %v4062
        %4107 = vmatprep.subr.mxu0 0.0
        %4108 = vmatpush1.msra.mxu0 %v4061
        %4109 = vmatprep.subr.mxu0 0.0
        %4110 = vmatpush2.msra.mxu0 0.0
        %4111 = vmatprep.subr.mxu0 0.0
        %4112 = vmatpush2.msra.mxu0 0.0
        %4113 = vmatprep.subr.mxu0 0.0
        %4114 = vmatpush2.msra.mxu0 0.0
        %4115 = vmatprep.subr.mxu0 0.0
        %4116 = vmatpush2.msra.mxu0 0.0
        %4117 = vmatprep.subr.mxu0 0.0
        %4118 = vmatpush2.msra.mxu0 0.0
        %4119 = vmatprep.subr.mxu0 0.0
        %4120 = vmatpush2.msra.mxu0 0.0
        %4121 = vmatprep.subr.mxu0 0.0
        %4122 = vmatpush2.msra.mxu0 0.0
        %4123 = vmatprep.subr.mxu0 0.0
        %4124 = vmatpush2.msra.mxu0 0.0
        %4125 = vmatprep.subr.mxu0 0.0
        %4126 = vmatpush2.msra.mxu0 0.0
        %4127 = vmatprep.subr.mxu0 0.0
        %4128 = vmatpush2.msra.mxu0 0.0
        %4129 = vmatprep.subr.mxu0 0.0
        %4130 = vmatpush2.msra.mxu0 0.0
        %4131 = vmatprep.subr.mxu0 0.0
        %4132 = vmatpush2.msra.mxu0 0.0
        %4133 = vmatprep.subr.mxu0 0.0
        %4134 = vmatpush2.msra.mxu0 0.0
        %4135 = vmatprep.subr.mxu0 0.0
        %4136 = vmatpush2.msra.mxu0 0.0
        %4137 = vmatprep.subr.mxu0 0.0
        %4138 = vmatpush2.msra.mxu0 0.0
        %4139 = vmatprep.subr.mxu0 0.0
        %4140 = vmatpush2.msra.mxu0 0.0
        %4141 = vmatprep.mubr.f32.mxu0 0.0
        %4142 = vmatmul.mubr.f32.gmra.mxu0 %v4060
        %v4143 = vpop.f32.mrf.mxu0
        %v4144 = vadd.f32 0.0, %v4143
        %v4145 = vpop.f32.mrf.mxu0
        %4146 = vdwg.mxu0
        %v4147 = vmul.f32 %v4144, 0.25
        %v4148 = vmul.f32 %v4147, %v4147
        %v4150 = vrot.slane %v4148, 7
        %v4152 = vsub.f32 %v4147, %v4150
        %v4153 = vld [vmem:[%s18] sm:$0x1]
        %v4154 = vld [vmem:[%s18 + $0x1] sm:$0x1]
        %v4155 = vld [vmem:[%s18 + $0x2] sm:$0x1]
        %v4156 = vadd.f32 %v4152, 1e-05
        %v4157 = vrsqrt.pop %v4156
        %v4159 = vrot.slane %v4157, 1
        %v4161 = vmul.f32 %v4153, %v4159
        %v4162 = vmul.f32 %v4147, %v4161
        %v4163 = vsub.f32 %v4154, %v4162
        %v4165 = vrot.slane %v4163, 7
        %v4168 = vrot.slane %v4155, 6
        %v4170 = vsel %vm1572, %v4161, %v4165
        %v4171 = vsel %vm1684, %v4170, %v4168
        %v4172 = vld [vmem:[#allocation27] sm:$0xff]
        %v4173 = vld [vmem:[#allocation27 + $0x8] sm:$0xff]
        %v4174 = vld [vmem:[#allocation27 + $0x10] sm:$0xff]
        %v4175 = vld [vmem:[#allocation27 + $0x18] sm:$0xff]
        %v4176 = vld [vmem:[#allocation27 + $0x20] sm:$0xff]
        %v4177 = vld [vmem:[#allocation27 + $0x28] sm:$0xff]
        %v4178 = vld [vmem:[#allocation27 + $0x30] sm:$0xff]
        %v4179 = vld [vmem:[#allocation27 + $0x38] sm:$0xff]
        %v4181 = vsel %vm1179, %v4171, 0
        %4183 = vmatprep.subr.mxu0 0.0
        %4184 = vmatpush1.msra.mxu0 0.0
        %4185 = vmatprep.subr.mxu0 0.0
        %4186 = vmatpush1.msra.mxu0 0.0
        %4187 = vmatprep.subr.mxu0 0.0
        %4188 = vmatpush1.msra.mxu0 0.0
        %4189 = vmatprep.subr.mxu0 0.0
        %4190 = vmatpush1.msra.mxu0 0.0
        %4191 = vmatprep.subr.mxu0 0.0
        %4192 = vmatpush1.msra.mxu0 0.0
        %4193 = vmatprep.subr.mxu0 0.0
        %4194 = vmatpush1.msra.mxu0 0.0
        %4195 = vmatprep.subr.mxu0 0.0
        %4196 = vmatpush1.msra.mxu0 0.0
        %4197 = vmatprep.subr.mxu0 0.0
        %4198 = vmatpush1.msra.mxu0 0.0
        %4199 = vmatprep.subr.mxu0 0.0
        %4200 = vmatpush1.msra.mxu0 %v4179
        %4201 = vmatprep.subr.mxu0 0.0
        %4202 = vmatpush1.msra.mxu0 %v4178
        %4203 = vmatprep.subr.mxu0 0.0
        %4204 = vmatpush1.msra.mxu0 %v4177
        %4205 = vmatprep.subr.mxu0 0.0
        %4206 = vmatpush1.msra.mxu0 %v4176
        %4207 = vmatprep.subr.mxu0 0.0
        %4208 = vmatpush1.msra.mxu0 %v4175
        %4209 = vmatprep.subr.mxu0 0.0
        %4210 = vmatpush1.msra.mxu0 %v4174
        %4211 = vmatprep.subr.mxu0 0.0
        %4212 = vmatpush1.msra.mxu0 %v4173
        %4213 = vmatprep.subr.mxu0 0.0
        %4214 = vmatpush1.msra.mxu0 %v4172
        %4215 = vmatprep.subr.mxu0 0.0
        %4216 = vmatpush2.msra.mxu0 0.0
        %4217 = vmatprep.subr.mxu0 0.0
        %4218 = vmatpush2.msra.mxu0 0.0
        %4219 = vmatprep.subr.mxu0 0.0
        %4220 = vmatpush2.msra.mxu0 0.0
        %4221 = vmatprep.subr.mxu0 0.0
        %4222 = vmatpush2.msra.mxu0 0.0
        %4223 = vmatprep.subr.mxu0 0.0
        %4224 = vmatpush2.msra.mxu0 0.0
        %4225 = vmatprep.subr.mxu0 0.0
        %4226 = vmatpush2.msra.mxu0 0.0
        %4227 = vmatprep.subr.mxu0 0.0
        %4228 = vmatpush2.msra.mxu0 0.0
        %4229 = vmatprep.subr.mxu0 0.0
        %4230 = vmatpush2.msra.mxu0 0.0
        %4231 = vmatprep.subr.mxu0 0.0
        %4232 = vmatpush2.msra.mxu0 0.0
        %4233 = vmatprep.subr.mxu0 0.0
        %4234 = vmatpush2.msra.mxu0 0.0
        %4235 = vmatprep.subr.mxu0 0.0
        %4236 = vmatpush2.msra.mxu0 0.0
        %4237 = vmatprep.subr.mxu0 0.0
        %4238 = vmatpush2.msra.mxu0 0.0
        %4239 = vmatprep.subr.mxu0 0.0
        %4240 = vmatpush2.msra.mxu0 0.0
        %4241 = vmatprep.subr.mxu0 0.0
        %4242 = vmatpush2.msra.mxu0 0.0
        %4243 = vmatprep.subr.mxu0 0.0
        %4244 = vmatpush2.msra.mxu0 0.0
        %4245 = vmatprep.subr.mxu0 0.0
        %4246 = vmatpush2.msra.mxu0 0.0
        %4247 = vmatprep.mubr.f32.mxu0 0.0
        %4248 = vmatmul.mubr.f32.gmra.mxu0 %v4181
        %v4249 = vpop.f32.mrf.mxu0
        %v4250 = vadd.f32 0.0, %v4249
        %v4251 = vpop.f32.mrf.mxu0
        %4252 = vdwg.mxu0
        %v4253 = vlaneseq
        %v4254 = vshrl.u32 %v4253, 7
        %v4255 = vsub.s32 0, %v4254
        %v4256 = vrot.slane %v4250, %v4255
        %v4257 = vmul.f32 %v4044, %v4256
        %v4258 = vlaneseq
        %v4259 = vshrl.u32 %v4258, 7
        %v4260 = vsub.s32 1, %v4259
        %v4261 = vrot.slane %v4250, %v4260
        %v4262 = vadd.f32 %v4257, %v4261
        %vm4263 = vcmp.ge.f32.partialorder %v4262, 0.0
        %v4264 = vlaneseq
        %v4265 = vshrl.u32 %v4264, 7
        %v4266 = vsub.s32 2, %v4265
        %v4267 = vrot.slane %v4250, %v4266
        %v4268 = vmul.f32 %v4267, %v4262
        %v4269 = vsel %vm4263, %v4262, %v4268
        %v4270 = vsel %vm1684, %v4269, -inf
        %v4271 = vrot.slane %v4270, 4
        %v4272 = vmax.f32 %v4270, %v4271
        %v4273 = vrot.slane %v4272, 2
        %v4274 = vmax.f32 %v4272, %v4273
        %v4275 = vrot.slane %v4274, 1
        %v4276 = vmax.f32 %v4274, %v4275
        %4277 = vrot.lane.b32.xlu0 %v4276, 64
        %v4278 = vpop.permute.xlu0 %4277
        %v4279 = vmax.f32 %v4276, %v4278
        %v4280 = vld [vmem:[%s21] sm:$0xff]
        %v4281 = vld [vmem:[%s21 + $0x8] sm:$0xff]
        %v4282 = vld [vmem:[%s21 + $0x10] sm:$0xff]
        %v4283 = vld [vmem:[%s21 + $0x18] sm:$0xff]
        %v4284 = vld [vmem:[%s21 + $0x20] sm:$0xff]
        %v4285 = vld [vmem:[%s21 + $0x28] sm:$0xff]
        %v4286 = vld [vmem:[%s21 + $0x30] sm:$0xff]
        %v4287 = vld [vmem:[%s21 + $0x38] sm:$0xff]
        %v4288 = vld [vmem:[%s22] sm:$0x1]
        %v4290 = vsel %vm1179, %v4279, 0
        %4292 = vmatprep.subr.mxu0 0.0
        %4293 = vmatpush1.msra.mxu0 0.0
        %4294 = vmatprep.subr.mxu0 0.0
        %4295 = vmatpush1.msra.mxu0 0.0
        %4296 = vmatprep.subr.mxu0 0.0
        %4297 = vmatpush1.msra.mxu0 0.0
        %4298 = vmatprep.subr.mxu0 0.0
        %4299 = vmatpush1.msra.mxu0 0.0
        %4300 = vmatprep.subr.mxu0 0.0
        %4301 = vmatpush1.msra.mxu0 0.0
        %4302 = vmatprep.subr.mxu0 0.0
        %4303 = vmatpush1.msra.mxu0 0.0
        %4304 = vmatprep.subr.mxu0 0.0
        %4305 = vmatpush1.msra.mxu0 0.0
        %4306 = vmatprep.subr.mxu0 0.0
        %4307 = vmatpush1.msra.mxu0 0.0
        %4308 = vmatprep.subr.mxu0 0.0
        %4309 = vmatpush1.msra.mxu0 %v4287
        %4310 = vmatprep.subr.mxu0 0.0
        %4311 = vmatpush1.msra.mxu0 %v4286
        %4312 = vmatprep.subr.mxu0 0.0
        %4313 = vmatpush1.msra.mxu0 %v4285
        %4314 = vmatprep.subr.mxu0 0.0
        %4315 = vmatpush1.msra.mxu0 %v4284
        %4316 = vmatprep.subr.mxu0 0.0
        %4317 = vmatpush1.msra.mxu0 %v4283
        %4318 = vmatprep.subr.mxu0 0.0
        %4319 = vmatpush1.msra.mxu0 %v4282
        %4320 = vmatprep.subr.mxu0 0.0
        %4321 = vmatpush1.msra.mxu0 %v4281
        %4322 = vmatprep.subr.mxu0 0.0
        %4323 = vmatpush1.msra.mxu0 %v4280
        %4324 = vmatprep.subr.mxu0 0.0
        %4325 = vmatpush2.msra.mxu0 0.0
        %4326 = vmatprep.subr.mxu0 0.0
        %4327 = vmatpush2.msra.mxu0 0.0
        %4328 = vmatprep.subr.mxu0 0.0
        %4329 = vmatpush2.msra.mxu0 0.0
        %4330 = vmatprep.subr.mxu0 0.0
        %4331 = vmatpush2.msra.mxu0 0.0
        %4332 = vmatprep.subr.mxu0 0.0
        %4333 = vmatpush2.msra.mxu0 0.0
        %4334 = vmatprep.subr.mxu0 0.0
        %4335 = vmatpush2.msra.mxu0 0.0
        %4336 = vmatprep.subr.mxu0 0.0
        %4337 = vmatpush2.msra.mxu0 0.0
        %4338 = vmatprep.subr.mxu0 0.0
        %4339 = vmatpush2.msra.mxu0 0.0
        %4340 = vmatprep.subr.mxu0 0.0
        %4341 = vmatpush2.msra.mxu0 0.0
        %4342 = vmatprep.subr.mxu0 0.0
        %4343 = vmatpush2.msra.mxu0 0.0
        %4344 = vmatprep.subr.mxu0 0.0
        %4345 = vmatpush2.msra.mxu0 0.0
        %4346 = vmatprep.subr.mxu0 0.0
        %4347 = vmatpush2.msra.mxu0 0.0
        %4348 = vmatprep.subr.mxu0 0.0
        %4349 = vmatpush2.msra.mxu0 0.0
        %4350 = vmatprep.subr.mxu0 0.0
        %4351 = vmatpush2.msra.mxu0 0.0
        %4352 = vmatprep.subr.mxu0 0.0
        %4353 = vmatpush2.msra.mxu0 0.0
        %4354 = vmatprep.subr.mxu0 0.0
        %4355 = vmatpush2.msra.mxu0 0.0
        %4356 = vmatprep.mubr.f32.mxu0 0.0
        %4357 = vmatmul.mubr.f32.gmra.mxu0 %v4290
        %v4358 = vpop.f32.mrf.mxu0
        %v4359 = vadd.f32 %v4288, %v4358
        %v4360 = vpop.f32.mrf.mxu0
        %4361 = vdwg.mxu0
        %vm4362 = vcmp.ge.f32.partialorder %v4359, 0.0
        %v4363 = vld [vmem:[%s22 + $0x1] sm:$0x1]
        %v4364 = vmul.f32 %v4363, %v4359
        %v4365 = vsel %vm4362, %v4359, %v4364
        %v4366 = vld [vmem:[#allocation28] sm:$0xff]
        %v4367 = vld [vmem:[#allocation28 + $0x8] sm:$0xff]
        %v4368 = vld [vmem:[#allocation28 + $0x10] sm:$0xff]
        %v4369 = vld [vmem:[#allocation28 + $0x18] sm:$0xff]
        %v4370 = vld [vmem:[%s24] sm:$0x1]
        %v4372 = vsel %vm1039, %v4365, 0
        %4374 = vmatprep.subr.mxu0 0.0
        %4375 = vmatpush1.msra.mxu0 0.0
        %4376 = vmatprep.subr.mxu0 0.0
        %4377 = vmatpush1.msra.mxu0 0.0
        %4378 = vmatprep.subr.mxu0 0.0
        %4379 = vmatpush1.msra.mxu0 0.0
        %4380 = vmatprep.subr.mxu0 0.0
        %4381 = vmatpush1.msra.mxu0 0.0
        %4382 = vmatprep.subr.mxu0 0.0
        %4383 = vmatpush1.msra.mxu0 0.0
        %4384 = vmatprep.subr.mxu0 0.0
        %4385 = vmatpush1.msra.mxu0 0.0
        %4386 = vmatprep.subr.mxu0 0.0
        %4387 = vmatpush1.msra.mxu0 0.0
        %4388 = vmatprep.subr.mxu0 0.0
        %4389 = vmatpush1.msra.mxu0 0.0
        %4390 = vmatprep.subr.mxu0 0.0
        %4391 = vmatpush1.msra.mxu0 0.0
        %4392 = vmatprep.subr.mxu0 0.0
        %4393 = vmatpush1.msra.mxu0 0.0
        %4394 = vmatprep.subr.mxu0 0.0
        %4395 = vmatpush1.msra.mxu0 0.0
        %4396 = vmatprep.subr.mxu0 0.0
        %4397 = vmatpush1.msra.mxu0 0.0
        %4398 = vmatprep.subr.mxu0 0.0
        %4399 = vmatpush1.msra.mxu0 %v4369
        %4400 = vmatprep.subr.mxu0 0.0
        %4401 = vmatpush1.msra.mxu0 %v4368
        %4402 = vmatprep.subr.mxu0 0.0
        %4403 = vmatpush1.msra.mxu0 %v4367
        %4404 = vmatprep.subr.mxu0 0.0
        %4405 = vmatpush1.msra.mxu0 %v4366
        %4406 = vmatprep.subr.mxu0 0.0
        %4407 = vmatpush2.msra.mxu0 0.0
        %4408 = vmatprep.subr.mxu0 0.0
        %4409 = vmatpush2.msra.mxu0 0.0
        %4410 = vmatprep.subr.mxu0 0.0
        %4411 = vmatpush2.msra.mxu0 0.0
        %4412 = vmatprep.subr.mxu0 0.0
        %4413 = vmatpush2.msra.mxu0 0.0
        %4414 = vmatprep.subr.mxu0 0.0
        %4415 = vmatpush2.msra.mxu0 0.0
        %4416 = vmatprep.subr.mxu0 0.0
        %4417 = vmatpush2.msra.mxu0 0.0
        %4418 = vmatprep.subr.mxu0 0.0
        %4419 = vmatpush2.msra.mxu0 0.0
        %4420 = vmatprep.subr.mxu0 0.0
        %4421 = vmatpush2.msra.mxu0 0.0
        %4422 = vmatprep.subr.mxu0 0.0
        %4423 = vmatpush2.msra.mxu0 0.0
        %4424 = vmatprep.subr.mxu0 0.0
        %4425 = vmatpush2.msra.mxu0 0.0
        %4426 = vmatprep.subr.mxu0 0.0
        %4427 = vmatpush2.msra.mxu0 0.0
        %4428 = vmatprep.subr.mxu0 0.0
        %4429 = vmatpush2.msra.mxu0 0.0
        %4430 = vmatprep.subr.mxu0 0.0
        %4431 = vmatpush2.msra.mxu0 0.0
        %4432 = vmatprep.subr.mxu0 0.0
        %4433 = vmatpush2.msra.mxu0 0.0
        %4434 = vmatprep.subr.mxu0 0.0
        %4435 = vmatpush2.msra.mxu0 0.0
        %4436 = vmatprep.subr.mxu0 0.0
        %4437 = vmatpush2.msra.mxu0 0.0
        %4438 = vmatprep.mubr.f32.mxu0 0.0
        %4439 = vmatmul.mubr.f32.gmra.mxu0 %v4372
        %v4440 = vpop.f32.mrf.mxu0
        %v4441 = vadd.f32 %v4370, %v4440
        %v4442 = vpop.f32.mrf.mxu0
        %4443 = vdwg.mxu0
        %v4444 = vld [vmem:[%s24 + $0x1] sm:$0x1]
        %v4445 = vmul.f32 %v4444, %v4441
        %v4446 = vxor.u32 %v4445, 2147483648
        %v4447 = vmul.f32 %v4446, 1.442695
        %v4448 = vpow.pop %v4447
        %v4449 = vadd.f32 %v4448, 1.0
        %v4450 = vrcp.pop %v4449
        %v4451 = vmul.f32 1.0, %v4450
        %v4452 = vmul.f32 %v4451, 1.2
        %vm4453 = vcmask 0
        %4454 = vst.msk [vmem:[%s1014] sm:$0x1] %vm4453, %v4452
        %p4455 = scmp.lt.s32.totalorder %s46, 1
        %s4456 = scalar_select %p4455, %s46, 1
        %s4457 = scalar_lea.vmem %s25, %s4456
        // Predicated region
        $region193: #{_lambda_.1} parent=119 // pred_check
          %p4458 = pneg %p594
        $region194: #{_lambda_.1} parent=119 // pred_check_branch
          %4460 = sbr.rel (%p4458) target = $region196
        $region195: #{_lambda_.1} parent=119 // pred_region
          _
        $region196: #{_lambda_.1} parent=119 // pred_fallthru
          _
      $region120: #{_lambda_.1} parent=5 // pred_fallthru
        _
      %p4461 = scmp.le.s32.totalorder 2, %s41
      // Predicated region
      $region197: #{_lambda_.1} parent=5 // pred_check
        %p4462 = pneg %p4461
      $region198: #{_lambda_.1} parent=5 // pred_check_branch
        %4464 = sbr.rel (%p4462) target = $region200
      $region199: #{_lambda_.1} parent=5 // pred_region
        %s4465 = ssub.s32 %s41, 2
        // Predicated region
        $region201: #{_lambda_.1} parent=199 // pred_check
          %p4466 = pneg %p600
        $region202: #{_lambda_.1} parent=199 // pred_check_branch
          %4468 = sbr.rel (%p4466) target = $region204
        $region203: #{_lambda_.1} parent=199 // pred_region
          %p4469 = scmp.lt.s32.totalorder %s47, 1
          %s4470 = scalar_select %p4469, %s47, 1
          %s4471 = scalar_lea.vmem %s25, %s4470
        $region204: #{_lambda_.1} parent=199 // pred_fallthru
          _
      $region200: #{_lambda_.1} parent=5 // pred_fallthru
        _
    $region6: #{_lambda_.1} parent=1 // loop_footer
      %s45 = sadd.s32 1, %s41
    $region7: #{_lambda_.1} parent=1 // loop_footer_branch
      %40 = sbr.rel target = $region3
    $region8: #{_lambda_.1} parent=1 // loop_exit
      _
    %4472 = vsyncpa [#allocation3], 1
    %s4473 = scalar_lea.sflag [#allocation3], 1
    %4474 = vsyncpa %s4473, 1
    %4475 = vsyncpa [#allocation5], 1
    %4476 = vsyncpa [#allocation8], 1
    %4477 = vsyncpa [#allocation11], 1
    %4478 = vsyncpa [#allocation14], 1
    %4479 = vsyncpa [#allocation17], 1
    %4480 = vsyncpa [#allocation20], 1
    %4481 = vsyncpa [#allocation23], 1
    %4482 = vsyncpa [#allocation26], 1
    %4483 = vsyncpa [#allocation29], 1

</llo_original>
